<compile_context>
chip_gen: v5e
topology: v5e:2x2
jax: 0.10.0
libtpu: 0.0.40
codegen_flags: <defaults>
</compile_context>

<pallas_src>
import math
import functools

import jax
import jax.numpy as jnp
from jax.experimental import pallas as pl
from jax.experimental.pallas import tpu as pltpu


# ----------------------------- helpers ---------------------------------------

def _row_tile(M, target=512):
    """Largest row tile <= target that divides M (multiple of 8), else M."""
    if M <= target:
        return M
    t = target - (target % 8)
    while t >= 8:
        if M % t == 0:
            return t
        t -= 8
    return M


def _col_tile(N, target=512):
    """Largest 128-multiple column tile <= target that divides N, else N."""
    if N <= target:
        return N
    t = (target // 128) * 128
    while t >= 128:
        if N % t == 0:
            return t
        t -= 128
    return N


def _params(semantics, block_bytes):
    """CompilerParams with a VMEM budget sized from the actual tile footprint."""
    limit = int(min(64 << 20, max(8 << 20, 3 * block_bytes + (2 << 20))))
    return pltpu.CompilerParams(dimension_semantics=semantics,
                                vmem_limit_bytes=limit)


def rope_tables(grid_shape, D):
    """Axial 2D RoPE cos/sin tables of shape (T, D), rotate-half convention."""
    Fp, Tp = grid_shape
    h = D // 2
    q = h // 2
    f_pos = jnp.repeat(jnp.arange(Fp, dtype=jnp.float32), Tp)   # (T,)
    t_pos = jnp.tile(jnp.arange(Tp, dtype=jnp.float32), Fp)     # (T,)
    inv = 1.0 / (10000.0 ** (jnp.arange(q, dtype=jnp.float32) / q))
    ang_f = f_pos[:, None] * inv[None, :]                       # (T, D/4)
    ang_t = t_pos[:, None] * inv[None, :]
    cos = jnp.concatenate([jnp.cos(ang_f), jnp.cos(ang_f),
                           jnp.cos(ang_t), jnp.cos(ang_t)], axis=-1)
    sin = jnp.concatenate([jnp.sin(ang_f), jnp.sin(ang_f),
                           jnp.sin(ang_t), jnp.sin(ang_t)], axis=-1)
    return cos, sin


# ----------------------------- kernel A: attention half -----------------------

def _attn_block_kernel(x_ref, cos_ref, sin_ref, g_ref, b_ref, wqkv_ref,
                       bqkv_ref, wo_ref, bo_ref, o_ref, attn_sc,
                       *, eps, d_model, n_heads, scale):
    """LN1 -> 2D RoPE -> fused QKV GEMM -> MHA -> out-proj -> +residual.

    One batch per grid point; QKV and the per-head attention outputs stay in
    VMEM. All MXU operands bf16 with f32 accumulation; LN/softmax math in f32.
    """
    D = d_model
    dh = D // n_heads

    x = x_ref[0].astype(jnp.float32)                         # (T, D)
    mu = jnp.mean(x, axis=-1, keepdims=True)
    var = jnp.mean(jnp.square(x - mu), axis=-1, keepdims=True)
    xn = (x - mu) * jax.lax.rsqrt(var + eps)
    xn = xn * g_ref[...] + b_ref[...]

    # axial 2D RoPE (rotate-half within each half of D)
    h = D // 2
    q4 = h // 2
    xf, xt = xn[:, :h], xn[:, h:]
    rot = jnp.concatenate([-xf[:, q4:], xf[:, :q4],
                           -xt[:, q4:], xt[:, :q4]], axis=-1)
    xr = xn * cos_ref[...] + rot * sin_ref[...]              # (T, D) f32

    # fused QKV projection
    qkv = jnp.dot(xr.astype(jnp.bfloat16), wqkv_ref[...],
                  preferred_element_type=jnp.float32) + bqkv_ref[...]
    qkv = qkv.astype(jnp.bfloat16)                           # (T, 3D)

    # multi-head attention: per-head output written straight into a VMEM
    # scratch slice (no concat / long live ranges); softmax scale folded into
    # Q; deferred normalization via approx reciprocal on the EUP.
    for hh in range(n_heads):
        sl = slice(hh * dh, (hh + 1) * dh)
        q = qkv[:, hh * dh:(hh + 1) * dh] * scale            # bf16 (T, dh)
        k = qkv[:, D + hh * dh:D + (hh + 1) * dh]
        v = qkv[:, 2 * D + hh * dh:2 * D + (hh + 1) * dh]
        s = jax.lax.dot_general(q, k, (((1,), (1,)), ((), ())),
                                preferred_element_type=jnp.float32)  # (T, T)
        m = jnp.max(s, axis=-1, keepdims=True)
        p = jnp.exp(s - m)
        l = jnp.sum(p, axis=-1, keepdims=True)
        o = jnp.dot(p.astype(jnp.bfloat16), v,
                    preferred_element_type=jnp.float32)      # (T, dh)
        attn_sc[:, sl] = o * pl.reciprocal(l, approx=True)

    # out-projection + residual (residual folded into the GEMM epilogue)
    y = jnp.dot(attn_sc[...].astype(jnp.bfloat16), wo_ref[...],
                preferred_element_type=jnp.float32)
    o_ref[0] = (y + bo_ref[...] + x).astype(o_ref.dtype)


def attn_residual(x, cos, sin, g, b, wqkv, bqkv, wo, bo, n_heads, eps=1e-5):
    B, T, D = x.shape
    N3 = wqkv.shape[1]
    scale = 1.0 / math.sqrt(D // n_heads)
    block_bytes = (2 * T * D * 4            # x block + out block
                   + 2 * T * D * 4          # cos, sin
                   + 2 * D * 4              # ln gamma/beta
                   + D * N3 * 2 + N3 * 4    # wqkv, bqkv
                   + D * D * 2 + D * 4      # wo, bo
                   + T * D * 4)             # attention scratch
    return pl.pallas_call(
        functools.partial(_attn_block_kernel, eps=eps, d_model=D,
                          n_heads=n_heads, scale=scale),
        out_shape=jax.ShapeDtypeStruct((B, T, D), jnp.float32),
        grid=(B,),
        in_specs=[
            pl.BlockSpec((1, T, D), lambda bi: (bi, 0, 0)),
            pl.BlockSpec((T, D), lambda bi: (0, 0)),
            pl.BlockSpec((T, D), lambda bi: (0, 0)),
            pl.BlockSpec((1, D), lambda bi: (0, 0)),
            pl.BlockSpec((1, D), lambda bi: (0, 0)),
            pl.BlockSpec((D, N3), lambda bi: (0, 0)),
            pl.BlockSpec((1, N3), lambda bi: (0, 0)),
            pl.BlockSpec((D, D), lambda bi: (0, 0)),
            pl.BlockSpec((1, D), lambda bi: (0, 0)),
        ],
        out_specs=pl.BlockSpec((1, T, D), lambda bi: (bi, 0, 0)),
        scratch_shapes=[pltpu.VMEM((T, D), jnp.float32)],
        compiler_params=_params(("parallel",), block_bytes),
    )(x, cos, sin, g.reshape(1, D), b.reshape(1, D), wqkv,
      bqkv.reshape(1, N3), wo, bo.reshape(1, D))


# ----------------------------- kernel B: FFN half ------------------------------

def _ffn_block_kernel(x_ref, g_ref, b_ref, w1_ref, b1_ref, w2_ref, b2_ref,
                      o_ref, xn_sc, acc_sc, *, eps):
    """LN2 -> FFN-up GEMM -> GELU -> FFN-down GEMM -> +residual.

    Hidden dim = reduction grid axis; LN output cached in bf16 scratch at step
    0, down-projection accumulated in an f32 scratch, output written at the
    last step. The (tm, 4D) GELU intermediate never leaves VMEM.
    """
    n = pl.program_id(1)

    @pl.when(n == 0)
    def _():
        x = x_ref[...].astype(jnp.float32)
        mu = jnp.mean(x, axis=-1, keepdims=True)
        var = jnp.mean(jnp.square(x - mu), axis=-1, keepdims=True)
        xn = (x - mu) * jax.lax.rsqrt(var + eps)
        xn_sc[...] = (xn * g_ref[...] + b_ref[...]).astype(jnp.bfloat16)
        acc_sc[...] = jnp.zeros_like(acc_sc)

    up = jnp.dot(xn_sc[...], w1_ref[...],
                 preferred_element_type=jnp.float32) + b1_ref[...]
    hmid = jax.nn.gelu(up, approximate=True).astype(jnp.bfloat16)
    acc_sc[...] += jnp.dot(hmid, w2_ref[...],
                           preferred_element_type=jnp.float32)

    @pl.when(n == pl.num_programs(1) - 1)
    def _():
        y = acc_sc[...] + b2_ref[...] + x_ref[...].astype(jnp.float32)
        o_ref[...] = y.astype(o_ref.dtype)


def ffn_residual(x, g, b, w1, b1, w2, b2, eps=1e-5):
    M, D = x.shape
    Hf = w1.shape[1]
    tm = _row_tile(M)
    tn = _col_tile(Hf)
    block_bytes = (tm * D * 4                # x block (input + residual)
                   + 2 * D * 4               # ln gamma/beta
                   + D * tn * 2 + tn * 4     # w1 tile, b1 tile
                   + tn * D * 2 + D * 4      # w2 tile, b2
                   + tm * D * 4              # out block
                   + tm * D * 2 + tm * D * 4)  # xn / acc scratches
    return pl.pallas_call(
        functools.partial(_ffn_block_kernel, eps=eps),
        out_shape=jax.ShapeDtypeStruct((M, D), jnp.float32),
        grid=(M // tm, Hf // tn),
        in_specs=[
            pl.BlockSpec((tm, D), lambda i, n: (i, 0)),
            pl.BlockSpec((1, D), lambda i, n: (0, 0)),
            pl.BlockSpec((1, D), lambda i, n: (0, 0)),
            pl.BlockSpec((D, tn), lambda i, n: (0, n)),
            pl.BlockSpec((1, tn), lambda i, n: (0, n)),
            pl.BlockSpec((tn, D), lambda i, n: (n, 0)),
            pl.BlockSpec((1, D), lambda i, n: (0, 0)),
        ],
        out_specs=pl.BlockSpec((tm, D), lambda i, n: (i, 0)),
        scratch_shapes=[pltpu.VMEM((tm, D), jnp.bfloat16),
                        pltpu.VMEM((tm, D), jnp.float32)],
        compiler_params=_params(("parallel", "arbitrary"), block_bytes),
    )(x, g.reshape(1, D), b.reshape(1, D), w1, b1.reshape(1, Hf),
      w2, b2.reshape(1, D))


# ----------------------------- SDPABlock forward ------------------------------

def sdpa_block(x, cos, sin, p, n_heads):
    """x: (B, T, D) float32; cos/sin: precomputed (T, D) RoPE tables."""
    B, T, D = x.shape
    x1 = attn_residual(x, cos, sin, p["ln1_g"], p["ln1_b"],
                       p["wqkv"], p["bqkv"], p["wo"], p["bo"], n_heads)
    x2 = ffn_residual(x1.reshape(B * T, D), p["ln2_g"], p["ln2_b"],
                      p["w1"], p["b1"], p["w2"], p["b2"])
    return x2.reshape(B, T, D)


# ----------------------------- pure-JAX reference -----------------------------

def _ref_ln(x, g, b, eps=1e-5):
    mu = jnp.mean(x, axis=-1, keepdims=True)
    var = jnp.mean(jnp.square(x - mu), axis=-1, keepdims=True)
    return (x - mu) * jax.lax.rsqrt(var + eps) * g + b


def sdpa_block_ref(x, grid_shape, p, n_heads):
    B, T, D = x.shape
    dh = D // n_heads
    cos, sin = rope_tables(grid_shape, D)
    xn = _ref_ln(x, p["ln1_g"], p["ln1_b"])
    h = D // 2
    q4 = h // 2
    xf, xt = xn[..., :h], xn[..., h:]
    rot = jnp.concatenate([-xf[..., q4:], xf[..., :q4],
                           -xt[..., q4:], xt[..., :q4]], axis=-1)
    xr = xn * cos[None] + rot * sin[None]
    qkv = xr @ p["wqkv"].astype(jnp.float32) + p["bqkv"]
    q, k, v = jnp.split(qkv, 3, axis=-1)

    def heads(z):
        return z.reshape(B, T, n_heads, dh).transpose(0, 2, 1, 3)

    q, k, v = heads(q), heads(k), heads(v)
    s = jnp.einsum("bhqd,bhkd->bhqk", q, k) / math.sqrt(dh)
    a = jax.nn.softmax(s, axis=-1)
    o = jnp.einsum("bhqk,bhkd->bhqd", a, v).transpose(0, 2, 1, 3).reshape(B, T, D)
    x1 = x + o @ p["wo"].astype(jnp.float32) + p["bo"]
    xn2 = _ref_ln(x1, p["ln2_g"], p["ln2_b"])
    hmid = jax.nn.gelu(xn2 @ p["w1"].astype(jnp.float32) + p["b1"],
                       approximate=True)
    return x1 + hmid @ p["w2"].astype(jnp.float32) + p["b2"]


# ----------------------------- parameter init ---------------------------------

def init_params(key, d, ff_mult):
    ks = jax.random.split(key, 16)

    def nrm(k, shape, scale=0.02):
        return scale * jax.random.normal(k, shape, jnp.float32)

    wq, wk, wv = nrm(ks[0], (d, d)), nrm(ks[1], (d, d)), nrm(ks[2], (d, d))
    bq, bk, bv = nrm(ks[3], (d,)), nrm(ks[4], (d,)), nrm(ks[5], (d,))
    return dict(
        ln1_g=1.0 + nrm(ks[6], (d,)), ln1_b=nrm(ks[7], (d,)),
        ln2_g=1.0 + nrm(ks[8], (d,)), ln2_b=nrm(ks[9], (d,)),
        # fused QKV: one (D, 3D) bf16 weight, (3D,) f32 bias
        wqkv=jnp.concatenate([wq, wk, wv], axis=1).astype(jnp.bfloat16),
        bqkv=jnp.concatenate([bq, bk, bv], axis=0),
        wo=nrm(ks[10], (d, d)).astype(jnp.bfloat16), bo=nrm(ks[11], (d,)),
        w1=nrm(ks[12], (d, d * ff_mult)).astype(jnp.bfloat16),
        b1=nrm(ks[13], (d * ff_mult,)),
        w2=nrm(ks[14], (d * ff_mult, d)).astype(jnp.bfloat16),
        b2=nrm(ks[15], (d,)),
    )


# ----------------------------- main -------------------------------------------

if __name__ == "__main__":
    B, Fp, Tp = 2, 4, 16
    D, H, FF = 32, 4, 4
    T = Fp * Tp

    key = jax.random.PRNGKey(0)
    kx, kp1, kp2 = jax.random.split(key, 3)
    x = jax.random.normal(kx, (B, T, D), jnp.float32)
    blocks = [init_params(kp1, D, FF), init_params(kp2, D, FF)]

    # RoPE tables hoisted out of the per-block loop (computed once, reused).
    cos, sin = rope_tables((Fp, Tp), D)

    @jax.jit
    def run(x, blocks, cos, sin):
        y = x
        for p in blocks:
            y = sdpa_block(y, cos, sin, p, H)
        return y

    y = jax.block_until_ready(run(x, blocks, cos, sin))

    y_ref = x
    for p in blocks:
        y_ref = sdpa_block_ref(y_ref, (Fp, Tp), p, H)

    assert y.shape == (B, T, D), y.shape
    assert bool(jnp.all(jnp.isfinite(y)))
    max_err = float(jnp.max(jnp.abs(y - y_ref)))
    assert max_err < 5e-2, f"max|kernel - ref| = {max_err}"
    print("KERNEL_OK")
</pallas_src>

<mosaic_0001>
module attributes {stable_mosaic.version = 11 : i64} {
  func.func @_attn_block_kernel(%arg0: i32, %arg1: memref<1x64x32xf32, #tpu.memory_space<vmem>>, %arg2: memref<64x32xf32, #tpu.memory_space<vmem>>, %arg3: memref<64x32xf32, #tpu.memory_space<vmem>>, %arg4: memref<1x32xf32, #tpu.memory_space<vmem>>, %arg5: memref<1x32xf32, #tpu.memory_space<vmem>>, %arg6: memref<32x96xbf16, #tpu.memory_space<vmem>>, %arg7: memref<1x96xf32, #tpu.memory_space<vmem>>, %arg8: memref<32x32xbf16, #tpu.memory_space<vmem>>, %arg9: memref<1x32xf32, #tpu.memory_space<vmem>>, %arg10: memref<1x64x32xf32, #tpu.memory_space<vmem>>, %arg11: memref<64x32xf32, #tpu.memory_space<vmem>>) attributes {dimension_semantics = [#tpu.dimension_semantics<parallel>], iteration_bounds = array<i64: 2>, scalar_prefetch = 0 : i64, scratch_operands = 1 : i64, tpu.core_type = #tpu.core_type<tc>, window_params = [{transform_indices = @transform_0, window_bounds = array<i64: 1, 64, 32>}, {pipeline_mode = #tpu.pipeline_mode<synchronous>, transform_indices = @transform_1, window_bounds = array<i64: 64, 32>}, {pipeline_mode = #tpu.pipeline_mode<synchronous>, transform_indices = @transform_2, window_bounds = array<i64: 64, 32>}, {pipeline_mode = #tpu.pipeline_mode<synchronous>, transform_indices = @transform_3, window_bounds = array<i64: 1, 32>}, {pipeline_mode = #tpu.pipeline_mode<synchronous>, transform_indices = @transform_4, window_bounds = array<i64: 1, 32>}, {pipeline_mode = #tpu.pipeline_mode<synchronous>, transform_indices = @transform_5, window_bounds = array<i64: 32, 96>}, {pipeline_mode = #tpu.pipeline_mode<synchronous>, transform_indices = @transform_6, window_bounds = array<i64: 1, 96>}, {pipeline_mode = #tpu.pipeline_mode<synchronous>, transform_indices = @transform_7, window_bounds = array<i64: 32, 32>}, {pipeline_mode = #tpu.pipeline_mode<synchronous>, transform_indices = @transform_8, window_bounds = array<i64: 1, 32>}, {transform_indices = @transform_9, window_bounds = array<i64: 1, 64, 32>}]} {
    %c0 = arith.constant 0 : index
    %c0_0 = arith.constant 0 : index
    %c0_1 = arith.constant 0 : index
    %0 = vector.load %arg1[%c0, %c0_0, %c0_1] : memref<1x64x32xf32, #tpu.memory_space<vmem>>, vector<1x64x32xf32>
    %1 = vector.shape_cast %0 : vector<1x64x32xf32> to vector<64x32xf32>
    %cst = arith.constant dense<0.000000e+00> : vector<64xf32>
    %2 = vector.multi_reduction <add>, %1, %cst [1] : vector<64x32xf32> to vector<64xf32>
    %3 = vector.shape_cast %2 : vector<64xf32> to vector<64x1xf32>
    %cst_2 = arith.constant 3.200000e+01 : f32
    %4 = vector.broadcast %cst_2 : f32 to vector<64x1xf32>
    %5 = arith.divf %3, %4 : vector<64x1xf32>
    %6 = vector.broadcast %5 : vector<64x1xf32> to vector<64x32xf32>
    %7 = arith.subf %1, %6 : vector<64x32xf32>
    %8 = arith.mulf %7, %7 : vector<64x32xf32>
    %cst_3 = arith.constant dense<0.000000e+00> : vector<64xf32>
    %9 = vector.multi_reduction <add>, %8, %cst_3 [1] : vector<64x32xf32> to vector<64xf32>
    %10 = vector.shape_cast %9 : vector<64xf32> to vector<64x1xf32>
    %cst_4 = arith.constant 3.200000e+01 : f32
    %11 = vector.broadcast %cst_4 : f32 to vector<64x1xf32>
    %12 = arith.divf %10, %11 : vector<64x1xf32>
    %13 = vector.broadcast %5 : vector<64x1xf32> to vector<64x32xf32>
    %14 = arith.subf %1, %13 : vector<64x32xf32>
    %cst_5 = arith.constant 9.99999974E-6 : f32
    %15 = vector.broadcast %cst_5 : f32 to vector<64x1xf32>
    %16 = arith.addf %12, %15 : vector<64x1xf32>
    %17 = math.rsqrt %16 : vector<64x1xf32>
    %18 = vector.broadcast %17 : vector<64x1xf32> to vector<64x32xf32>
    %19 = arith.mulf %14, %18 : vector<64x32xf32>
    %c0_6 = arith.constant 0 : index
    %c0_7 = arith.constant 0 : index
    %20 = vector.load %arg4[%c0_6, %c0_7] : memref<1x32xf32, #tpu.memory_space<vmem>>, vector<1x32xf32>
    %21 = vector.broadcast %20 : vector<1x32xf32> to vector<64x32xf32>
    %22 = arith.mulf %19, %21 : vector<64x32xf32>
    %c0_8 = arith.constant 0 : index
    %c0_9 = arith.constant 0 : index
    %23 = vector.load %arg5[%c0_8, %c0_9] : memref<1x32xf32, #tpu.memory_space<vmem>>, vector<1x32xf32>
    %24 = vector.broadcast %23 : vector<1x32xf32> to vector<64x32xf32>
    %25 = arith.addf %22, %24 : vector<64x32xf32>
    %26 = vector.extract_strided_slice %25 {offsets = [0, 0], sizes = [64, 16], strides = [1, 1]} : vector<64x32xf32> to vector<64x16xf32>
    %27 = vector.extract_strided_slice %25 {offsets = [0, 16], sizes = [64, 16], strides = [1, 1]} : vector<64x32xf32> to vector<64x16xf32>
    %28 = vector.extract_strided_slice %26 {offsets = [0, 8], sizes = [64, 8], strides = [1, 1]} : vector<64x16xf32> to vector<64x8xf32>
    %cst_10 = arith.constant 0.000000e+00 : f32
    %29 = vector.broadcast %cst_10 : f32 to vector<64x8xf32>
    %30 = arith.subf %29, %28 : vector<64x8xf32>
    %31 = vector.extract_strided_slice %26 {offsets = [0, 0], sizes = [64, 8], strides = [1, 1]} : vector<64x16xf32> to vector<64x8xf32>
    %32 = vector.extract_strided_slice %27 {offsets = [0, 8], sizes = [64, 8], strides = [1, 1]} : vector<64x16xf32> to vector<64x8xf32>
    %cst_11 = arith.constant 0.000000e+00 : f32
    %33 = vector.broadcast %cst_11 : f32 to vector<64x8xf32>
    %34 = arith.subf %33, %32 : vector<64x8xf32>
    %35 = vector.extract_strided_slice %27 {offsets = [0, 0], sizes = [64, 8], strides = [1, 1]} : vector<64x16xf32> to vector<64x8xf32>
    %36 = tpu.concatenate %30, %31, %34, %35 in 1 : vector<64x8xf32>, vector<64x8xf32>, vector<64x8xf32>, vector<64x8xf32> -> vector<64x32xf32>
    %c0_12 = arith.constant 0 : index
    %c0_13 = arith.constant 0 : index
    %37 = vector.load %arg2[%c0_12, %c0_13] : memref<64x32xf32, #tpu.memory_space<vmem>>, vector<64x32xf32>
    %38 = arith.mulf %25, %37 : vector<64x32xf32>
    %c0_14 = arith.constant 0 : index
    %c0_15 = arith.constant 0 : index
    %39 = vector.load %arg3[%c0_14, %c0_15] : memref<64x32xf32, #tpu.memory_space<vmem>>, vector<64x32xf32>
    %40 = arith.mulf %36, %39 : vector<64x32xf32>
    %41 = arith.addf %38, %40 : vector<64x32xf32>
    %42 = arith.truncf %41 : vector<64x32xf32> to vector<64x32xbf16>
    %c0_16 = arith.constant 0 : index
    %c0_17 = arith.constant 0 : index
    %43 = vector.load %arg6[%c0_16, %c0_17] : memref<32x96xbf16, #tpu.memory_space<vmem>>, vector<32x96xbf16>
    %cst_18 = arith.constant dense<0.000000e+00> : vector<64x96xf32>
    %44 = tpu.matmul %42, %43, %cst_18 {dimension_numbers = #tpu.dot_dimension_numbers<[1], [0], [0], [1], [0, 0, 1, 1], [], []>} : vector<64x32xbf16>, vector<32x96xbf16>, vector<64x96xf32> -> vector<64x96xf32>
    %c0_19 = arith.constant 0 : index
    %c0_20 = arith.constant 0 : index
    %45 = vector.load %arg7[%c0_19, %c0_20] : memref<1x96xf32, #tpu.memory_space<vmem>>, vector<1x96xf32>
    %46 = vector.broadcast %45 : vector<1x96xf32> to vector<64x96xf32>
    %47 = arith.addf %44, %46 : vector<64x96xf32>
    %48 = arith.truncf %47 : vector<64x96xf32> to vector<64x96xbf16>
    %49 = vector.extract_strided_slice %48 {offsets = [0, 0], sizes = [64, 8], strides = [1, 1]} : vector<64x96xbf16> to vector<64x8xbf16>
    %cst_21 = arith.constant 3.535160e-01 : bf16
    %50 = vector.broadcast %cst_21 : bf16 to vector<64x8xbf16>
    %51 = arith.mulf %49, %50 : vector<64x8xbf16>
    %52 = vector.extract_strided_slice %48 {offsets = [0, 32], sizes = [64, 8], strides = [1, 1]} : vector<64x96xbf16> to vector<64x8xbf16>
    %53 = vector.extract_strided_slice %48 {offsets = [0, 64], sizes = [64, 8], strides = [1, 1]} : vector<64x96xbf16> to vector<64x8xbf16>
    %cst_22 = arith.constant dense<0.000000e+00> : vector<64x64xf32>
    %54 = tpu.matmul %51, %52, %cst_22 {dimension_numbers = #tpu.dot_dimension_numbers<[1], [1], [0], [0], [0, 0, 1, 0], [], []>} : vector<64x8xbf16>, vector<64x8xbf16>, vector<64x64xf32> -> vector<64x64xf32>
    %cst_23 = arith.constant dense<0xFF800000> : vector<64xf32>
    %55 = vector.multi_reduction <maximumf>, %54, %cst_23 [1] : vector<64x64xf32> to vector<64xf32>
    %56 = vector.shape_cast %55 : vector<64xf32> to vector<64x1xf32>
    %57 = vector.broadcast %56 : vector<64x1xf32> to vector<64x64xf32>
    %58 = arith.subf %54, %57 : vector<64x64xf32>
    %59 = math.exp %58 : vector<64x64xf32>
    %cst_24 = arith.constant dense<0.000000e+00> : vector<64xf32>
    %60 = vector.multi_reduction <add>, %59, %cst_24 [1] : vector<64x64xf32> to vector<64xf32>
    %61 = vector.shape_cast %60 : vector<64xf32> to vector<64x1xf32>
    %62 = arith.truncf %59 : vector<64x64xf32> to vector<64x64xbf16>
    %cst_25 = arith.constant dense<0.000000e+00> : vector<64x8xf32>
    %63 = tpu.matmul %62, %53, %cst_25 {dimension_numbers = #tpu.dot_dimension_numbers<[1], [0], [0], [1], [0, 0, 1, 1], [], []>} : vector<64x64xbf16>, vector<64x8xbf16>, vector<64x8xf32> -> vector<64x8xf32>
    %64 = tpu.reciprocal %61 {approx = true} : vector<64x1xf32> -> vector<64x1xf32>
    %65 = vector.broadcast %64 : vector<64x1xf32> to vector<64x8xf32>
    %66 = arith.mulf %63, %65 : vector<64x8xf32>
    %c0_26 = arith.constant 0 : index
    %c0_27 = arith.constant 0 : index
    %67 = vector.load %arg11[%c0_26, %c0_27] : memref<64x32xf32, #tpu.memory_space<vmem>>, vector<64x8xf32>
    tpu.vector_store %arg11[%c0_26, %c0_27], %66 {strides = array<i32>} : memref<64x32xf32, #tpu.memory_space<vmem>>, vector<64x8xf32>,
    %68 = vector.extract_strided_slice %48 {offsets = [0, 8], sizes = [64, 8], strides = [1, 1]} : vector<64x96xbf16> to vector<64x8xbf16>
    %cst_28 = arith.constant 3.535160e-01 : bf16
    %69 = vector.broadcast %cst_28 : bf16 to vector<64x8xbf16>
    %70 = arith.mulf %68, %69 : vector<64x8xbf16>
    %71 = vector.extract_strided_slice %48 {offsets = [0, 40], sizes = [64, 8], strides = [1, 1]} : vector<64x96xbf16> to vector<64x8xbf16>
    %72 = vector.extract_strided_slice %48 {offsets = [0, 72], sizes = [64, 8], strides = [1, 1]} : vector<64x96xbf16> to vector<64x8xbf16>
    %cst_29 = arith.constant dense<0.000000e+00> : vector<64x64xf32>
    %73 = tpu.matmul %70, %71, %cst_29 {dimension_numbers = #tpu.dot_dimension_numbers<[1], [1], [0], [0], [0, 0, 1, 0], [], []>} : vector<64x8xbf16>, vector<64x8xbf16>, vector<64x64xf32> -> vector<64x64xf32>
    %cst_30 = arith.constant dense<0xFF800000> : vector<64xf32>
    %74 = vector.multi_reduction <maximumf>, %73, %cst_30 [1] : vector<64x64xf32> to vector<64xf32>
    %75 = vector.shape_cast %74 : vector<64xf32> to vector<64x1xf32>
    %76 = vector.broadcast %75 : vector<64x1xf32> to vector<64x64xf32>
    %77 = arith.subf %73, %76 : vector<64x64xf32>
    %78 = math.exp %77 : vector<64x64xf32>
    %cst_31 = arith.constant dense<0.000000e+00> : vector<64xf32>
    %79 = vector.multi_reduction <add>, %78, %cst_31 [1] : vector<64x64xf32> to vector<64xf32>
    %80 = vector.shape_cast %79 : vector<64xf32> to vector<64x1xf32>
    %81 = arith.truncf %78 : vector<64x64xf32> to vector<64x64xbf16>
    %cst_32 = arith.constant dense<0.000000e+00> : vector<64x8xf32>
    %82 = tpu.matmul %81, %72, %cst_32 {dimension_numbers = #tpu.dot_dimension_numbers<[1], [0], [0], [1], [0, 0, 1, 1], [], []>} : vector<64x64xbf16>, vector<64x8xbf16>, vector<64x8xf32> -> vector<64x8xf32>
    %83 = tpu.reciprocal %80 {approx = true} : vector<64x1xf32> -> vector<64x1xf32>
    %84 = vector.broadcast %83 : vector<64x1xf32> to vector<64x8xf32>
    %85 = arith.mulf %82, %84 : vector<64x8xf32>
    %c0_33 = arith.constant 0 : index
    %c8 = arith.constant 8 : index
    %86 = vector.load %arg11[%c0_33, %c8] : memref<64x32xf32, #tpu.memory_space<vmem>>, vector<64x8xf32>
    tpu.vector_store %arg11[%c0_33, %c8], %85 {strides = array<i32>} : memref<64x32xf32, #tpu.memory_space<vmem>>, vector<64x8xf32>,
    %87 = vector.extract_strided_slice %48 {offsets = [0, 16], sizes = [64, 8], strides = [1, 1]} : vector<64x96xbf16> to vector<64x8xbf16>
    %cst_34 = arith.constant 3.535160e-01 : bf16
    %88 = vector.broadcast %cst_34 : bf16 to vector<64x8xbf16>
    %89 = arith.mulf %87, %88 : vector<64x8xbf16>
    %90 = vector.extract_strided_slice %48 {offsets = [0, 48], sizes = [64, 8], strides = [1, 1]} : vector<64x96xbf16> to vector<64x8xbf16>
    %91 = vector.extract_strided_slice %48 {offsets = [0, 80], sizes = [64, 8], strides = [1, 1]} : vector<64x96xbf16> to vector<64x8xbf16>
    %cst_35 = arith.constant dense<0.000000e+00> : vector<64x64xf32>
    %92 = tpu.matmul %89, %90, %cst_35 {dimension_numbers = #tpu.dot_dimension_numbers<[1], [1], [0], [0], [0, 0, 1, 0], [], []>} : vector<64x8xbf16>, vector<64x8xbf16>, vector<64x64xf32> -> vector<64x64xf32>
    %cst_36 = arith.constant dense<0xFF800000> : vector<64xf32>
    %93 = vector.multi_reduction <maximumf>, %92, %cst_36 [1] : vector<64x64xf32> to vector<64xf32>
    %94 = vector.shape_cast %93 : vector<64xf32> to vector<64x1xf32>
    %95 = vector.broadcast %94 : vector<64x1xf32> to vector<64x64xf32>
    %96 = arith.subf %92, %95 : vector<64x64xf32>
    %97 = math.exp %96 : vector<64x64xf32>
    %cst_37 = arith.constant dense<0.000000e+00> : vector<64xf32>
    %98 = vector.multi_reduction <add>, %97, %cst_37 [1] : vector<64x64xf32> to vector<64xf32>
    %99 = vector.shape_cast %98 : vector<64xf32> to vector<64x1xf32>
    %100 = arith.truncf %97 : vector<64x64xf32> to vector<64x64xbf16>
    %cst_38 = arith.constant dense<0.000000e+00> : vector<64x8xf32>
    %101 = tpu.matmul %100, %91, %cst_38 {dimension_numbers = #tpu.dot_dimension_numbers<[1], [0], [0], [1], [0, 0, 1, 1], [], []>} : vector<64x64xbf16>, vector<64x8xbf16>, vector<64x8xf32> -> vector<64x8xf32>
    %102 = tpu.reciprocal %99 {approx = true} : vector<64x1xf32> -> vector<64x1xf32>
    %103 = vector.broadcast %102 : vector<64x1xf32> to vector<64x8xf32>
    %104 = arith.mulf %101, %103 : vector<64x8xf32>
    %c0_39 = arith.constant 0 : index
    %c16 = arith.constant 16 : index
    %105 = vector.load %arg11[%c0_39, %c16] : memref<64x32xf32, #tpu.memory_space<vmem>>, vector<64x8xf32>
    tpu.vector_store %arg11[%c0_39, %c16], %104 {strides = array<i32>} : memref<64x32xf32, #tpu.memory_space<vmem>>, vector<64x8xf32>,
    %106 = vector.extract_strided_slice %48 {offsets = [0, 24], sizes = [64, 8], strides = [1, 1]} : vector<64x96xbf16> to vector<64x8xbf16>
    %cst_40 = arith.constant 3.535160e-01 : bf16
    %107 = vector.broadcast %cst_40 : bf16 to vector<64x8xbf16>
    %108 = arith.mulf %106, %107 : vector<64x8xbf16>
    %109 = vector.extract_strided_slice %48 {offsets = [0, 56], sizes = [64, 8], strides = [1, 1]} : vector<64x96xbf16> to vector<64x8xbf16>
    %110 = vector.extract_strided_slice %48 {offsets = [0, 88], sizes = [64, 8], strides = [1, 1]} : vector<64x96xbf16> to vector<64x8xbf16>
    %cst_41 = arith.constant dense<0.000000e+00> : vector<64x64xf32>
    %111 = tpu.matmul %108, %109, %cst_41 {dimension_numbers = #tpu.dot_dimension_numbers<[1], [1], [0], [0], [0, 0, 1, 0], [], []>} : vector<64x8xbf16>, vector<64x8xbf16>, vector<64x64xf32> -> vector<64x64xf32>
    %cst_42 = arith.constant dense<0xFF800000> : vector<64xf32>
    %112 = vector.multi_reduction <maximumf>, %111, %cst_42 [1] : vector<64x64xf32> to vector<64xf32>
    %113 = vector.shape_cast %112 : vector<64xf32> to vector<64x1xf32>
    %114 = vector.broadcast %113 : vector<64x1xf32> to vector<64x64xf32>
    %115 = arith.subf %111, %114 : vector<64x64xf32>
    %116 = math.exp %115 : vector<64x64xf32>
    %cst_43 = arith.constant dense<0.000000e+00> : vector<64xf32>
    %117 = vector.multi_reduction <add>, %116, %cst_43 [1] : vector<64x64xf32> to vector<64xf32>
    %118 = vector.shape_cast %117 : vector<64xf32> to vector<64x1xf32>
    %119 = arith.truncf %116 : vector<64x64xf32> to vector<64x64xbf16>
    %cst_44 = arith.constant dense<0.000000e+00> : vector<64x8xf32>
    %120 = tpu.matmul %119, %110, %cst_44 {dimension_numbers = #tpu.dot_dimension_numbers<[1], [0], [0], [1], [0, 0, 1, 1], [], []>} : vector<64x64xbf16>, vector<64x8xbf16>, vector<64x8xf32> -> vector<64x8xf32>
    %121 = tpu.reciprocal %118 {approx = true} : vector<64x1xf32> -> vector<64x1xf32>
    %122 = vector.broadcast %121 : vector<64x1xf32> to vector<64x8xf32>
    %123 = arith.mulf %120, %122 : vector<64x8xf32>
    %c0_45 = arith.constant 0 : index
    %c24 = arith.constant 24 : index
    %124 = vector.load %arg11[%c0_45, %c24] : memref<64x32xf32, #tpu.memory_space<vmem>>, vector<64x8xf32>
    tpu.vector_store %arg11[%c0_45, %c24], %123 {strides = array<i32>} : memref<64x32xf32, #tpu.memory_space<vmem>>, vector<64x8xf32>,
    %c0_46 = arith.constant 0 : index
    %c0_47 = arith.constant 0 : index
    %125 = vector.load %arg11[%c0_46, %c0_47] : memref<64x32xf32, #tpu.memory_space<vmem>>, vector<64x32xf32>
    %126 = arith.truncf %125 : vector<64x32xf32> to vector<64x32xbf16>
    %c0_48 = arith.constant 0 : index
    %c0_49 = arith.constant 0 : index
    %127 = vector.load %arg8[%c0_48, %c0_49] : memref<32x32xbf16, #tpu.memory_space<vmem>>, vector<32x32xbf16>
    %cst_50 = arith.constant dense<0.000000e+00> : vector<64x32xf32>
    %128 = tpu.matmul %126, %127, %cst_50 {dimension_numbers = #tpu.dot_dimension_numbers<[1], [0], [0], [1], [0, 0, 1, 1], [], []>} : vector<64x32xbf16>, vector<32x32xbf16>, vector<64x32xf32> -> vector<64x32xf32>
    %c0_51 = arith.constant 0 : index
    %c0_52 = arith.constant 0 : index
    %129 = vector.load %arg9[%c0_51, %c0_52] : memref<1x32xf32, #tpu.memory_space<vmem>>, vector<1x32xf32>
    %130 = vector.broadcast %129 : vector<1x32xf32> to vector<64x32xf32>
    %131 = arith.addf %128, %130 : vector<64x32xf32>
    %132 = arith.addf %131, %1 : vector<64x32xf32>
    %c0_53 = arith.constant 0 : index
    %c0_54 = arith.constant 0 : index
    %c0_55 = arith.constant 0 : index
    %133 = vector.load %arg10[%c0_53, %c0_54, %c0_55] : memref<1x64x32xf32, #tpu.memory_space<vmem>>, vector<1x64x32xf32>
    %134 = vector.shape_cast %133 : vector<1x64x32xf32> to vector<64x32xf32>
    %135 = vector.shape_cast %132 : vector<64x32xf32> to vector<1x64x32xf32>
    tpu.vector_store %arg10[%c0_53, %c0_54, %c0_55], %135 {strides = array<i32>} : memref<1x64x32xf32, #tpu.memory_space<vmem>>, vector<1x64x32xf32>,
    return
  }
  func.func @transform_0(%arg0: i32) -> (i32, i32, i32) {
    %c0_i32 = arith.constant 0 : i32
    %c0_i32_0 = arith.constant 0 : i32
    %c0_i32_1 = arith.constant 0 : i32
    return %arg0, %c0_i32, %c0_i32_0 : i32, i32, i32
  }
  func.func @transform_1(%arg0: i32) -> (i32, i32) {
    %c0_i32 = arith.constant 0 : i32
    %c0_i32_0 = arith.constant 0 : i32
    %c0_i32_1 = arith.constant 0 : i32
    return %c0_i32, %c0_i32_0 : i32, i32
  }
  func.func @transform_2(%arg0: i32) -> (i32, i32) {
    %c0_i32 = arith.constant 0 : i32
    %c0_i32_0 = arith.constant 0 : i32
    %c0_i32_1 = arith.constant 0 : i32
    return %c0_i32, %c0_i32_0 : i32, i32
  }
  func.func @transform_3(%arg0: i32) -> (i32, i32) {
    %c0_i32 = arith.constant 0 : i32
    %c0_i32_0 = arith.constant 0 : i32
    %c0_i32_1 = arith.constant 0 : i32
    return %c0_i32, %c0_i32_0 : i32, i32
  }
  func.func @transform_4(%arg0: i32) -> (i32, i32) {
    %c0_i32 = arith.constant 0 : i32
    %c0_i32_0 = arith.constant 0 : i32
    %c0_i32_1 = arith.constant 0 : i32
    return %c0_i32, %c0_i32_0 : i32, i32
  }
  func.func @transform_5(%arg0: i32) -> (i32, i32) {
    %c0_i32 = arith.constant 0 : i32
    %c0_i32_0 = arith.constant 0 : i32
    %c0_i32_1 = arith.constant 0 : i32
    return %c0_i32, %c0_i32_0 : i32, i32
  }
  func.func @transform_6(%arg0: i32) -> (i32, i32) {
    %c0_i32 = arith.constant 0 : i32
    %c0_i32_0 = arith.constant 0 : i32
    %c0_i32_1 = arith.constant 0 : i32
    return %c0_i32, %c0_i32_0 : i32, i32
  }
  func.func @transform_7(%arg0: i32) -> (i32, i32) {
    %c0_i32 = arith.constant 0 : i32
    %c0_i32_0 = arith.constant 0 : i32
    %c0_i32_1 = arith.constant 0 : i32
    return %c0_i32, %c0_i32_0 : i32, i32
  }
  func.func @transform_8(%arg0: i32) -> (i32, i32) {
    %c0_i32 = arith.constant 0 : i32
    %c0_i32_0 = arith.constant 0 : i32
    %c0_i32_1 = arith.constant 0 : i32
    return %c0_i32, %c0_i32_0 : i32, i32
  }
  func.func @transform_9(%arg0: i32) -> (i32, i32, i32) {
    %c0_i32 = arith.constant 0 : i32
    %c0_i32_0 = arith.constant 0 : i32
    %c0_i32_1 = arith.constant 0 : i32
    return %arg0, %c0_i32, %c0_i32_0 : i32, i32, i32
  }
}

module attributes {stable_mosaic.version = 11 : i64} {
  func.func @_ffn_block_kernel(%arg0: i32, %arg1: i32, %arg2: memref<128x32xf32, #tpu.memory_space<vmem>>, %arg3: memref<1x32xf32, #tpu.memory_space<vmem>>, %arg4: memref<1x32xf32, #tpu.memory_space<vmem>>, %arg5: memref<32x128xbf16, #tpu.memory_space<vmem>>, %arg6: memref<1x128xf32, #tpu.memory_space<vmem>>, %arg7: memref<128x32xbf16, #tpu.memory_space<vmem>>, %arg8: memref<1x32xf32, #tpu.memory_space<vmem>>, %arg9: memref<128x32xf32, #tpu.memory_space<vmem>>, %arg10: memref<128x32xbf16, #tpu.memory_space<vmem>>, %arg11: memref<128x32xf32, #tpu.memory_space<vmem>>) attributes {dimension_semantics = [#tpu.dimension_semantics<parallel>, #tpu.dimension_semantics<arbitrary>], iteration_bounds = array<i64: 1, 1>, scalar_prefetch = 0 : i64, scratch_operands = 2 : i64, tpu.core_type = #tpu.core_type<tc>, window_params = [{transform_indices = @transform_0, window_bounds = array<i64: 128, 32>}, {pipeline_mode = #tpu.pipeline_mode<synchronous>, transform_indices = @transform_1, window_bounds = array<i64: 1, 32>}, {pipeline_mode = #tpu.pipeline_mode<synchronous>, transform_indices = @transform_2, window_bounds = array<i64: 1, 32>}, {transform_indices = @transform_3, window_bounds = array<i64: 32, 128>}, {transform_indices = @transform_4, window_bounds = array<i64: 1, 128>}, {transform_indices = @transform_5, window_bounds = array<i64: 128, 32>}, {pipeline_mode = #tpu.pipeline_mode<synchronous>, transform_indices = @transform_6, window_bounds = array<i64: 1, 32>}, {transform_indices = @transform_7, window_bounds = array<i64: 128, 32>}]} {
    %c0_i32 = arith.constant 0 : i32
    %0 = arith.cmpi eq, %arg1, %c0_i32 : i32
    %1 = arith.extui %0 : i1 to i32
    %c0_i32_0 = arith.constant 0 : i32
    %2 = arith.cmpi ne, %1, %c0_i32_0 : i32
    scf.if %2 {
      %c0_19 = arith.constant 0 : index
      %c0_20 = arith.constant 0 : index
      %31 = vector.load %arg2[%c0_19, %c0_20] : memref<128x32xf32, #tpu.memory_space<vmem>>, vector<128x32xf32>
      %cst_21 = arith.constant dense<0.000000e+00> : vector<128xf32>
      %32 = vector.multi_reduction <add>, %31, %cst_21 [1] : vector<128x32xf32> to vector<128xf32>
      %33 = vector.shape_cast %32 : vector<128xf32> to vector<128x1xf32>
      %cst_22 = arith.constant 3.200000e+01 : f32
      %34 = vector.broadcast %cst_22 : f32 to vector<128x1xf32>
      %35 = arith.divf %33, %34 : vector<128x1xf32>
      %36 = vector.broadcast %35 : vector<128x1xf32> to vector<128x32xf32>
      %37 = arith.subf %31, %36 : vector<128x32xf32>
      %38 = arith.mulf %37, %37 : vector<128x32xf32>
      %cst_23 = arith.constant dense<0.000000e+00> : vector<128xf32>
      %39 = vector.multi_reduction <add>, %38, %cst_23 [1] : vector<128x32xf32> to vector<128xf32>
      %40 = vector.shape_cast %39 : vector<128xf32> to vector<128x1xf32>
      %cst_24 = arith.constant 3.200000e+01 : f32
      %41 = vector.broadcast %cst_24 : f32 to vector<128x1xf32>
      %42 = arith.divf %40, %41 : vector<128x1xf32>
      %43 = vector.broadcast %35 : vector<128x1xf32> to vector<128x32xf32>
      %44 = arith.subf %31, %43 : vector<128x32xf32>
      %cst_25 = arith.constant 9.99999974E-6 : f32
      %45 = vector.broadcast %cst_25 : f32 to vector<128x1xf32>
      %46 = arith.addf %42, %45 : vector<128x1xf32>
      %47 = math.rsqrt %46 : vector<128x1xf32>
      %48 = vector.broadcast %47 : vector<128x1xf32> to vector<128x32xf32>
      %49 = arith.mulf %44, %48 : vector<128x32xf32>
      %c0_26 = arith.constant 0 : index
      %c0_27 = arith.constant 0 : index
      %50 = vector.load %arg3[%c0_26, %c0_27] : memref<1x32xf32, #tpu.memory_space<vmem>>, vector<1x32xf32>
      %51 = vector.broadcast %50 : vector<1x32xf32> to vector<128x32xf32>
      %52 = arith.mulf %49, %51 : vector<128x32xf32>
      %c0_28 = arith.constant 0 : index
      %c0_29 = arith.constant 0 : index
      %53 = vector.load %arg4[%c0_28, %c0_29] : memref<1x32xf32, #tpu.memory_space<vmem>>, vector<1x32xf32>
      %54 = vector.broadcast %53 : vector<1x32xf32> to vector<128x32xf32>
      %55 = arith.addf %52, %54 : vector<128x32xf32>
      %56 = arith.truncf %55 : vector<128x32xf32> to vector<128x32xbf16>
      %c0_30 = arith.constant 0 : index
      %c0_31 = arith.constant 0 : index
      %57 = vector.load %arg10[%c0_30, %c0_31] : memref<128x32xbf16, #tpu.memory_space<vmem>>, vector<128x32xbf16>
      tpu.vector_store %arg10[%c0_30, %c0_31], %56 {strides = array<i32>} : memref<128x32xbf16, #tpu.memory_space<vmem>>, vector<128x32xbf16>,
      %cst_32 = arith.constant 0.000000e+00 : f32
      %58 = vector.broadcast %cst_32 : f32 to vector<128x32xf32>
      %c0_33 = arith.constant 0 : index
      %c0_34 = arith.constant 0 : index
      %59 = vector.load %arg11[%c0_33, %c0_34] : memref<128x32xf32, #tpu.memory_space<vmem>>, vector<128x32xf32>
      tpu.vector_store %arg11[%c0_33, %c0_34], %58 {strides = array<i32>} : memref<128x32xf32, #tpu.memory_space<vmem>>, vector<128x32xf32>,
    } else {
    }
    %c0 = arith.constant 0 : index
    %c0_1 = arith.constant 0 : index
    %3 = vector.load %arg10[%c0, %c0_1] : memref<128x32xbf16, #tpu.memory_space<vmem>>, vector<128x32xbf16>
    %c0_2 = arith.constant 0 : index
    %c0_3 = arith.constant 0 : index
    %4 = vector.load %arg5[%c0_2, %c0_3] : memref<32x128xbf16, #tpu.memory_space<vmem>>, vector<32x128xbf16>
    %cst = arith.constant dense<0.000000e+00> : vector<128x128xf32>
    %5 = tpu.matmul %3, %4, %cst {dimension_numbers = #tpu.dot_dimension_numbers<[1], [0], [0], [1], [0, 0, 1, 1], [], []>} : vector<128x32xbf16>, vector<32x128xbf16>, vector<128x128xf32> -> vector<128x128xf32>
    %c0_4 = arith.constant 0 : index
    %c0_5 = arith.constant 0 : index
    %6 = vector.load %arg6[%c0_4, %c0_5] : memref<1x128xf32, #tpu.memory_space<vmem>>, vector<1x128xf32>
    %7 = vector.broadcast %6 : vector<1x128xf32> to vector<128x128xf32>
    %8 = arith.addf %5, %7 : vector<128x128xf32>
    %9 = arith.mulf %8, %8 : vector<128x128xf32>
    %10 = arith.mulf %8, %9 : vector<128x128xf32>
    %cst_6 = arith.constant 4.471500e-02 : f32
    %11 = vector.broadcast %cst_6 : f32 to vector<128x128xf32>
    %12 = arith.mulf %11, %10 : vector<128x128xf32>
    %13 = arith.addf %8, %12 : vector<128x128xf32>
    %cst_7 = arith.constant 0.797884583 : f32
    %14 = vector.broadcast %cst_7 : f32 to vector<128x128xf32>
    %15 = arith.mulf %14, %13 : vector<128x128xf32>
    %16 = math.tanh %15 : vector<128x128xf32>
    %cst_8 = arith.constant 1.000000e+00 : f32
    %17 = vector.broadcast %cst_8 : f32 to vector<128x128xf32>
    %18 = arith.addf %17, %16 : vector<128x128xf32>
    %cst_9 = arith.constant 5.000000e-01 : f32
    %19 = vector.broadcast %cst_9 : f32 to vector<128x128xf32>
    %20 = arith.mulf %19, %18 : vector<128x128xf32>
    %21 = arith.mulf %8, %20 : vector<128x128xf32>
    %22 = arith.truncf %21 : vector<128x128xf32> to vector<128x128xbf16>
    %c0_10 = arith.constant 0 : index
    %c0_11 = arith.constant 0 : index
    %23 = vector.load %arg11[%c0_10, %c0_11] : memref<128x32xf32, #tpu.memory_space<vmem>>, vector<128x32xf32>
    %c0_12 = arith.constant 0 : index
    %c0_13 = arith.constant 0 : index
    %24 = vector.load %arg7[%c0_12, %c0_13] : memref<128x32xbf16, #tpu.memory_space<vmem>>, vector<128x32xbf16>
    %cst_14 = arith.constant dense<0.000000e+00> : vector<128x32xf32>
    %25 = tpu.matmul %22, %24, %cst_14 {dimension_numbers = #tpu.dot_dimension_numbers<[1], [0], [0], [1], [0, 0, 1, 1], [], []>} : vector<128x128xbf16>, vector<128x32xbf16>, vector<128x32xf32> -> vector<128x32xf32>
    %26 = arith.addf %23, %25 : vector<128x32xf32>
    %c0_15 = arith.constant 0 : index
    %c0_16 = arith.constant 0 : index
    %27 = vector.load %arg11[%c0_15, %c0_16] : memref<128x32xf32, #tpu.memory_space<vmem>>, vector<128x32xf32>
    tpu.vector_store %arg11[%c0_15, %c0_16], %26 {strides = array<i32>} : memref<128x32xf32, #tpu.memory_space<vmem>>, vector<128x32xf32>,
    %c0_i32_17 = arith.constant 0 : i32
    %28 = arith.cmpi eq, %arg1, %c0_i32_17 : i32
    %29 = arith.extui %28 : i1 to i32
    %c0_i32_18 = arith.constant 0 : i32
    %30 = arith.cmpi ne, %29, %c0_i32_18 : i32
    scf.if %30 {
      %c0_19 = arith.constant 0 : index
      %c0_20 = arith.constant 0 : index
      %31 = vector.load %arg11[%c0_19, %c0_20] : memref<128x32xf32, #tpu.memory_space<vmem>>, vector<128x32xf32>
      %c0_21 = arith.constant 0 : index
      %c0_22 = arith.constant 0 : index
      %32 = vector.load %arg8[%c0_21, %c0_22] : memref<1x32xf32, #tpu.memory_space<vmem>>, vector<1x32xf32>
      %33 = vector.broadcast %32 : vector<1x32xf32> to vector<128x32xf32>
      %34 = arith.addf %31, %33 : vector<128x32xf32>
      %c0_23 = arith.constant 0 : index
      %c0_24 = arith.constant 0 : index
      %35 = vector.load %arg2[%c0_23, %c0_24] : memref<128x32xf32, #tpu.memory_space<vmem>>, vector<128x32xf32>
      %36 = arith.addf %34, %35 : vector<128x32xf32>
      %c0_25 = arith.constant 0 : index
      %c0_26 = arith.constant 0 : index
      %37 = vector.load %arg9[%c0_25, %c0_26] : memref<128x32xf32, #tpu.memory_space<vmem>>, vector<128x32xf32>
      tpu.vector_store %arg9[%c0_25, %c0_26], %36 {strides = array<i32>} : memref<128x32xf32, #tpu.memory_space<vmem>>, vector<128x32xf32>,
    } else {
    }
    return
  }
  func.func @transform_0(%arg0: i32, %arg1: i32) -> (i32, i32) {
    %c0_i32 = arith.constant 0 : i32
    %c0_i32_0 = arith.constant 0 : i32
    return %arg0, %c0_i32 : i32, i32
  }
  func.func @transform_1(%arg0: i32, %arg1: i32) -> (i32, i32) {
    %c0_i32 = arith.constant 0 : i32
    %c0_i32_0 = arith.constant 0 : i32
    %c0_i32_1 = arith.constant 0 : i32
    return %c0_i32, %c0_i32_0 : i32, i32
  }
  func.func @transform_2(%arg0: i32, %arg1: i32) -> (i32, i32) {
    %c0_i32 = arith.constant 0 : i32
    %c0_i32_0 = arith.constant 0 : i32
    %c0_i32_1 = arith.constant 0 : i32
    return %c0_i32, %c0_i32_0 : i32, i32
  }
  func.func @transform_3(%arg0: i32, %arg1: i32) -> (i32, i32) {
    %c0_i32 = arith.constant 0 : i32
    %c0_i32_0 = arith.constant 0 : i32
    return %c0_i32, %arg1 : i32, i32
  }
  func.func @transform_4(%arg0: i32, %arg1: i32) -> (i32, i32) {
    %c0_i32 = arith.constant 0 : i32
    %c0_i32_0 = arith.constant 0 : i32
    return %c0_i32, %arg1 : i32, i32
  }
  func.func @transform_5(%arg0: i32, %arg1: i32) -> (i32, i32) {
    %c0_i32 = arith.constant 0 : i32
    %c0_i32_0 = arith.constant 0 : i32
    return %arg1, %c0_i32 : i32, i32
  }
  func.func @transform_6(%arg0: i32, %arg1: i32) -> (i32, i32) {
    %c0_i32 = arith.constant 0 : i32
    %c0_i32_0 = arith.constant 0 : i32
    %c0_i32_1 = arith.constant 0 : i32
    return %c0_i32, %c0_i32_0 : i32, i32
  }
  func.func @transform_7(%arg0: i32, %arg1: i32) -> (i32, i32) {
    %c0_i32 = arith.constant 0 : i32
    %c0_i32_0 = arith.constant 0 : i32
    return %arg0, %c0_i32 : i32, i32
  }
}

</mosaic_0001>

<llo_original>
// kernel: run.4
$region0: #{run.4}
  #allocation0 [shape = 'u32[]', space=smem, size = 0x4, offset = 0x4, fixed_abs, tag = 'smem constant byte address 0x4 - core index']
  #allocation1 [shape = 'u32[72,128]{1,0:T(1,128)}', space=vmem, size = 0x9000, scoped, tag = 'internal scratch']
  #allocation2 [shape = 'f32[64,32]{1,0:T(8,128)}', space=vmem, size = 0x8000, scoped, tag = 'scratch operand']
  %s0 = inlined_call_operand.vmem [shape: f32[2,64,32], index: 0, kind: input, shape index: {}]
  %s1 = inlined_call_operand.vmem [shape: f32[64,32], index: 1, kind: input, shape index: {}]
  %s2 = inlined_call_operand.vmem [shape: f32[64,32], index: 2, kind: input, shape index: {}]
  %s3 = inlined_call_operand.vmem [shape: f32[1,32], index: 3, kind: input, shape index: {}]
  %s4 = inlined_call_operand.vmem [shape: f32[1,32], index: 4, kind: input, shape index: {}]
  %s5 = inlined_call_operand.vmem [shape: bf16[32,96], index: 5, kind: input, shape index: {}]
  %s6 = inlined_call_operand.vmem [shape: f32[1,96], index: 6, kind: input, shape index: {}]
  %s7 = inlined_call_operand.vmem [shape: bf16[32,32], index: 7, kind: input, shape index: {}]
  %s8 = inlined_call_operand.vmem [shape: f32[1,32], index: 8, kind: input, shape index: {}]
  %s9 = inlined_call_operand.vmem [shape: f32[2,64,32], index: 9, kind: output, shape index: {}]
  %s10 = sld [smem:[#allocation0]]
  $region69: #{run.4} parent=0
    _
  %s12 = ssub.s32 1, %s10
  %s13 = scalar_select 0, %s12, %s10
  loop: start=0, step=1, limit=4
  $region2: #{run.4} parent=0 // loop_pre_header
    _
  $region3: #{run.4} parent=0 // loop_header
    %s15 = sphi 0, %s19
    %p16 = scmp.ge.s32.totalorder %s15, 4
    %s25 = sphi 0, %s27
    %s28 = sphi 0, %s25
    %s29 = sphi 0, %s28
    %s45 = sphi 0, %s29
    %s49 = sphi 0, %s49
    %s51 = sphi 0, %s49
    %s52 = sphi 0, %s51
    %s66 = sphi 0, %s52
    %s70 = sphi 0, %s70
    %s72 = sphi 0, %s70
    %s73 = sphi 0, %s72
    %s87 = sphi 0, %s73
    %s91 = sphi 0, %s91
    %s93 = sphi 0, %s91
    %s94 = sphi 0, %s93
    %s108 = sphi 0, %s94
    %s112 = sphi 0, %s112
    %s114 = sphi 0, %s112
    %s115 = sphi 0, %s114
    %s129 = sphi 0, %s115
    %s133 = sphi 0, %s133
    %s135 = sphi 0, %s133
    %s136 = sphi 0, %s135
    %s150 = sphi 0, %s136
    %s154 = sphi 0, %s154
    %s156 = sphi 0, %s154
    %s157 = sphi 0, %s156
    %s171 = sphi 0, %s157
    %s175 = sphi 0, %s175
    %s177 = sphi 0, %s175
    %s178 = sphi 0, %s177
    %s192 = sphi 0, %s178
    %s196 = sphi 0, %s196
    %s198 = sphi 0, %s196
    %s199 = sphi 0, %s198
    %s213 = sphi 0, %s199
    %s219 = sphi 0, %s221
    %s222 = sphi 0, %s219
    %s223 = sphi 0, %s222
    %s239 = sphi 0, %s223
  $region4: #{run.4} parent=0 // loop_header_branch
    %18 = sbr.rel (%p16) target = $region8
  $region5: #{run.4} parent=0 // loop_body
    %s20 = ssub.s32 %s15, 1
    %s21 = ssub.s32 %s15, 2
    %s22 = sadd.s32 %s15, 1
    %s23 = ssub.s32 %s15, %s22
    %p24 = scmp.eq.s32.totalorder %s23, 0
    %s26 = sadd.s32 %s25, 1
    %s27 = scalar_select %p24, %s25, %s26
    %p30 = pneg %p24
    %p31 = scmp.eq.s32.totalorder %s15, 1
    %p32 = por %p30, %p31
    %p33 = scmp.ne.s32.totalorder %s25, %s28
    %p34 = scmp.eq.s32.totalorder %s15, 0
    %p35 = por %p33, %p34
    %p36 = scmp.ne.s32.totalorder %s25, %s28
    %p37 = scmp.eq.s32.totalorder %s20, 1
    %p38 = por %p36, %p37
    %p39 = scmp.ne.s32.totalorder %s28, %s29
    %p40 = scmp.eq.s32.totalorder %s20, 0
    %p41 = por %p39, %p40
    %p42 = scmp.ne.s32.totalorder %s28, %s29
    %p43 = scmp.eq.s32.totalorder %s21, 1
    %p44 = por %p42, %p43
    %p46 = scmp.ne.s32.totalorder %s29, %s45
    %p47 = scmp.eq.s32.totalorder %s21, 0
    %p48 = por %p46, %p47
    %s50 = sadd.s32 %s49, 1
    %p53 = scmp.eq.s32.totalorder %s15, 1
    %p54 = scmp.ne.s32.totalorder %s49, %s51
    %p55 = scmp.eq.s32.totalorder %s15, 0
    %p56 = por %p54, %p55
    %p57 = scmp.ne.s32.totalorder %s49, %s51
    %p58 = scmp.eq.s32.totalorder %s20, 1
    %p59 = por %p57, %p58
    %p60 = scmp.ne.s32.totalorder %s51, %s52
    %p61 = scmp.eq.s32.totalorder %s20, 0
    %p62 = por %p60, %p61
    %p63 = scmp.ne.s32.totalorder %s51, %s52
    %p64 = scmp.eq.s32.totalorder %s21, 1
    %p65 = por %p63, %p64
    %p67 = scmp.ne.s32.totalorder %s52, %s66
    %p68 = scmp.eq.s32.totalorder %s21, 0
    %p69 = por %p67, %p68
    %s71 = sadd.s32 %s70, 1
    %p74 = scmp.eq.s32.totalorder %s15, 1
    %p75 = scmp.ne.s32.totalorder %s70, %s72
    %p76 = scmp.eq.s32.totalorder %s15, 0
    %p77 = por %p75, %p76
    %p78 = scmp.ne.s32.totalorder %s70, %s72
    %p79 = scmp.eq.s32.totalorder %s20, 1
    %p80 = por %p78, %p79
    %p81 = scmp.ne.s32.totalorder %s72, %s73
    %p82 = scmp.eq.s32.totalorder %s20, 0
    %p83 = por %p81, %p82
    %p84 = scmp.ne.s32.totalorder %s72, %s73
    %p85 = scmp.eq.s32.totalorder %s21, 1
    %p86 = por %p84, %p85
    %p88 = scmp.ne.s32.totalorder %s73, %s87
    %p89 = scmp.eq.s32.totalorder %s21, 0
    %p90 = por %p88, %p89
    %s92 = sadd.s32 %s91, 1
    %p95 = scmp.eq.s32.totalorder %s15, 1
    %p96 = scmp.ne.s32.totalorder %s91, %s93
    %p97 = scmp.eq.s32.totalorder %s15, 0
    %p98 = por %p96, %p97
    %p99 = scmp.ne.s32.totalorder %s91, %s93
    %p100 = scmp.eq.s32.totalorder %s20, 1
    %p101 = por %p99, %p100
    %p102 = scmp.ne.s32.totalorder %s93, %s94
    %p103 = scmp.eq.s32.totalorder %s20, 0
    %p104 = por %p102, %p103
    %p105 = scmp.ne.s32.totalorder %s93, %s94
    %p106 = scmp.eq.s32.totalorder %s21, 1
    %p107 = por %p105, %p106
    %p109 = scmp.ne.s32.totalorder %s94, %s108
    %p110 = scmp.eq.s32.totalorder %s21, 0
    %p111 = por %p109, %p110
    %s113 = sadd.s32 %s112, 1
    %p116 = scmp.eq.s32.totalorder %s15, 1
    %p117 = scmp.ne.s32.totalorder %s112, %s114
    %p118 = scmp.eq.s32.totalorder %s15, 0
    %p119 = por %p117, %p118
    %p120 = scmp.ne.s32.totalorder %s112, %s114
    %p121 = scmp.eq.s32.totalorder %s20, 1
    %p122 = por %p120, %p121
    %p123 = scmp.ne.s32.totalorder %s114, %s115
    %p124 = scmp.eq.s32.totalorder %s20, 0
    %p125 = por %p123, %p124
    %p126 = scmp.ne.s32.totalorder %s114, %s115
    %p127 = scmp.eq.s32.totalorder %s21, 1
    %p128 = por %p126, %p127
    %p130 = scmp.ne.s32.totalorder %s115, %s129
    %p131 = scmp.eq.s32.totalorder %s21, 0
    %p132 = por %p130, %p131
    %s134 = sadd.s32 %s133, 1
    %p137 = scmp.eq.s32.totalorder %s15, 1
    %p138 = scmp.ne.s32.totalorder %s133, %s135
    %p139 = scmp.eq.s32.totalorder %s15, 0
    %p140 = por %p138, %p139
    %p141 = scmp.ne.s32.totalorder %s133, %s135
    %p142 = scmp.eq.s32.totalorder %s20, 1
    %p143 = por %p141, %p142
    %p144 = scmp.ne.s32.totalorder %s135, %s136
    %p145 = scmp.eq.s32.totalorder %s20, 0
    %p146 = por %p144, %p145
    %p147 = scmp.ne.s32.totalorder %s135, %s136
    %p148 = scmp.eq.s32.totalorder %s21, 1
    %p149 = por %p147, %p148
    %p151 = scmp.ne.s32.totalorder %s136, %s150
    %p152 = scmp.eq.s32.totalorder %s21, 0
    %p153 = por %p151, %p152
    %s155 = sadd.s32 %s154, 1
    %p158 = scmp.eq.s32.totalorder %s15, 1
    %p159 = scmp.ne.s32.totalorder %s154, %s156
    %p160 = scmp.eq.s32.totalorder %s15, 0
    %p161 = por %p159, %p160
    %p162 = scmp.ne.s32.totalorder %s154, %s156
    %p163 = scmp.eq.s32.totalorder %s20, 1
    %p164 = por %p162, %p163
    %p165 = scmp.ne.s32.totalorder %s156, %s157
    %p166 = scmp.eq.s32.totalorder %s20, 0
    %p167 = por %p165, %p166
    %p168 = scmp.ne.s32.totalorder %s156, %s157
    %p169 = scmp.eq.s32.totalorder %s21, 1
    %p170 = por %p168, %p169
    %p172 = scmp.ne.s32.totalorder %s157, %s171
    %p173 = scmp.eq.s32.totalorder %s21, 0
    %p174 = por %p172, %p173
    %s176 = sadd.s32 %s175, 1
    %p179 = scmp.eq.s32.totalorder %s15, 1
    %p180 = scmp.ne.s32.totalorder %s175, %s177
    %p181 = scmp.eq.s32.totalorder %s15, 0
    %p182 = por %p180, %p181
    %p183 = scmp.ne.s32.totalorder %s175, %s177
    %p184 = scmp.eq.s32.totalorder %s20, 1
    %p185 = por %p183, %p184
    %p186 = scmp.ne.s32.totalorder %s177, %s178
    %p187 = scmp.eq.s32.totalorder %s20, 0
    %p188 = por %p186, %p187
    %p189 = scmp.ne.s32.totalorder %s177, %s178
    %p190 = scmp.eq.s32.totalorder %s21, 1
    %p191 = por %p189, %p190
    %p193 = scmp.ne.s32.totalorder %s178, %s192
    %p194 = scmp.eq.s32.totalorder %s21, 0
    %p195 = por %p193, %p194
    %s197 = sadd.s32 %s196, 1
    %p200 = scmp.eq.s32.totalorder %s15, 1
    %p201 = scmp.ne.s32.totalorder %s196, %s198
    %p202 = scmp.eq.s32.totalorder %s15, 0
    %p203 = por %p201, %p202
    %p204 = scmp.ne.s32.totalorder %s196, %s198
    %p205 = scmp.eq.s32.totalorder %s20, 1
    %p206 = por %p204, %p205
    %p207 = scmp.ne.s32.totalorder %s198, %s199
    %p208 = scmp.eq.s32.totalorder %s20, 0
    %p209 = por %p207, %p208
    %p210 = scmp.ne.s32.totalorder %s198, %s199
    %p211 = scmp.eq.s32.totalorder %s21, 1
    %p212 = por %p210, %p211
    %p214 = scmp.ne.s32.totalorder %s199, %s213
    %p215 = scmp.eq.s32.totalorder %s21, 0
    %p216 = por %p214, %p215
    %s217 = ssub.s32 %s15, %s22
    %p218 = scmp.eq.s32.totalorder %s217, 0
    %s220 = sadd.s32 %s219, 1
    %s221 = scalar_select %p218, %s219, %s220
    %p224 = pneg %p218
    %p225 = scmp.eq.s32.totalorder %s15, 1
    %p226 = por %p224, %p225
    %p227 = scmp.ne.s32.totalorder %s219, %s222
    %p228 = scmp.eq.s32.totalorder %s15, 0
    %p229 = por %p227, %p228
    %p230 = scmp.ne.s32.totalorder %s219, %s222
    %p231 = scmp.eq.s32.totalorder %s20, 1
    %p232 = por %p230, %p231
    %p233 = scmp.ne.s32.totalorder %s222, %s223
    %p234 = scmp.eq.s32.totalorder %s20, 0
    %p235 = por %p233, %p234
    %p236 = scmp.ne.s32.totalorder %s222, %s223
    %p237 = scmp.eq.s32.totalorder %s21, 1
    %p238 = por %p236, %p237
    %p240 = scmp.ne.s32.totalorder %s223, %s239
    %p241 = scmp.eq.s32.totalorder %s21, 0
    %p242 = por %p240, %p241
    %p243 = scmp.le.s32.totalorder 1, %s15
    %p244 = scmp.lt.s32.totalorder %s15, 3
    %p245 = pnand %p243, %p244
    %p246 = pneg %p245
    // Predicated region
    $region9: #{run.4} parent=5 // pred_check
      _
    $region10: #{run.4} parent=5 // pred_check_branch
      %248 = sbr.rel (%p245) target = $region12
    $region11: #{run.4} parent=5 // pred_region
      %s249 = ssub.s32 %s15, 1
      // Predicated region
      $region13: #{run.4} parent=11 // pred_check
        %p250 = pneg %p62
      $region14: #{run.4} parent=11 // pred_check_branch
        %252 = sbr.rel (%p250) target = $region16
      $region15: #{run.4} parent=11 // pred_region
        _
      $region16: #{run.4} parent=11 // pred_fallthru
        _
      // Predicated region
      $region17: #{run.4} parent=11 // pred_check
        %p253 = pneg %p83
      $region18: #{run.4} parent=11 // pred_check_branch
        %255 = sbr.rel (%p253) target = $region20
      $region19: #{run.4} parent=11 // pred_region
        _
      $region20: #{run.4} parent=11 // pred_fallthru
        _
      // Predicated region
      $region21: #{run.4} parent=11 // pred_check
        %p256 = pneg %p104
      $region22: #{run.4} parent=11 // pred_check_branch
        %258 = sbr.rel (%p256) target = $region24
      $region23: #{run.4} parent=11 // pred_region
        _
      $region24: #{run.4} parent=11 // pred_fallthru
        _
      // Predicated region
      $region25: #{run.4} parent=11 // pred_check
        %p259 = pneg %p125
      $region26: #{run.4} parent=11 // pred_check_branch
        %261 = sbr.rel (%p259) target = $region28
      $region27: #{run.4} parent=11 // pred_region
        _
      $region28: #{run.4} parent=11 // pred_fallthru
        _
      // Predicated region
      $region29: #{run.4} parent=11 // pred_check
        %p262 = pneg %p146
      $region30: #{run.4} parent=11 // pred_check_branch
        %264 = sbr.rel (%p262) target = $region32
      $region31: #{run.4} parent=11 // pred_region
        _
      $region32: #{run.4} parent=11 // pred_fallthru
        _
      // Predicated region
      $region33: #{run.4} parent=11 // pred_check
        %p265 = pneg %p167
      $region34: #{run.4} parent=11 // pred_check_branch
        %267 = sbr.rel (%p265) target = $region36
      $region35: #{run.4} parent=11 // pred_region
        _
      $region36: #{run.4} parent=11 // pred_fallthru
        _
      // Predicated region
      $region37: #{run.4} parent=11 // pred_check
        %p268 = pneg %p188
      $region38: #{run.4} parent=11 // pred_check_branch
        %270 = sbr.rel (%p268) target = $region40
      $region39: #{run.4} parent=11 // pred_region
        _
      $region40: #{run.4} parent=11 // pred_fallthru
        _
      // Predicated region
      $region41: #{run.4} parent=11 // pred_check
        %p271 = pneg %p209
      $region42: #{run.4} parent=11 // pred_check_branch
        %273 = sbr.rel (%p271) target = $region44
      $region43: #{run.4} parent=11 // pred_region
        _
      $region44: #{run.4} parent=11 // pred_fallthru
        _
    $region12: #{run.4} parent=5 // pred_fallthru
      _
    %p274 = scmp.lt.s32.totalorder %s15, 2
    // Predicated region
    $region45: #{run.4} parent=5 // pred_check
      %p275 = pneg %p274
    $region46: #{run.4} parent=5 // pred_check_branch
      %277 = sbr.rel (%p275) target = $region48
    $region47: #{run.4} parent=5 // pred_region
      // Predicated region
      $region49: #{run.4} parent=47 // pred_check
        %p278 = pneg %p35
      $region50: #{run.4} parent=47 // pred_check_branch
        %280 = sbr.rel (%p278) target = $region52
      $region51: #{run.4} parent=47 // pred_region
        %p281 = scmp.lt.s32.totalorder %s15, 1
        %s282 = scalar_select %p281, %s15, 1
        %s283 = smul.addr %s282, 8
        %s284 = smul.addr %s283, 8
        %s285 = scalar_lea.vmem %s0, %s284
      $region52: #{run.4} parent=47 // pred_fallthru
        _
    $region48: #{run.4} parent=5 // pred_fallthru
      _
    %p286 = scmp.le.s32.totalorder 1, %s15
    %p287 = scmp.lt.s32.totalorder %s15, 3
    %p288 = pnand %p286, %p287
    %p289 = pneg %p288
    // Predicated region
    $region53: #{run.4} parent=5 // pred_check
      _
    $region54: #{run.4} parent=5 // pred_check_branch
      %291 = sbr.rel (%p288) target = $region56
    $region55: #{run.4} parent=5 // pred_region
      %s292 = ssub.s32 %s15, 1
      %p293 = scmp.lt.s32.totalorder %s20, 1
      %s294 = scalar_select %p293, %s20, 1
      %s295 = smul.addr %s294, 8
      %s296 = smul.addr %s295, 8
      %s297 = scalar_lea.vmem %s0, %s296
      %p298 = pneg %p41
      %p299 = pneg %p38
      %p300 = pneg %p62
      %p301 = pneg %p59
      %p302 = pneg %p83
      %p303 = pneg %p80
      %p304 = pneg %p104
      %p305 = pneg %p101
      %p306 = pneg %p125
      %p307 = pneg %p122
      %p308 = pneg %p146
      %p309 = pneg %p143
      %p310 = pneg %p167
      %p311 = pneg %p164
      %p312 = pneg %p188
      %p313 = pneg %p185
      %p314 = pneg %p209
      %p315 = pneg %p206
      %p316 = pneg %p235
      %p317 = pneg %p232
      %p318 = scmp.lt.s32.totalorder %s20, 1
      %s319 = scalar_select %p318, %s20, 1
      %s320 = smul.addr %s319, 8
      %s321 = smul.addr %s320, 8
      %s322 = scalar_lea.vmem %s9, %s321
      %p323 = scmp.lt.s32.totalorder %s20, 1
      %s324 = scalar_select %p323, %s20, 1
      %s325 = smul.addr %s324, 8
      %s326 = smul.addr %s325, 8
      %s327 = scalar_lea.vmem %s0, %s326
      %p328 = scmp.lt.s32.totalorder %s20, 1
      %s329 = scalar_select %p328, %s20, 1
      %s330 = smul.addr %s329, 8
      %s331 = smul.addr %s330, 8
      %s332 = scalar_lea.vmem %s9, %s331
      %v334 = vld [vmem:[%s327] sm:$0xff]
      %v335 = vld [vmem:[%s327 + $0x8] sm:$0xff]
      %v336 = vld [vmem:[%s327 + $0x10] sm:$0xff]
      %v337 = vld [vmem:[%s327 + $0x18] sm:$0xff]
      %v338 = vld [vmem:[%s327 + $0x20] sm:$0xff]
      %v339 = vld [vmem:[%s327 + $0x28] sm:$0xff]
      %v340 = vld [vmem:[%s327 + $0x30] sm:$0xff]
      %v341 = vld [vmem:[%s327 + $0x38] sm:$0xff]
      %vm342 = vcmask 261120
      %v343 = vsel %vm342, %v334, 0.0
      %344 = vadd.xlane.f32.xlu0 %v343
      %v345 = vpop.xlane.xlu0 %344
      %v346 = vsel %vm342, %v335, 0.0
      %347 = vadd.xlane.f32.xlu0 %v346
      %v348 = vpop.xlane.xlu0 %347
      %v349 = vsel %vm342, %v336, 0.0
      %350 = vadd.xlane.f32.xlu0 %v349
      %v351 = vpop.xlane.xlu0 %350
      %v352 = vsel %vm342, %v337, 0.0
      %353 = vadd.xlane.f32.xlu0 %v352
      %v354 = vpop.xlane.xlu0 %353
      %v355 = vsel %vm342, %v338, 0.0
      %356 = vadd.xlane.f32.xlu0 %v355
      %v357 = vpop.xlane.xlu0 %356
      %v358 = vsel %vm342, %v339, 0.0
      %359 = vadd.xlane.f32.xlu0 %v358
      %v360 = vpop.xlane.xlu0 %359
      %v361 = vsel %vm342, %v340, 0.0
      %362 = vadd.xlane.f32.xlu0 %v361
      %v363 = vpop.xlane.xlu0 %362
      %v364 = vsel %vm342, %v341, 0.0
      %365 = vadd.xlane.f32.xlu0 %v364
      %v366 = vpop.xlane.xlu0 %365
      %v367 = vrcp.pop 32.0
      %v368 = vmul.f32 32.0, %v367
      %v369 = vsub.f32 1.0, %v368
      %v370 = vmul.f32 %v367, %v369
      %v371 = vadd.f32 %v367, %v370
      %vm372 = vweird.f32 %v367
      %v373 = vsel %vm372, %v367, %v371
      %v374 = vmul.f32 %v345, %v373
      %v375 = vmul.f32 %v348, %v373
      %v376 = vmul.f32 %v351, %v373
      %v377 = vmul.f32 %v354, %v373
      %v378 = vmul.f32 %v357, %v373
      %v379 = vmul.f32 %v360, %v373
      %v380 = vmul.f32 %v363, %v373
      %v381 = vmul.f32 %v366, %v373
      %v382 = vsub.f32 %v334, %v374
      %v383 = vsub.f32 %v335, %v375
      %v384 = vsub.f32 %v336, %v376
      %v385 = vsub.f32 %v337, %v377
      %v386 = vsub.f32 %v338, %v378
      %v387 = vsub.f32 %v339, %v379
      %v388 = vsub.f32 %v340, %v380
      %v389 = vsub.f32 %v341, %v381
      %v390 = vmul.f32 %v382, %v382
      %v391 = vmul.f32 %v383, %v383
      %v392 = vmul.f32 %v384, %v384
      %v393 = vmul.f32 %v385, %v385
      %v394 = vmul.f32 %v386, %v386
      %v395 = vmul.f32 %v387, %v387
      %v396 = vmul.f32 %v388, %v388
      %v397 = vmul.f32 %v389, %v389
      %v398 = vsel %vm342, %v390, 0.0
      %399 = vadd.xlane.f32.xlu0 %v398
      %v400 = vpop.xlane.xlu0 %399
      %v401 = vsel %vm342, %v391, 0.0
      %402 = vadd.xlane.f32.xlu0 %v401
      %v403 = vpop.xlane.xlu0 %402
      %v404 = vsel %vm342, %v392, 0.0
      %405 = vadd.xlane.f32.xlu0 %v404
      %v406 = vpop.xlane.xlu0 %405
      %v407 = vsel %vm342, %v393, 0.0
      %408 = vadd.xlane.f32.xlu0 %v407
      %v409 = vpop.xlane.xlu0 %408
      %v410 = vsel %vm342, %v394, 0.0
      %411 = vadd.xlane.f32.xlu0 %v410
      %v412 = vpop.xlane.xlu0 %411
      %v413 = vsel %vm342, %v395, 0.0
      %414 = vadd.xlane.f32.xlu0 %v413
      %v415 = vpop.xlane.xlu0 %414
      %v416 = vsel %vm342, %v396, 0.0
      %417 = vadd.xlane.f32.xlu0 %v416
      %v418 = vpop.xlane.xlu0 %417
      %v419 = vsel %vm342, %v397, 0.0
      %420 = vadd.xlane.f32.xlu0 %v419
      %v421 = vpop.xlane.xlu0 %420
      %v422 = vmul.f32 %v400, %v373
      %v423 = vmul.f32 %v403, %v373
      %v424 = vmul.f32 %v406, %v373
      %v425 = vmul.f32 %v409, %v373
      %v426 = vmul.f32 %v412, %v373
      %v427 = vmul.f32 %v415, %v373
      %v428 = vmul.f32 %v418, %v373
      %v429 = vmul.f32 %v421, %v373
      %v430 = vadd.f32 %v422, 1e-05
      %v431 = vadd.f32 %v423, 1e-05
      %v432 = vadd.f32 %v424, 1e-05
      %v433 = vadd.f32 %v425, 1e-05
      %v434 = vadd.f32 %v426, 1e-05
      %v435 = vadd.f32 %v427, 1e-05
      %v436 = vadd.f32 %v428, 1e-05
      %v437 = vadd.f32 %v429, 1e-05
      %v438 = vrsqrt.pop %v430
      %v439 = vmul.f32 %v438, %v430
      %v440 = vmul.f32 %v439, %v438
      %v441 = vmul.f32 0.5, %v440
      %v442 = vsub.f32 1.5, %v441
      %v443 = vmul.f32 %v438, %v442
      %vm444 = vweird.f32 %v430
      %vm445 = vweird.f32 %v438
      %vm446 = vmor %vm444, %vm445
      %v447 = vsel %vm446, %v438, %v443
      %v448 = vrsqrt.pop %v431
      %v449 = vmul.f32 %v448, %v431
      %v450 = vmul.f32 %v449, %v448
      %v451 = vmul.f32 0.5, %v450
      %v452 = vsub.f32 1.5, %v451
      %v453 = vmul.f32 %v448, %v452
      %vm454 = vweird.f32 %v431
      %vm455 = vweird.f32 %v448
      %vm456 = vmor %vm454, %vm455
      %v457 = vsel %vm456, %v448, %v453
      %v458 = vrsqrt.pop %v432
      %v459 = vmul.f32 %v458, %v432
      %v460 = vmul.f32 %v459, %v458
      %v461 = vmul.f32 0.5, %v460
      %v462 = vsub.f32 1.5, %v461
      %v463 = vmul.f32 %v458, %v462
      %vm464 = vweird.f32 %v432
      %vm465 = vweird.f32 %v458
      %vm466 = vmor %vm464, %vm465
      %v467 = vsel %vm466, %v458, %v463
      %v468 = vrsqrt.pop %v433
      %v469 = vmul.f32 %v468, %v433
      %v470 = vmul.f32 %v469, %v468
      %v471 = vmul.f32 0.5, %v470
      %v472 = vsub.f32 1.5, %v471
      %v473 = vmul.f32 %v468, %v472
      %vm474 = vweird.f32 %v433
      %vm475 = vweird.f32 %v468
      %vm476 = vmor %vm474, %vm475
      %v477 = vsel %vm476, %v468, %v473
      %v478 = vrsqrt.pop %v434
      %v479 = vmul.f32 %v478, %v434
      %v480 = vmul.f32 %v479, %v478
      %v481 = vmul.f32 0.5, %v480
      %v482 = vsub.f32 1.5, %v481
      %v483 = vmul.f32 %v478, %v482
      %vm484 = vweird.f32 %v434
      %vm485 = vweird.f32 %v478
      %vm486 = vmor %vm484, %vm485
      %v487 = vsel %vm486, %v478, %v483
      %v488 = vrsqrt.pop %v435
      %v489 = vmul.f32 %v488, %v435
      %v490 = vmul.f32 %v489, %v488
      %v491 = vmul.f32 0.5, %v490
      %v492 = vsub.f32 1.5, %v491
      %v493 = vmul.f32 %v488, %v492
      %vm494 = vweird.f32 %v435
      %vm495 = vweird.f32 %v488
      %vm496 = vmor %vm494, %vm495
      %v497 = vsel %vm496, %v488, %v493
      %v498 = vrsqrt.pop %v436
      %v499 = vmul.f32 %v498, %v436
      %v500 = vmul.f32 %v499, %v498
      %v501 = vmul.f32 0.5, %v500
      %v502 = vsub.f32 1.5, %v501
      %v503 = vmul.f32 %v498, %v502
      %vm504 = vweird.f32 %v436
      %vm505 = vweird.f32 %v498
      %vm506 = vmor %vm504, %vm505
      %v507 = vsel %vm506, %v498, %v503
      %v508 = vrsqrt.pop %v437
      %v509 = vmul.f32 %v508, %v437
      %v510 = vmul.f32 %v509, %v508
      %v511 = vmul.f32 0.5, %v510
      %v512 = vsub.f32 1.5, %v511
      %v513 = vmul.f32 %v508, %v512
      %vm514 = vweird.f32 %v437
      %vm515 = vweird.f32 %v508
      %vm516 = vmor %vm514, %vm515
      %v517 = vsel %vm516, %v508, %v513
      %v518 = vmul.f32 %v382, %v447
      %v519 = vmul.f32 %v383, %v457
      %v520 = vmul.f32 %v384, %v467
      %v521 = vmul.f32 %v385, %v477
      %v522 = vmul.f32 %v386, %v487
      %v523 = vmul.f32 %v387, %v497
      %v524 = vmul.f32 %v388, %v507
      %v525 = vmul.f32 %v389, %v517
      %v526 = vld [vmem:[%s3] sm:$0x1]
      %v528 = vperm.slane %v526, 0
      %v530 = vmul.f32 %v518, %v528
      %v531 = vmul.f32 %v519, %v528
      %v532 = vmul.f32 %v520, %v528
      %v533 = vmul.f32 %v521, %v528
      %v534 = vmul.f32 %v522, %v528
      %v535 = vmul.f32 %v523, %v528
      %v536 = vmul.f32 %v524, %v528
      %v537 = vmul.f32 %v525, %v528
      %v538 = vld [vmem:[%s4] sm:$0x1]
      %v540 = vperm.slane %v538, 0
      %v542 = vadd.f32 %v530, %v540
      %v543 = vadd.f32 %v531, %v540
      %v544 = vadd.f32 %v532, %v540
      %v545 = vadd.f32 %v533, %v540
      %v546 = vadd.f32 %v534, %v540
      %v547 = vadd.f32 %v535, %v540
      %v548 = vadd.f32 %v536, %v540
      %v549 = vadd.f32 %v537, %v540
      %v550 = vsub.f32 0.0, %v542
      %v551 = vsub.f32 0.0, %v543
      %v552 = vsub.f32 0.0, %v544
      %v553 = vsub.f32 0.0, %v545
      %v554 = vsub.f32 0.0, %v546
      %v555 = vsub.f32 0.0, %v547
      %v556 = vsub.f32 0.0, %v548
      %v557 = vsub.f32 0.0, %v549
      %566 = vrot.lane.b32.xlu0 %v550, 120
      %v567 = vpop.permute.xlu0 %566
      %568 = vrot.lane.b32.xlu0 %v551, 120
      %v569 = vpop.permute.xlu0 %568
      %570 = vrot.lane.b32.xlu0 %v552, 120
      %v571 = vpop.permute.xlu0 %570
      %572 = vrot.lane.b32.xlu0 %v553, 120
      %v573 = vpop.permute.xlu0 %572
      %574 = vrot.lane.b32.xlu0 %v554, 120
      %v575 = vpop.permute.xlu0 %574
      %576 = vrot.lane.b32.xlu0 %v555, 120
      %v577 = vpop.permute.xlu0 %576
      %578 = vrot.lane.b32.xlu0 %v556, 120
      %v579 = vpop.permute.xlu0 %578
      %580 = vrot.lane.b32.xlu0 %v557, 120
      %v581 = vpop.permute.xlu0 %580
      %598 = vrot.lane.b32.xlu0 %v542, 8
      %v599 = vpop.permute.xlu0 %598
      %600 = vrot.lane.b32.xlu0 %v543, 8
      %v601 = vpop.permute.xlu0 %600
      %602 = vrot.lane.b32.xlu0 %v544, 8
      %v603 = vpop.permute.xlu0 %602
      %604 = vrot.lane.b32.xlu0 %v545, 8
      %v605 = vpop.permute.xlu0 %604
      %606 = vrot.lane.b32.xlu0 %v546, 8
      %v607 = vpop.permute.xlu0 %606
      %608 = vrot.lane.b32.xlu0 %v547, 8
      %v609 = vpop.permute.xlu0 %608
      %610 = vrot.lane.b32.xlu0 %v548, 8
      %v611 = vpop.permute.xlu0 %610
      %612 = vrot.lane.b32.xlu0 %v549, 8
      %v613 = vpop.permute.xlu0 %612
      %vm622 = vcmask 64512
      %v623 = vsel %vm622, %v567, %v599
      %v624 = vsel %vm622, %v569, %v601
      %v625 = vsel %vm622, %v571, %v603
      %v626 = vsel %vm622, %v573, %v605
      %v627 = vsel %vm622, %v575, %v607
      %v628 = vsel %vm622, %v577, %v609
      %v629 = vsel %vm622, %v579, %v611
      %v630 = vsel %vm622, %v581, %v613
      %vm631 = vcmask 130048
      %v632 = vsel %vm631, %v623, %v567
      %v633 = vsel %vm631, %v624, %v569
      %v634 = vsel %vm631, %v625, %v571
      %v635 = vsel %vm631, %v626, %v573
      %v636 = vsel %vm631, %v627, %v575
      %v637 = vsel %vm631, %v628, %v577
      %v638 = vsel %vm631, %v629, %v579
      %v639 = vsel %vm631, %v630, %v581
      %vm640 = vcmask 195584
      %v641 = vsel %vm640, %v632, %v599
      %v642 = vsel %vm640, %v633, %v601
      %v643 = vsel %vm640, %v634, %v603
      %v644 = vsel %vm640, %v635, %v605
      %v645 = vsel %vm640, %v636, %v607
      %v646 = vsel %vm640, %v637, %v609
      %v647 = vsel %vm640, %v638, %v611
      %v648 = vsel %vm640, %v639, %v613
      %v649 = vld [vmem:[%s1] sm:$0xff]
      %v650 = vld [vmem:[%s1 + $0x8] sm:$0xff]
      %v651 = vld [vmem:[%s1 + $0x10] sm:$0xff]
      %v652 = vld [vmem:[%s1 + $0x18] sm:$0xff]
      %v653 = vld [vmem:[%s1 + $0x20] sm:$0xff]
      %v654 = vld [vmem:[%s1 + $0x28] sm:$0xff]
      %v655 = vld [vmem:[%s1 + $0x30] sm:$0xff]
      %v656 = vld [vmem:[%s1 + $0x38] sm:$0xff]
      %v657 = vmul.f32 %v542, %v649
      %v658 = vmul.f32 %v543, %v650
      %v659 = vmul.f32 %v544, %v651
      %v660 = vmul.f32 %v545, %v652
      %v661 = vmul.f32 %v546, %v653
      %v662 = vmul.f32 %v547, %v654
      %v663 = vmul.f32 %v548, %v655
      %v664 = vmul.f32 %v549, %v656
      %v665 = vld [vmem:[%s2] sm:$0xff]
      %v666 = vld [vmem:[%s2 + $0x8] sm:$0xff]
      %v667 = vld [vmem:[%s2 + $0x10] sm:$0xff]
      %v668 = vld [vmem:[%s2 + $0x18] sm:$0xff]
      %v669 = vld [vmem:[%s2 + $0x20] sm:$0xff]
      %v670 = vld [vmem:[%s2 + $0x28] sm:$0xff]
      %v671 = vld [vmem:[%s2 + $0x30] sm:$0xff]
      %v672 = vld [vmem:[%s2 + $0x38] sm:$0xff]
      %v673 = vmul.f32 %v641, %v665
      %v674 = vmul.f32 %v642, %v666
      %v675 = vmul.f32 %v643, %v667
      %v676 = vmul.f32 %v644, %v668
      %v677 = vmul.f32 %v645, %v669
      %v678 = vmul.f32 %v646, %v670
      %v679 = vmul.f32 %v647, %v671
      %v680 = vmul.f32 %v648, %v672
      %v681 = vadd.f32 %v657, %v673
      %v682 = vadd.f32 %v658, %v674
      %v683 = vadd.f32 %v659, %v675
      %v684 = vadd.f32 %v660, %v676
      %v685 = vadd.f32 %v661, %v677
      %v686 = vadd.f32 %v662, %v678
      %v687 = vadd.f32 %v663, %v679
      %v688 = vadd.f32 %v664, %v680
      %v689 = vpack.c.bf16 %v682, %v681
      %v690 = vpack.c.bf16 %v684, %v683
      %v691 = vpack.c.bf16 %v686, %v685
      %v692 = vpack.c.bf16 %v688, %v687
      %v693 = vld [vmem:[%s5] sm:$0xf]
      %v694 = vld [vmem:[%s5 + $0x4] sm:$0xf]
      %v695 = vld [vmem:[%s5 + $0x8] sm:$0xf]
      %v696 = vld [vmem:[%s5 + $0xc] sm:$0xf]
      %v697 = vld [vmem:[%s6] sm:$0x1]
      %v699 = vperm.slane %v697, 0
      %v705 = vunpack.c.l.b16 %v693
      %v706 = vunpack.c.l.b16 %v694
      %v707 = vunpack.c.l.b16 %v695
      %v708 = vunpack.c.l.b16 %v696
      %v709 = vpack.c.b16 %v706, %v705
      %v710 = vpack.c.b16 %v708, %v707
      %v714 = vsel %vm342, %v689, 0
      %v717 = vsel %vm342, %v690, 0
      %v720 = vsel %vm342, %v691, 0
      %v723 = vsel %vm342, %v692, 0
      %725 = vmatpush.bf16.msra.mxu0 0
      %726 = vmatpush.bf16.msra.mxu0 0
      %727 = vmatpush.bf16.msra.mxu0 0
      %728 = vmatpush.bf16.msra.mxu0 0
      %729 = vmatpush.bf16.msra.mxu0 0
      %730 = vmatpush.bf16.msra.mxu0 0
      %731 = vmatpush.bf16.msra.mxu0 %v710
      %732 = vmatpush.bf16.msra.mxu0 %v709
      %733 = vmatmul.bf16.gmra.mxu0 %v714
      %v734 = vpop.f32.mrf.mxu0
      %v735 = vadd.f32 %v699, %v734
      %v736 = vpop.f32.mrf.mxu0
      %v737 = vadd.f32 %v699, %v736
      %738 = vmatmul.bf16.gmra.mxu0 %v717
      %v739 = vpop.f32.mrf.mxu0
      %v740 = vadd.f32 %v699, %v739
      %v741 = vpop.f32.mrf.mxu0
      %v742 = vadd.f32 %v699, %v741
      %743 = vmatmul.bf16.gmra.mxu0 %v720
      %v744 = vpop.f32.mrf.mxu0
      %v745 = vadd.f32 %v699, %v744
      %v746 = vpop.f32.mrf.mxu0
      %v747 = vadd.f32 %v699, %v746
      %748 = vmatmul.bf16.gmra.mxu0 %v723
      %v749 = vpop.f32.mrf.mxu0
      %v750 = vadd.f32 %v699, %v749
      %v751 = vpop.f32.mrf.mxu0
      %v752 = vadd.f32 %v699, %v751
      %753 = vdwg.mxu0
      %v754 = vpack.c.bf16 %v735, %v735
      %v755 = vpack.c.bf16 %v737, %v737
      %v756 = vpack.c.bf16 %v740, %v740
      %v757 = vpack.c.bf16 %v742, %v742
      %v758 = vpack.c.bf16 %v745, %v745
      %v759 = vpack.c.bf16 %v747, %v747
      %v760 = vpack.c.bf16 %v750, %v750
      %v761 = vpack.c.bf16 %v752, %v752
      %v762 = vunpack.c.l.bf16 %v754
      %v763 = vunpack.c.l.bf16 %v755
      %v764 = vunpack.c.l.bf16 %v756
      %v765 = vunpack.c.l.bf16 %v757
      %v766 = vunpack.c.l.bf16 %v758
      %v767 = vunpack.c.l.bf16 %v759
      %v768 = vunpack.c.l.bf16 %v760
      %v769 = vunpack.c.l.bf16 %v761
      %v770 = vmul.f32 %v762, 0.35351563
      %v771 = vmul.f32 %v763, 0.35351563
      %v772 = vmul.f32 %v764, 0.35351563
      %v773 = vmul.f32 %v765, 0.35351563
      %v774 = vmul.f32 %v766, 0.35351563
      %v775 = vmul.f32 %v767, 0.35351563
      %v776 = vmul.f32 %v768, 0.35351563
      %v777 = vmul.f32 %v769, 0.35351563
      %v778 = vpack.c.bf16 %v771, %v770
      %v779 = vpack.c.bf16 %v773, %v772
      %v780 = vpack.c.bf16 %v775, %v774
      %v781 = vpack.c.bf16 %v777, %v776
      %v790 = vunpack.c.l.b16 %v754
      %v791 = vunpack.c.l.b16 %v755
      %v792 = vunpack.c.l.b16 %v756
      %v793 = vunpack.c.l.b16 %v757
      %v794 = vunpack.c.l.b16 %v758
      %v795 = vunpack.c.l.b16 %v759
      %v796 = vunpack.c.l.b16 %v760
      %v797 = vunpack.c.l.b16 %v761
      %v798 = vpack.c.b16 %v791, %v790
      %v799 = vpack.c.b16 %v793, %v792
      %v800 = vpack.c.b16 %v795, %v794
      %v801 = vpack.c.b16 %v797, %v796
      %802 = vrot.lane.b32.xlu0 %v798, 96
      %v803 = vpop.permute.xlu0 %802
      %804 = vrot.lane.b32.xlu0 %v799, 96
      %v805 = vpop.permute.xlu0 %804
      %806 = vrot.lane.b32.xlu0 %v800, 96
      %v807 = vpop.permute.xlu0 %806
      %808 = vrot.lane.b32.xlu0 %v801, 96
      %v809 = vpop.permute.xlu0 %808
      %v811 = vsel %vm622, %v778, 0
      %v814 = vsel %vm622, %v779, 0
      %v817 = vsel %vm622, %v780, 0
      %v820 = vsel %vm622, %v781, 0
      %v823 = vsel %vm622, %v803, 0
      %v826 = vsel %vm622, %v805, 0
      %v829 = vsel %vm622, %v807, 0
      %v832 = vsel %vm622, %v809, 0
      %834 = vmatpush.bf16.xpose.msra.mxu0 0
      %835 = vmatpush.bf16.xpose.msra.mxu0 0
      %836 = vmatpush.bf16.xpose.msra.mxu0 0
      %837 = vmatpush.bf16.xpose.msra.mxu0 0
      %838 = vmatpush.bf16.xpose.msra.mxu0 %v832
      %839 = vmatpush.bf16.xpose.msra.mxu0 %v829
      %840 = vmatpush.bf16.xpose.msra.mxu0 %v826
      %841 = vmatpush.bf16.xpose.msra.mxu0 %v823
      %842 = vmatmul.bf16.gmra.mxu0 %v811
      %v843 = vpop.f32.mrf.mxu0
      %v844 = vadd.f32 0.0, %v843
      %v845 = vpop.f32.mrf.mxu0
      %v846 = vadd.f32 0.0, %v845
      %847 = vmatmul.bf16.gmra.mxu0 %v814
      %v848 = vpop.f32.mrf.mxu0
      %v849 = vadd.f32 0.0, %v848
      %v850 = vpop.f32.mrf.mxu0
      %v851 = vadd.f32 0.0, %v850
      %852 = vmatmul.bf16.gmra.mxu0 %v817
      %v853 = vpop.f32.mrf.mxu0
      %v854 = vadd.f32 0.0, %v853
      %v855 = vpop.f32.mrf.mxu0
      %v856 = vadd.f32 0.0, %v855
      %857 = vmatmul.bf16.gmra.mxu0 %v820
      %v858 = vpop.f32.mrf.mxu0
      %v859 = vadd.f32 0.0, %v858
      %v860 = vpop.f32.mrf.mxu0
      %v861 = vadd.f32 0.0, %v860
      %862 = vdwg.mxu0
      %vm863 = vcmask 523264
      %v864 = vsel %vm863, %v844, -inf
      %865 = vmax.xlane.f32.xlu0 %v864
      %v866 = vpop.xlane.xlu0 %865
      %v867 = vsel %vm863, %v846, -inf
      %868 = vmax.xlane.f32.xlu0 %v867
      %v869 = vpop.xlane.xlu0 %868
      %v870 = vsel %vm863, %v849, -inf
      %871 = vmax.xlane.f32.xlu0 %v870
      %v872 = vpop.xlane.xlu0 %871
      %v873 = vsel %vm863, %v851, -inf
      %874 = vmax.xlane.f32.xlu0 %v873
      %v875 = vpop.xlane.xlu0 %874
      %v876 = vsel %vm863, %v854, -inf
      %877 = vmax.xlane.f32.xlu0 %v876
      %v878 = vpop.xlane.xlu0 %877
      %v879 = vsel %vm863, %v856, -inf
      %880 = vmax.xlane.f32.xlu0 %v879
      %v881 = vpop.xlane.xlu0 %880
      %v882 = vsel %vm863, %v859, -inf
      %883 = vmax.xlane.f32.xlu0 %v882
      %v884 = vpop.xlane.xlu0 %883
      %v885 = vsel %vm863, %v861, -inf
      %886 = vmax.xlane.f32.xlu0 %v885
      %v887 = vpop.xlane.xlu0 %886
      %v888 = vsub.f32 %v844, %v866
      %v889 = vsub.f32 %v846, %v869
      %v890 = vsub.f32 %v849, %v872
      %v891 = vsub.f32 %v851, %v875
      %v892 = vsub.f32 %v854, %v878
      %v893 = vsub.f32 %v856, %v881
      %v894 = vsub.f32 %v859, %v884
      %v895 = vsub.f32 %v861, %v887
      %v896 = vmul.f32 %v888, 1.442695
      %v897 = vpow.pop %v896
      %v898 = vmul.f32 %v889, 1.442695
      %v899 = vpow.pop %v898
      %v900 = vmul.f32 %v890, 1.442695
      %v901 = vpow.pop %v900
      %v902 = vmul.f32 %v891, 1.442695
      %v903 = vpow.pop %v902
      %v904 = vmul.f32 %v892, 1.442695
      %v905 = vpow.pop %v904
      %v906 = vmul.f32 %v893, 1.442695
      %v907 = vpow.pop %v906
      %v908 = vmul.f32 %v894, 1.442695
      %v909 = vpow.pop %v908
      %v910 = vmul.f32 %v895, 1.442695
      %v911 = vpow.pop %v910
      %v912 = vsel %vm863, %v897, 0.0
      %913 = vadd.xlane.f32.xlu0 %v912
      %v914 = vpop.xlane.xlu0 %913
      %v915 = vsel %vm863, %v899, 0.0
      %916 = vadd.xlane.f32.xlu0 %v915
      %v917 = vpop.xlane.xlu0 %916
      %v918 = vsel %vm863, %v901, 0.0
      %919 = vadd.xlane.f32.xlu0 %v918
      %v920 = vpop.xlane.xlu0 %919
      %v921 = vsel %vm863, %v903, 0.0
      %922 = vadd.xlane.f32.xlu0 %v921
      %v923 = vpop.xlane.xlu0 %922
      %v924 = vsel %vm863, %v905, 0.0
      %925 = vadd.xlane.f32.xlu0 %v924
      %v926 = vpop.xlane.xlu0 %925
      %v927 = vsel %vm863, %v907, 0.0
      %928 = vadd.xlane.f32.xlu0 %v927
      %v929 = vpop.xlane.xlu0 %928
      %v930 = vsel %vm863, %v909, 0.0
      %931 = vadd.xlane.f32.xlu0 %v930
      %v932 = vpop.xlane.xlu0 %931
      %v933 = vsel %vm863, %v911, 0.0
      %934 = vadd.xlane.f32.xlu0 %v933
      %v935 = vpop.xlane.xlu0 %934
      %v936 = vpack.c.bf16 %v899, %v897
      %v937 = vpack.c.bf16 %v903, %v901
      %v938 = vpack.c.bf16 %v907, %v905
      %v939 = vpack.c.bf16 %v911, %v909
      %940 = vrot.lane.b32.xlu0 %v798, 64
      %v941 = vpop.permute.xlu0 %940
      %942 = vrot.lane.b32.xlu0 %v799, 64
      %v943 = vpop.permute.xlu0 %942
      %944 = vrot.lane.b32.xlu0 %v800, 64
      %v945 = vpop.permute.xlu0 %944
      %946 = vrot.lane.b32.xlu0 %v801, 64
      %v947 = vpop.permute.xlu0 %946
      %v953 = vsel %vm863, %v936, 0
      %v956 = vsel %vm863, %v937, 0
      %v959 = vsel %vm863, %v938, 0
      %v962 = vsel %vm863, %v939, 0
      %964 = vmatpush.bf16.msra.mxu0 0
      %965 = vmatpush.bf16.msra.mxu0 0
      %966 = vmatpush.bf16.msra.mxu0 0
      %967 = vmatpush.bf16.msra.mxu0 0
      %968 = vmatpush.bf16.msra.mxu0 %v947
      %969 = vmatpush.bf16.msra.mxu0 %v945
      %970 = vmatpush.bf16.msra.mxu0 %v943
      %971 = vmatpush.bf16.msra.mxu0 %v941
      %972 = vmatmul.bf16.gmra.mxu0 %v953
      %v973 = vpop.f32.mrf.mxu0
      %v974 = vadd.f32 0.0, %v973
      %v975 = vpop.f32.mrf.mxu0
      %v976 = vadd.f32 0.0, %v975
      %977 = vmatmul.bf16.gmra.mxu0 %v956
      %v978 = vpop.f32.mrf.mxu0
      %v979 = vadd.f32 0.0, %v978
      %v980 = vpop.f32.mrf.mxu0
      %v981 = vadd.f32 0.0, %v980
      %982 = vmatmul.bf16.gmra.mxu0 %v959
      %v983 = vpop.f32.mrf.mxu0
      %v984 = vadd.f32 0.0, %v983
      %v985 = vpop.f32.mrf.mxu0
      %v986 = vadd.f32 0.0, %v985
      %987 = vmatmul.bf16.gmra.mxu0 %v962
      %v988 = vpop.f32.mrf.mxu0
      %v989 = vadd.f32 0.0, %v988
      %v990 = vpop.f32.mrf.mxu0
      %v991 = vadd.f32 0.0, %v990
      %992 = vdwg.mxu0
      %v993 = vrcp.pop %v914
      %v994 = vrcp.pop %v917
      %v995 = vrcp.pop %v920
      %v996 = vrcp.pop %v923
      %v997 = vrcp.pop %v926
      %v998 = vrcp.pop %v929
      %v999 = vrcp.pop %v932
      %v1000 = vrcp.pop %v935
      %v1001 = vmul.f32 %v974, %v993
      %v1002 = vmul.f32 %v976, %v994
      %v1003 = vmul.f32 %v979, %v995
      %v1004 = vmul.f32 %v981, %v996
      %v1005 = vmul.f32 %v984, %v997
      %v1006 = vmul.f32 %v986, %v998
      %v1007 = vmul.f32 %v989, %v999
      %v1008 = vmul.f32 %v991, %v1000
      %1009 = vst.msk [vmem:[#allocation2] sm:$0xff] %vm622, %v1001
      %1010 = vst.msk [vmem:[#allocation2 + $0x8] sm:$0xff] %vm622, %v1002
      %1011 = vst.msk [vmem:[#allocation2 + $0x10] sm:$0xff] %vm622, %v1003
      %1012 = vst.msk [vmem:[#allocation2 + $0x18] sm:$0xff] %vm622, %v1004
      %1013 = vst.msk [vmem:[#allocation2 + $0x20] sm:$0xff] %vm622, %v1005
      %1014 = vst.msk [vmem:[#allocation2 + $0x28] sm:$0xff] %vm622, %v1006
      %1015 = vst.msk [vmem:[#allocation2 + $0x30] sm:$0xff] %vm622, %v1007
      %1016 = vst.msk [vmem:[#allocation2 + $0x38] sm:$0xff] %vm622, %v1008
      %1021 = vrot.lane.b32.xlu0 %v778, 120
      %v1022 = vpop.permute.xlu0 %1021
      %1023 = vrot.lane.b32.xlu0 %v779, 120
      %v1024 = vpop.permute.xlu0 %1023
      %1025 = vrot.lane.b32.xlu0 %v780, 120
      %v1026 = vpop.permute.xlu0 %1025
      %1027 = vrot.lane.b32.xlu0 %v781, 120
      %v1028 = vpop.permute.xlu0 %1027
      %1029 = vrot.lane.b32.xlu0 %v798, 88
      %v1030 = vpop.permute.xlu0 %1029
      %1031 = vrot.lane.b32.xlu0 %v799, 88
      %v1032 = vpop.permute.xlu0 %1031
      %1033 = vrot.lane.b32.xlu0 %v800, 88
      %v1034 = vpop.permute.xlu0 %1033
      %1035 = vrot.lane.b32.xlu0 %v801, 88
      %v1036 = vpop.permute.xlu0 %1035
      %v1038 = vsel %vm622, %v1022, 0
      %v1041 = vsel %vm622, %v1024, 0
      %v1044 = vsel %vm622, %v1026, 0
      %v1047 = vsel %vm622, %v1028, 0
      %v1050 = vsel %vm622, %v1030, 0
      %v1053 = vsel %vm622, %v1032, 0
      %v1056 = vsel %vm622, %v1034, 0
      %v1059 = vsel %vm622, %v1036, 0
      %1061 = vmatpush.bf16.xpose.msra.mxu0 0
      %1062 = vmatpush.bf16.xpose.msra.mxu0 0
      %1063 = vmatpush.bf16.xpose.msra.mxu0 0
      %1064 = vmatpush.bf16.xpose.msra.mxu0 0
      %1065 = vmatpush.bf16.xpose.msra.mxu0 %v1059
      %1066 = vmatpush.bf16.xpose.msra.mxu0 %v1056
      %1067 = vmatpush.bf16.xpose.msra.mxu0 %v1053
      %1068 = vmatpush.bf16.xpose.msra.mxu0 %v1050
      %1069 = vmatmul.bf16.gmra.mxu0 %v1038
      %v1070 = vpop.f32.mrf.mxu0
      %v1071 = vadd.f32 0.0, %v1070
      %v1072 = vpop.f32.mrf.mxu0
      %v1073 = vadd.f32 0.0, %v1072
      %1074 = vmatmul.bf16.gmra.mxu0 %v1041
      %v1075 = vpop.f32.mrf.mxu0
      %v1076 = vadd.f32 0.0, %v1075
      %v1077 = vpop.f32.mrf.mxu0
      %v1078 = vadd.f32 0.0, %v1077
      %1079 = vmatmul.bf16.gmra.mxu0 %v1044
      %v1080 = vpop.f32.mrf.mxu0
      %v1081 = vadd.f32 0.0, %v1080
      %v1082 = vpop.f32.mrf.mxu0
      %v1083 = vadd.f32 0.0, %v1082
      %1084 = vmatmul.bf16.gmra.mxu0 %v1047
      %v1085 = vpop.f32.mrf.mxu0
      %v1086 = vadd.f32 0.0, %v1085
      %v1087 = vpop.f32.mrf.mxu0
      %v1088 = vadd.f32 0.0, %v1087
      %1089 = vdwg.mxu0
      %v1090 = vsel %vm863, %v1071, -inf
      %1091 = vmax.xlane.f32.xlu0 %v1090
      %v1092 = vpop.xlane.xlu0 %1091
      %v1093 = vsel %vm863, %v1073, -inf
      %1094 = vmax.xlane.f32.xlu0 %v1093
      %v1095 = vpop.xlane.xlu0 %1094
      %v1096 = vsel %vm863, %v1076, -inf
      %1097 = vmax.xlane.f32.xlu0 %v1096
      %v1098 = vpop.xlane.xlu0 %1097
      %v1099 = vsel %vm863, %v1078, -inf
      %1100 = vmax.xlane.f32.xlu0 %v1099
      %v1101 = vpop.xlane.xlu0 %1100
      %v1102 = vsel %vm863, %v1081, -inf
      %1103 = vmax.xlane.f32.xlu0 %v1102
      %v1104 = vpop.xlane.xlu0 %1103
      %v1105 = vsel %vm863, %v1083, -inf
      %1106 = vmax.xlane.f32.xlu0 %v1105
      %v1107 = vpop.xlane.xlu0 %1106
      %v1108 = vsel %vm863, %v1086, -inf
      %1109 = vmax.xlane.f32.xlu0 %v1108
      %v1110 = vpop.xlane.xlu0 %1109
      %v1111 = vsel %vm863, %v1088, -inf
      %1112 = vmax.xlane.f32.xlu0 %v1111
      %v1113 = vpop.xlane.xlu0 %1112
      %v1114 = vsub.f32 %v1071, %v1092
      %v1115 = vsub.f32 %v1073, %v1095
      %v1116 = vsub.f32 %v1076, %v1098
      %v1117 = vsub.f32 %v1078, %v1101
      %v1118 = vsub.f32 %v1081, %v1104
      %v1119 = vsub.f32 %v1083, %v1107
      %v1120 = vsub.f32 %v1086, %v1110
      %v1121 = vsub.f32 %v1088, %v1113
      %v1122 = vmul.f32 %v1114, 1.442695
      %v1123 = vpow.pop %v1122
      %v1124 = vmul.f32 %v1115, 1.442695
      %v1125 = vpow.pop %v1124
      %v1126 = vmul.f32 %v1116, 1.442695
      %v1127 = vpow.pop %v1126
      %v1128 = vmul.f32 %v1117, 1.442695
      %v1129 = vpow.pop %v1128
      %v1130 = vmul.f32 %v1118, 1.442695
      %v1131 = vpow.pop %v1130
      %v1132 = vmul.f32 %v1119, 1.442695
      %v1133 = vpow.pop %v1132
      %v1134 = vmul.f32 %v1120, 1.442695
      %v1135 = vpow.pop %v1134
      %v1136 = vmul.f32 %v1121, 1.442695
      %v1137 = vpow.pop %v1136
      %v1138 = vsel %vm863, %v1123, 0.0
      %1139 = vadd.xlane.f32.xlu0 %v1138
      %v1140 = vpop.xlane.xlu0 %1139
      %v1141 = vsel %vm863, %v1125, 0.0
      %1142 = vadd.xlane.f32.xlu0 %v1141
      %v1143 = vpop.xlane.xlu0 %1142
      %v1144 = vsel %vm863, %v1127, 0.0
      %1145 = vadd.xlane.f32.xlu0 %v1144
      %v1146 = vpop.xlane.xlu0 %1145
      %v1147 = vsel %vm863, %v1129, 0.0
      %1148 = vadd.xlane.f32.xlu0 %v1147
      %v1149 = vpop.xlane.xlu0 %1148
      %v1150 = vsel %vm863, %v1131, 0.0
      %1151 = vadd.xlane.f32.xlu0 %v1150
      %v1152 = vpop.xlane.xlu0 %1151
      %v1153 = vsel %vm863, %v1133, 0.0
      %1154 = vadd.xlane.f32.xlu0 %v1153
      %v1155 = vpop.xlane.xlu0 %1154
      %v1156 = vsel %vm863, %v1135, 0.0
      %1157 = vadd.xlane.f32.xlu0 %v1156
      %v1158 = vpop.xlane.xlu0 %1157
      %v1159 = vsel %vm863, %v1137, 0.0
      %1160 = vadd.xlane.f32.xlu0 %v1159
      %v1161 = vpop.xlane.xlu0 %1160
      %v1162 = vpack.c.bf16 %v1125, %v1123
      %v1163 = vpack.c.bf16 %v1129, %v1127
      %v1164 = vpack.c.bf16 %v1133, %v1131
      %v1165 = vpack.c.bf16 %v1137, %v1135
      %1166 = vrot.lane.b32.xlu0 %v798, 56
      %v1167 = vpop.permute.xlu0 %1166
      %1168 = vrot.lane.b32.xlu0 %v799, 56
      %v1169 = vpop.permute.xlu0 %1168
      %1170 = vrot.lane.b32.xlu0 %v800, 56
      %v1171 = vpop.permute.xlu0 %1170
      %1172 = vrot.lane.b32.xlu0 %v801, 56
      %v1173 = vpop.permute.xlu0 %1172
      %v1179 = vsel %vm863, %v1162, 0
      %v1182 = vsel %vm863, %v1163, 0
      %v1185 = vsel %vm863, %v1164, 0
      %v1188 = vsel %vm863, %v1165, 0
      %1190 = vmatpush.bf16.msra.mxu0 0
      %1191 = vmatpush.bf16.msra.mxu0 0
      %1192 = vmatpush.bf16.msra.mxu0 0
      %1193 = vmatpush.bf16.msra.mxu0 0
      %1194 = vmatpush.bf16.msra.mxu0 %v1173
      %1195 = vmatpush.bf16.msra.mxu0 %v1171
      %1196 = vmatpush.bf16.msra.mxu0 %v1169
      %1197 = vmatpush.bf16.msra.mxu0 %v1167
      %1198 = vmatmul.bf16.gmra.mxu0 %v1179
      %v1199 = vpop.f32.mrf.mxu0
      %v1200 = vadd.f32 0.0, %v1199
      %v1201 = vpop.f32.mrf.mxu0
      %v1202 = vadd.f32 0.0, %v1201
      %1203 = vmatmul.bf16.gmra.mxu0 %v1182
      %v1204 = vpop.f32.mrf.mxu0
      %v1205 = vadd.f32 0.0, %v1204
      %v1206 = vpop.f32.mrf.mxu0
      %v1207 = vadd.f32 0.0, %v1206
      %1208 = vmatmul.bf16.gmra.mxu0 %v1185
      %v1209 = vpop.f32.mrf.mxu0
      %v1210 = vadd.f32 0.0, %v1209
      %v1211 = vpop.f32.mrf.mxu0
      %v1212 = vadd.f32 0.0, %v1211
      %1213 = vmatmul.bf16.gmra.mxu0 %v1188
      %v1214 = vpop.f32.mrf.mxu0
      %v1215 = vadd.f32 0.0, %v1214
      %v1216 = vpop.f32.mrf.mxu0
      %v1217 = vadd.f32 0.0, %v1216
      %1218 = vdwg.mxu0
      %v1219 = vrcp.pop %v1140
      %v1220 = vrcp.pop %v1143
      %v1221 = vrcp.pop %v1146
      %v1222 = vrcp.pop %v1149
      %v1223 = vrcp.pop %v1152
      %v1224 = vrcp.pop %v1155
      %v1225 = vrcp.pop %v1158
      %v1226 = vrcp.pop %v1161
      %v1227 = vmul.f32 %v1200, %v1219
      %v1228 = vmul.f32 %v1202, %v1220
      %v1229 = vmul.f32 %v1205, %v1221
      %v1230 = vmul.f32 %v1207, %v1222
      %v1231 = vmul.f32 %v1210, %v1223
      %v1232 = vmul.f32 %v1212, %v1224
      %v1233 = vmul.f32 %v1215, %v1225
      %v1234 = vmul.f32 %v1217, %v1226
      %1243 = vrot.lane.b32.xlu0 %v1227, 8
      %v1244 = vpop.permute.xlu0 %1243
      %1245 = vrot.lane.b32.xlu0 %v1228, 8
      %v1246 = vpop.permute.xlu0 %1245
      %1247 = vrot.lane.b32.xlu0 %v1229, 8
      %v1248 = vpop.permute.xlu0 %1247
      %1249 = vrot.lane.b32.xlu0 %v1230, 8
      %v1250 = vpop.permute.xlu0 %1249
      %1251 = vrot.lane.b32.xlu0 %v1231, 8
      %v1252 = vpop.permute.xlu0 %1251
      %1253 = vrot.lane.b32.xlu0 %v1232, 8
      %v1254 = vpop.permute.xlu0 %1253
      %1255 = vrot.lane.b32.xlu0 %v1233, 8
      %v1256 = vpop.permute.xlu0 %1255
      %1257 = vrot.lane.b32.xlu0 %v1234, 8
      %v1258 = vpop.permute.xlu0 %1257
      %vm1267 = vcmask 130112
      %1268 = vst.msk [vmem:[#allocation2] sm:$0xff] %vm1267, %v1244
      %1269 = vst.msk [vmem:[#allocation2 + $0x8] sm:$0xff] %vm1267, %v1246
      %1270 = vst.msk [vmem:[#allocation2 + $0x10] sm:$0xff] %vm1267, %v1248
      %1271 = vst.msk [vmem:[#allocation2 + $0x18] sm:$0xff] %vm1267, %v1250
      %1272 = vst.msk [vmem:[#allocation2 + $0x20] sm:$0xff] %vm1267, %v1252
      %1273 = vst.msk [vmem:[#allocation2 + $0x28] sm:$0xff] %vm1267, %v1254
      %1274 = vst.msk [vmem:[#allocation2 + $0x30] sm:$0xff] %vm1267, %v1256
      %1275 = vst.msk [vmem:[#allocation2 + $0x38] sm:$0xff] %vm1267, %v1258
      %1276 = vrot.lane.b32.xlu0 %v778, 112
      %v1277 = vpop.permute.xlu0 %1276
      %1278 = vrot.lane.b32.xlu0 %v779, 112
      %v1279 = vpop.permute.xlu0 %1278
      %1280 = vrot.lane.b32.xlu0 %v780, 112
      %v1281 = vpop.permute.xlu0 %1280
      %1282 = vrot.lane.b32.xlu0 %v781, 112
      %v1283 = vpop.permute.xlu0 %1282
      %1284 = vrot.lane.b32.xlu0 %v798, 80
      %v1285 = vpop.permute.xlu0 %1284
      %1286 = vrot.lane.b32.xlu0 %v799, 80
      %v1287 = vpop.permute.xlu0 %1286
      %1288 = vrot.lane.b32.xlu0 %v800, 80
      %v1289 = vpop.permute.xlu0 %1288
      %1290 = vrot.lane.b32.xlu0 %v801, 80
      %v1291 = vpop.permute.xlu0 %1290
      %v1293 = vsel %vm622, %v1277, 0
      %v1296 = vsel %vm622, %v1279, 0
      %v1299 = vsel %vm622, %v1281, 0
      %v1302 = vsel %vm622, %v1283, 0
      %v1305 = vsel %vm622, %v1285, 0
      %v1308 = vsel %vm622, %v1287, 0
      %v1311 = vsel %vm622, %v1289, 0
      %v1314 = vsel %vm622, %v1291, 0
      %1316 = vmatpush.bf16.xpose.msra.mxu0 0
      %1317 = vmatpush.bf16.xpose.msra.mxu0 0
      %1318 = vmatpush.bf16.xpose.msra.mxu0 0
      %1319 = vmatpush.bf16.xpose.msra.mxu0 0
      %1320 = vmatpush.bf16.xpose.msra.mxu0 %v1314
      %1321 = vmatpush.bf16.xpose.msra.mxu0 %v1311
      %1322 = vmatpush.bf16.xpose.msra.mxu0 %v1308
      %1323 = vmatpush.bf16.xpose.msra.mxu0 %v1305
      %1324 = vmatmul.bf16.gmra.mxu0 %v1293
      %v1325 = vpop.f32.mrf.mxu0
      %v1326 = vadd.f32 0.0, %v1325
      %v1327 = vpop.f32.mrf.mxu0
      %v1328 = vadd.f32 0.0, %v1327
      %1329 = vmatmul.bf16.gmra.mxu0 %v1296
      %v1330 = vpop.f32.mrf.mxu0
      %v1331 = vadd.f32 0.0, %v1330
      %v1332 = vpop.f32.mrf.mxu0
      %v1333 = vadd.f32 0.0, %v1332
      %1334 = vmatmul.bf16.gmra.mxu0 %v1299
      %v1335 = vpop.f32.mrf.mxu0
      %v1336 = vadd.f32 0.0, %v1335
      %v1337 = vpop.f32.mrf.mxu0
      %v1338 = vadd.f32 0.0, %v1337
      %1339 = vmatmul.bf16.gmra.mxu0 %v1302
      %v1340 = vpop.f32.mrf.mxu0
      %v1341 = vadd.f32 0.0, %v1340
      %v1342 = vpop.f32.mrf.mxu0
      %v1343 = vadd.f32 0.0, %v1342
      %1344 = vdwg.mxu0
      %v1345 = vsel %vm863, %v1326, -inf
      %1346 = vmax.xlane.f32.xlu0 %v1345
      %v1347 = vpop.xlane.xlu0 %1346
      %v1348 = vsel %vm863, %v1328, -inf
      %1349 = vmax.xlane.f32.xlu0 %v1348
      %v1350 = vpop.xlane.xlu0 %1349
      %v1351 = vsel %vm863, %v1331, -inf
      %1352 = vmax.xlane.f32.xlu0 %v1351
      %v1353 = vpop.xlane.xlu0 %1352
      %v1354 = vsel %vm863, %v1333, -inf
      %1355 = vmax.xlane.f32.xlu0 %v1354
      %v1356 = vpop.xlane.xlu0 %1355
      %v1357 = vsel %vm863, %v1336, -inf
      %1358 = vmax.xlane.f32.xlu0 %v1357
      %v1359 = vpop.xlane.xlu0 %1358
      %v1360 = vsel %vm863, %v1338, -inf
      %1361 = vmax.xlane.f32.xlu0 %v1360
      %v1362 = vpop.xlane.xlu0 %1361
      %v1363 = vsel %vm863, %v1341, -inf
      %1364 = vmax.xlane.f32.xlu0 %v1363
      %v1365 = vpop.xlane.xlu0 %1364
      %v1366 = vsel %vm863, %v1343, -inf
      %1367 = vmax.xlane.f32.xlu0 %v1366
      %v1368 = vpop.xlane.xlu0 %1367
      %v1369 = vsub.f32 %v1326, %v1347
      %v1370 = vsub.f32 %v1328, %v1350
      %v1371 = vsub.f32 %v1331, %v1353
      %v1372 = vsub.f32 %v1333, %v1356
      %v1373 = vsub.f32 %v1336, %v1359
      %v1374 = vsub.f32 %v1338, %v1362
      %v1375 = vsub.f32 %v1341, %v1365
      %v1376 = vsub.f32 %v1343, %v1368
      %v1377 = vmul.f32 %v1369, 1.442695
      %v1378 = vpow.pop %v1377
      %v1379 = vmul.f32 %v1370, 1.442695
      %v1380 = vpow.pop %v1379
      %v1381 = vmul.f32 %v1371, 1.442695
      %v1382 = vpow.pop %v1381
      %v1383 = vmul.f32 %v1372, 1.442695
      %v1384 = vpow.pop %v1383
      %v1385 = vmul.f32 %v1373, 1.442695
      %v1386 = vpow.pop %v1385
      %v1387 = vmul.f32 %v1374, 1.442695
      %v1388 = vpow.pop %v1387
      %v1389 = vmul.f32 %v1375, 1.442695
      %v1390 = vpow.pop %v1389
      %v1391 = vmul.f32 %v1376, 1.442695
      %v1392 = vpow.pop %v1391
      %v1393 = vsel %vm863, %v1378, 0.0
      %1394 = vadd.xlane.f32.xlu0 %v1393
      %v1395 = vpop.xlane.xlu0 %1394
      %v1396 = vsel %vm863, %v1380, 0.0
      %1397 = vadd.xlane.f32.xlu0 %v1396
      %v1398 = vpop.xlane.xlu0 %1397
      %v1399 = vsel %vm863, %v1382, 0.0
      %1400 = vadd.xlane.f32.xlu0 %v1399
      %v1401 = vpop.xlane.xlu0 %1400
      %v1402 = vsel %vm863, %v1384, 0.0
      %1403 = vadd.xlane.f32.xlu0 %v1402
      %v1404 = vpop.xlane.xlu0 %1403
      %v1405 = vsel %vm863, %v1386, 0.0
      %1406 = vadd.xlane.f32.xlu0 %v1405
      %v1407 = vpop.xlane.xlu0 %1406
      %v1408 = vsel %vm863, %v1388, 0.0
      %1409 = vadd.xlane.f32.xlu0 %v1408
      %v1410 = vpop.xlane.xlu0 %1409
      %v1411 = vsel %vm863, %v1390, 0.0
      %1412 = vadd.xlane.f32.xlu0 %v1411
      %v1413 = vpop.xlane.xlu0 %1412
      %v1414 = vsel %vm863, %v1392, 0.0
      %1415 = vadd.xlane.f32.xlu0 %v1414
      %v1416 = vpop.xlane.xlu0 %1415
      %v1417 = vpack.c.bf16 %v1380, %v1378
      %v1418 = vpack.c.bf16 %v1384, %v1382
      %v1419 = vpack.c.bf16 %v1388, %v1386
      %v1420 = vpack.c.bf16 %v1392, %v1390
      %1421 = vrot.lane.b32.xlu0 %v798, 48
      %v1422 = vpop.permute.xlu0 %1421
      %1423 = vrot.lane.b32.xlu0 %v799, 48
      %v1424 = vpop.permute.xlu0 %1423
      %1425 = vrot.lane.b32.xlu0 %v800, 48
      %v1426 = vpop.permute.xlu0 %1425
      %1427 = vrot.lane.b32.xlu0 %v801, 48
      %v1428 = vpop.permute.xlu0 %1427
      %v1434 = vsel %vm863, %v1417, 0
      %v1437 = vsel %vm863, %v1418, 0
      %v1440 = vsel %vm863, %v1419, 0
      %v1443 = vsel %vm863, %v1420, 0
      %1445 = vmatpush.bf16.msra.mxu0 0
      %1446 = vmatpush.bf16.msra.mxu0 0
      %1447 = vmatpush.bf16.msra.mxu0 0
      %1448 = vmatpush.bf16.msra.mxu0 0
      %1449 = vmatpush.bf16.msra.mxu0 %v1428
      %1450 = vmatpush.bf16.msra.mxu0 %v1426
      %1451 = vmatpush.bf16.msra.mxu0 %v1424
      %1452 = vmatpush.bf16.msra.mxu0 %v1422
      %1453 = vmatmul.bf16.gmra.mxu0 %v1434
      %v1454 = vpop.f32.mrf.mxu0
      %v1455 = vadd.f32 0.0, %v1454
      %v1456 = vpop.f32.mrf.mxu0
      %v1457 = vadd.f32 0.0, %v1456
      %1458 = vmatmul.bf16.gmra.mxu0 %v1437
      %v1459 = vpop.f32.mrf.mxu0
      %v1460 = vadd.f32 0.0, %v1459
      %v1461 = vpop.f32.mrf.mxu0
      %v1462 = vadd.f32 0.0, %v1461
      %1463 = vmatmul.bf16.gmra.mxu0 %v1440
      %v1464 = vpop.f32.mrf.mxu0
      %v1465 = vadd.f32 0.0, %v1464
      %v1466 = vpop.f32.mrf.mxu0
      %v1467 = vadd.f32 0.0, %v1466
      %1468 = vmatmul.bf16.gmra.mxu0 %v1443
      %v1469 = vpop.f32.mrf.mxu0
      %v1470 = vadd.f32 0.0, %v1469
      %v1471 = vpop.f32.mrf.mxu0
      %v1472 = vadd.f32 0.0, %v1471
      %1473 = vdwg.mxu0
      %v1474 = vrcp.pop %v1395
      %v1475 = vrcp.pop %v1398
      %v1476 = vrcp.pop %v1401
      %v1477 = vrcp.pop %v1404
      %v1478 = vrcp.pop %v1407
      %v1479 = vrcp.pop %v1410
      %v1480 = vrcp.pop %v1413
      %v1481 = vrcp.pop %v1416
      %v1482 = vmul.f32 %v1455, %v1474
      %v1483 = vmul.f32 %v1457, %v1475
      %v1484 = vmul.f32 %v1460, %v1476
      %v1485 = vmul.f32 %v1462, %v1477
      %v1486 = vmul.f32 %v1465, %v1478
      %v1487 = vmul.f32 %v1467, %v1479
      %v1488 = vmul.f32 %v1470, %v1480
      %v1489 = vmul.f32 %v1472, %v1481
      %1498 = vrot.lane.b32.xlu0 %v1482, 16
      %v1499 = vpop.permute.xlu0 %1498
      %1500 = vrot.lane.b32.xlu0 %v1483, 16
      %v1501 = vpop.permute.xlu0 %1500
      %1502 = vrot.lane.b32.xlu0 %v1484, 16
      %v1503 = vpop.permute.xlu0 %1502
      %1504 = vrot.lane.b32.xlu0 %v1485, 16
      %v1505 = vpop.permute.xlu0 %1504
      %1506 = vrot.lane.b32.xlu0 %v1486, 16
      %v1507 = vpop.permute.xlu0 %1506
      %1508 = vrot.lane.b32.xlu0 %v1487, 16
      %v1509 = vpop.permute.xlu0 %1508
      %1510 = vrot.lane.b32.xlu0 %v1488, 16
      %v1511 = vpop.permute.xlu0 %1510
      %1512 = vrot.lane.b32.xlu0 %v1489, 16
      %v1513 = vpop.permute.xlu0 %1512
      %vm1522 = vcmask 195712
      %1523 = vst.msk [vmem:[#allocation2] sm:$0xff] %vm1522, %v1499
      %1524 = vst.msk [vmem:[#allocation2 + $0x8] sm:$0xff] %vm1522, %v1501
      %1525 = vst.msk [vmem:[#allocation2 + $0x10] sm:$0xff] %vm1522, %v1503
      %1526 = vst.msk [vmem:[#allocation2 + $0x18] sm:$0xff] %vm1522, %v1505
      %1527 = vst.msk [vmem:[#allocation2 + $0x20] sm:$0xff] %vm1522, %v1507
      %1528 = vst.msk [vmem:[#allocation2 + $0x28] sm:$0xff] %vm1522, %v1509
      %1529 = vst.msk [vmem:[#allocation2 + $0x30] sm:$0xff] %vm1522, %v1511
      %1530 = vst.msk [vmem:[#allocation2 + $0x38] sm:$0xff] %vm1522, %v1513
      %1531 = vrot.lane.b32.xlu0 %v778, 104
      %v1532 = vpop.permute.xlu0 %1531
      %1533 = vrot.lane.b32.xlu0 %v779, 104
      %v1534 = vpop.permute.xlu0 %1533
      %1535 = vrot.lane.b32.xlu0 %v780, 104
      %v1536 = vpop.permute.xlu0 %1535
      %1537 = vrot.lane.b32.xlu0 %v781, 104
      %v1538 = vpop.permute.xlu0 %1537
      %1539 = vrot.lane.b32.xlu0 %v798, 72
      %v1540 = vpop.permute.xlu0 %1539
      %1541 = vrot.lane.b32.xlu0 %v799, 72
      %v1542 = vpop.permute.xlu0 %1541
      %1543 = vrot.lane.b32.xlu0 %v800, 72
      %v1544 = vpop.permute.xlu0 %1543
      %1545 = vrot.lane.b32.xlu0 %v801, 72
      %v1546 = vpop.permute.xlu0 %1545
      %v1548 = vsel %vm622, %v1532, 0
      %v1551 = vsel %vm622, %v1534, 0
      %v1554 = vsel %vm622, %v1536, 0
      %v1557 = vsel %vm622, %v1538, 0
      %v1560 = vsel %vm622, %v1540, 0
      %v1563 = vsel %vm622, %v1542, 0
      %v1566 = vsel %vm622, %v1544, 0
      %v1569 = vsel %vm622, %v1546, 0
      %1571 = vmatpush.bf16.xpose.msra.mxu0 0
      %1572 = vmatpush.bf16.xpose.msra.mxu0 0
      %1573 = vmatpush.bf16.xpose.msra.mxu0 0
      %1574 = vmatpush.bf16.xpose.msra.mxu0 0
      %1575 = vmatpush.bf16.xpose.msra.mxu0 %v1569
      %1576 = vmatpush.bf16.xpose.msra.mxu0 %v1566
      %1577 = vmatpush.bf16.xpose.msra.mxu0 %v1563
      %1578 = vmatpush.bf16.xpose.msra.mxu0 %v1560
      %1579 = vmatmul.bf16.gmra.mxu0 %v1548
      %v1580 = vpop.f32.mrf.mxu0
      %v1581 = vadd.f32 0.0, %v1580
      %v1582 = vpop.f32.mrf.mxu0
      %v1583 = vadd.f32 0.0, %v1582
      %1584 = vmatmul.bf16.gmra.mxu0 %v1551
      %v1585 = vpop.f32.mrf.mxu0
      %v1586 = vadd.f32 0.0, %v1585
      %v1587 = vpop.f32.mrf.mxu0
      %v1588 = vadd.f32 0.0, %v1587
      %1589 = vmatmul.bf16.gmra.mxu0 %v1554
      %v1590 = vpop.f32.mrf.mxu0
      %v1591 = vadd.f32 0.0, %v1590
      %v1592 = vpop.f32.mrf.mxu0
      %v1593 = vadd.f32 0.0, %v1592
      %1594 = vmatmul.bf16.gmra.mxu0 %v1557
      %v1595 = vpop.f32.mrf.mxu0
      %v1596 = vadd.f32 0.0, %v1595
      %v1597 = vpop.f32.mrf.mxu0
      %v1598 = vadd.f32 0.0, %v1597
      %1599 = vdwg.mxu0
      %v1600 = vsel %vm863, %v1581, -inf
      %1601 = vmax.xlane.f32.xlu0 %v1600
      %v1602 = vpop.xlane.xlu0 %1601
      %v1603 = vsel %vm863, %v1583, -inf
      %1604 = vmax.xlane.f32.xlu0 %v1603
      %v1605 = vpop.xlane.xlu0 %1604
      %v1606 = vsel %vm863, %v1586, -inf
      %1607 = vmax.xlane.f32.xlu0 %v1606
      %v1608 = vpop.xlane.xlu0 %1607
      %v1609 = vsel %vm863, %v1588, -inf
      %1610 = vmax.xlane.f32.xlu0 %v1609
      %v1611 = vpop.xlane.xlu0 %1610
      %v1612 = vsel %vm863, %v1591, -inf
      %1613 = vmax.xlane.f32.xlu0 %v1612
      %v1614 = vpop.xlane.xlu0 %1613
      %v1615 = vsel %vm863, %v1593, -inf
      %1616 = vmax.xlane.f32.xlu0 %v1615
      %v1617 = vpop.xlane.xlu0 %1616
      %v1618 = vsel %vm863, %v1596, -inf
      %1619 = vmax.xlane.f32.xlu0 %v1618
      %v1620 = vpop.xlane.xlu0 %1619
      %v1621 = vsel %vm863, %v1598, -inf
      %1622 = vmax.xlane.f32.xlu0 %v1621
      %v1623 = vpop.xlane.xlu0 %1622
      %v1624 = vsub.f32 %v1581, %v1602
      %v1625 = vsub.f32 %v1583, %v1605
      %v1626 = vsub.f32 %v1586, %v1608
      %v1627 = vsub.f32 %v1588, %v1611
      %v1628 = vsub.f32 %v1591, %v1614
      %v1629 = vsub.f32 %v1593, %v1617
      %v1630 = vsub.f32 %v1596, %v1620
      %v1631 = vsub.f32 %v1598, %v1623
      %v1632 = vmul.f32 %v1624, 1.442695
      %v1633 = vpow.pop %v1632
      %v1634 = vmul.f32 %v1625, 1.442695
      %v1635 = vpow.pop %v1634
      %v1636 = vmul.f32 %v1626, 1.442695
      %v1637 = vpow.pop %v1636
      %v1638 = vmul.f32 %v1627, 1.442695
      %v1639 = vpow.pop %v1638
      %v1640 = vmul.f32 %v1628, 1.442695
      %v1641 = vpow.pop %v1640
      %v1642 = vmul.f32 %v1629, 1.442695
      %v1643 = vpow.pop %v1642
      %v1644 = vmul.f32 %v1630, 1.442695
      %v1645 = vpow.pop %v1644
      %v1646 = vmul.f32 %v1631, 1.442695
      %v1647 = vpow.pop %v1646
      %v1648 = vsel %vm863, %v1633, 0.0
      %1649 = vadd.xlane.f32.xlu0 %v1648
      %v1650 = vpop.xlane.xlu0 %1649
      %v1651 = vsel %vm863, %v1635, 0.0
      %1652 = vadd.xlane.f32.xlu0 %v1651
      %v1653 = vpop.xlane.xlu0 %1652
      %v1654 = vsel %vm863, %v1637, 0.0
      %1655 = vadd.xlane.f32.xlu0 %v1654
      %v1656 = vpop.xlane.xlu0 %1655
      %v1657 = vsel %vm863, %v1639, 0.0
      %1658 = vadd.xlane.f32.xlu0 %v1657
      %v1659 = vpop.xlane.xlu0 %1658
      %v1660 = vsel %vm863, %v1641, 0.0
      %1661 = vadd.xlane.f32.xlu0 %v1660
      %v1662 = vpop.xlane.xlu0 %1661
      %v1663 = vsel %vm863, %v1643, 0.0
      %1664 = vadd.xlane.f32.xlu0 %v1663
      %v1665 = vpop.xlane.xlu0 %1664
      %v1666 = vsel %vm863, %v1645, 0.0
      %1667 = vadd.xlane.f32.xlu0 %v1666
      %v1668 = vpop.xlane.xlu0 %1667
      %v1669 = vsel %vm863, %v1647, 0.0
      %1670 = vadd.xlane.f32.xlu0 %v1669
      %v1671 = vpop.xlane.xlu0 %1670
      %v1672 = vpack.c.bf16 %v1635, %v1633
      %v1673 = vpack.c.bf16 %v1639, %v1637
      %v1674 = vpack.c.bf16 %v1643, %v1641
      %v1675 = vpack.c.bf16 %v1647, %v1645
      %1676 = vrot.lane.b32.xlu0 %v798, 40
      %v1677 = vpop.permute.xlu0 %1676
      %1678 = vrot.lane.b32.xlu0 %v799, 40
      %v1679 = vpop.permute.xlu0 %1678
      %1680 = vrot.lane.b32.xlu0 %v800, 40
      %v1681 = vpop.permute.xlu0 %1680
      %1682 = vrot.lane.b32.xlu0 %v801, 40
      %v1683 = vpop.permute.xlu0 %1682
      %v1689 = vsel %vm863, %v1672, 0
      %v1692 = vsel %vm863, %v1673, 0
      %v1695 = vsel %vm863, %v1674, 0
      %v1698 = vsel %vm863, %v1675, 0
      %1700 = vmatpush.bf16.msra.mxu0 0
      %1701 = vmatpush.bf16.msra.mxu0 0
      %1702 = vmatpush.bf16.msra.mxu0 0
      %1703 = vmatpush.bf16.msra.mxu0 0
      %1704 = vmatpush.bf16.msra.mxu0 %v1683
      %1705 = vmatpush.bf16.msra.mxu0 %v1681
      %1706 = vmatpush.bf16.msra.mxu0 %v1679
      %1707 = vmatpush.bf16.msra.mxu0 %v1677
      %1708 = vmatmul.bf16.gmra.mxu0 %v1689
      %v1709 = vpop.f32.mrf.mxu0
      %v1710 = vadd.f32 0.0, %v1709
      %v1711 = vpop.f32.mrf.mxu0
      %v1712 = vadd.f32 0.0, %v1711
      %1713 = vmatmul.bf16.gmra.mxu0 %v1692
      %v1714 = vpop.f32.mrf.mxu0
      %v1715 = vadd.f32 0.0, %v1714
      %v1716 = vpop.f32.mrf.mxu0
      %v1717 = vadd.f32 0.0, %v1716
      %1718 = vmatmul.bf16.gmra.mxu0 %v1695
      %v1719 = vpop.f32.mrf.mxu0
      %v1720 = vadd.f32 0.0, %v1719
      %v1721 = vpop.f32.mrf.mxu0
      %v1722 = vadd.f32 0.0, %v1721
      %1723 = vmatmul.bf16.gmra.mxu0 %v1698
      %v1724 = vpop.f32.mrf.mxu0
      %v1725 = vadd.f32 0.0, %v1724
      %v1726 = vpop.f32.mrf.mxu0
      %v1727 = vadd.f32 0.0, %v1726
      %1728 = vdwg.mxu0
      %v1729 = vrcp.pop %v1650
      %v1730 = vrcp.pop %v1653
      %v1731 = vrcp.pop %v1656
      %v1732 = vrcp.pop %v1659
      %v1733 = vrcp.pop %v1662
      %v1734 = vrcp.pop %v1665
      %v1735 = vrcp.pop %v1668
      %v1736 = vrcp.pop %v1671
      %v1737 = vmul.f32 %v1710, %v1729
      %v1738 = vmul.f32 %v1712, %v1730
      %v1739 = vmul.f32 %v1715, %v1731
      %v1740 = vmul.f32 %v1717, %v1732
      %v1741 = vmul.f32 %v1720, %v1733
      %v1742 = vmul.f32 %v1722, %v1734
      %v1743 = vmul.f32 %v1725, %v1735
      %v1744 = vmul.f32 %v1727, %v1736
      %1753 = vrot.lane.b32.xlu0 %v1737, 24
      %v1754 = vpop.permute.xlu0 %1753
      %1755 = vrot.lane.b32.xlu0 %v1738, 24
      %v1756 = vpop.permute.xlu0 %1755
      %1757 = vrot.lane.b32.xlu0 %v1739, 24
      %v1758 = vpop.permute.xlu0 %1757
      %1759 = vrot.lane.b32.xlu0 %v1740, 24
      %v1760 = vpop.permute.xlu0 %1759
      %1761 = vrot.lane.b32.xlu0 %v1741, 24
      %v1762 = vpop.permute.xlu0 %1761
      %1763 = vrot.lane.b32.xlu0 %v1742, 24
      %v1764 = vpop.permute.xlu0 %1763
      %1765 = vrot.lane.b32.xlu0 %v1743, 24
      %v1766 = vpop.permute.xlu0 %1765
      %1767 = vrot.lane.b32.xlu0 %v1744, 24
      %v1768 = vpop.permute.xlu0 %1767
      %vm1777 = vcmask 261312
      %1778 = vst.msk [vmem:[#allocation2] sm:$0xff] %vm1777, %v1754
      %1779 = vst.msk [vmem:[#allocation2 + $0x8] sm:$0xff] %vm1777, %v1756
      %1780 = vst.msk [vmem:[#allocation2 + $0x10] sm:$0xff] %vm1777, %v1758
      %1781 = vst.msk [vmem:[#allocation2 + $0x18] sm:$0xff] %vm1777, %v1760
      %1782 = vst.msk [vmem:[#allocation2 + $0x20] sm:$0xff] %vm1777, %v1762
      %1783 = vst.msk [vmem:[#allocation2 + $0x28] sm:$0xff] %vm1777, %v1764
      %1784 = vst.msk [vmem:[#allocation2 + $0x30] sm:$0xff] %vm1777, %v1766
      %1785 = vst.msk [vmem:[#allocation2 + $0x38] sm:$0xff] %vm1777, %v1768
      %v1786 = vld [vmem:[#allocation2] sm:$0xff]
      %v1787 = vld [vmem:[#allocation2 + $0x8] sm:$0xff]
      %v1788 = vld [vmem:[#allocation2 + $0x10] sm:$0xff]
      %v1789 = vld [vmem:[#allocation2 + $0x18] sm:$0xff]
      %v1790 = vld [vmem:[#allocation2 + $0x20] sm:$0xff]
      %v1791 = vld [vmem:[#allocation2 + $0x28] sm:$0xff]
      %v1792 = vld [vmem:[#allocation2 + $0x30] sm:$0xff]
      %v1793 = vld [vmem:[#allocation2 + $0x38] sm:$0xff]
      %v1794 = vpack.c.bf16 %v1787, %v1786
      %v1795 = vpack.c.bf16 %v1789, %v1788
      %v1796 = vpack.c.bf16 %v1791, %v1790
      %v1797 = vpack.c.bf16 %v1793, %v1792
      %v1798 = vld [vmem:[%s7] sm:$0xf]
      %v1799 = vld [vmem:[%s7 + $0x4] sm:$0xf]
      %v1800 = vld [vmem:[%s7 + $0x8] sm:$0xf]
      %v1801 = vld [vmem:[%s7 + $0xc] sm:$0xf]
      %v1802 = vld [vmem:[%s8] sm:$0x1]
      %v1804 = vperm.slane %v1802, 0
      %v1810 = vunpack.c.l.b16 %v1798
      %v1811 = vunpack.c.l.b16 %v1799
      %v1812 = vunpack.c.l.b16 %v1800
      %v1813 = vunpack.c.l.b16 %v1801
      %v1814 = vpack.c.b16 %v1811, %v1810
      %v1815 = vpack.c.b16 %v1813, %v1812
      %v1819 = vsel %vm342, %v1794, 0
      %v1822 = vsel %vm342, %v1795, 0
      %v1825 = vsel %vm342, %v1796, 0
      %v1828 = vsel %vm342, %v1797, 0
      %1830 = vmatpush.bf16.msra.mxu0 0
      %1831 = vmatpush.bf16.msra.mxu0 0
      %1832 = vmatpush.bf16.msra.mxu0 0
      %1833 = vmatpush.bf16.msra.mxu0 0
      %1834 = vmatpush.bf16.msra.mxu0 0
      %1835 = vmatpush.bf16.msra.mxu0 0
      %1836 = vmatpush.bf16.msra.mxu0 %v1815
      %1837 = vmatpush.bf16.msra.mxu0 %v1814
      %1838 = vmatmul.bf16.gmra.mxu0 %v1819
      %v1839 = vpop.f32.mrf.mxu0
      %v1840 = vadd.f32 %v1804, %v1839
      %v1841 = vpop.f32.mrf.mxu0
      %v1842 = vadd.f32 %v1804, %v1841
      %1843 = vmatmul.bf16.gmra.mxu0 %v1822
      %v1844 = vpop.f32.mrf.mxu0
      %v1845 = vadd.f32 %v1804, %v1844
      %v1846 = vpop.f32.mrf.mxu0
      %v1847 = vadd.f32 %v1804, %v1846
      %1848 = vmatmul.bf16.gmra.mxu0 %v1825
      %v1849 = vpop.f32.mrf.mxu0
      %v1850 = vadd.f32 %v1804, %v1849
      %v1851 = vpop.f32.mrf.mxu0
      %v1852 = vadd.f32 %v1804, %v1851
      %1853 = vmatmul.bf16.gmra.mxu0 %v1828
      %v1854 = vpop.f32.mrf.mxu0
      %v1855 = vadd.f32 %v1804, %v1854
      %v1856 = vpop.f32.mrf.mxu0
      %v1857 = vadd.f32 %v1804, %v1856
      %1858 = vdwg.mxu0
      %v1859 = vadd.f32 %v1840, %v334
      %v1860 = vadd.f32 %v1842, %v335
      %v1861 = vadd.f32 %v1845, %v336
      %v1862 = vadd.f32 %v1847, %v337
      %v1863 = vadd.f32 %v1850, %v338
      %v1864 = vadd.f32 %v1852, %v339
      %v1865 = vadd.f32 %v1855, %v340
      %v1866 = vadd.f32 %v1857, %v341
      %1867 = vst.msk [vmem:[%s332] sm:$0xff] %vm342, %v1859
      %1868 = vst.msk [vmem:[%s332 + $0x8] sm:$0xff] %vm342, %v1860
      %1869 = vst.msk [vmem:[%s332 + $0x10] sm:$0xff] %vm342, %v1861
      %1870 = vst.msk [vmem:[%s332 + $0x18] sm:$0xff] %vm342, %v1862
      %1871 = vst.msk [vmem:[%s332 + $0x20] sm:$0xff] %vm342, %v1863
      %1872 = vst.msk [vmem:[%s332 + $0x28] sm:$0xff] %vm342, %v1864
      %1873 = vst.msk [vmem:[%s332 + $0x30] sm:$0xff] %vm342, %v1865
      %1874 = vst.msk [vmem:[%s332 + $0x38] sm:$0xff] %vm342, %v1866
      %p1875 = scmp.lt.s32.totalorder %s20, 1
      %s1876 = scalar_select %p1875, %s20, 1
      %s1877 = smul.addr %s1876, 8
      %s1878 = smul.addr %s1877, 8
      %s1879 = scalar_lea.vmem %s9, %s1878
      // Predicated region
      $region57: #{run.4} parent=55 // pred_check
        %p1880 = pneg %p232
      $region58: #{run.4} parent=55 // pred_check_branch
        %1882 = sbr.rel (%p1880) target = $region60
      $region59: #{run.4} parent=55 // pred_region
        _
      $region60: #{run.4} parent=55 // pred_fallthru
        _
    $region56: #{run.4} parent=5 // pred_fallthru
      _
    %p1883 = scmp.le.s32.totalorder 2, %s15
    // Predicated region
    $region61: #{run.4} parent=5 // pred_check
      %p1884 = pneg %p1883
    $region62: #{run.4} parent=5 // pred_check_branch
      %1886 = sbr.rel (%p1884) target = $region64
    $region63: #{run.4} parent=5 // pred_region
      %s1887 = ssub.s32 %s15, 2
      // Predicated region
      $region65: #{run.4} parent=63 // pred_check
        %p1888 = pneg %p238
      $region66: #{run.4} parent=63 // pred_check_branch
        %1890 = sbr.rel (%p1888) target = $region68
      $region67: #{run.4} parent=63 // pred_region
        %p1891 = scmp.lt.s32.totalorder %s21, 1
        %s1892 = scalar_select %p1891, %s21, 1
        %s1893 = smul.addr %s1892, 8
        %s1894 = smul.addr %s1893, 8
        %s1895 = scalar_lea.vmem %s9, %s1894
      $region68: #{run.4} parent=63 // pred_fallthru
        _
    $region64: #{run.4} parent=5 // pred_fallthru
      _
  $region6: #{run.4} parent=0 // loop_footer
    %s19 = sadd.s32 1, %s15
  $region7: #{run.4} parent=0 // loop_footer_branch
    %14 = sbr.rel target = $region3
  $region8: #{run.4} parent=0 // loop_exit
    _

// kernel: run.5
$region0: #{run.5}
  #allocation0 [shape = 'u32[]', space=smem, size = 0x4, offset = 0x4, fixed_abs, tag = 'smem constant byte address 0x4 - core index']
  #allocation1 [shape = 'u32[72,128]{1,0:T(1,128)}', space=vmem, size = 0x9000, scoped, tag = 'internal scratch']
  #allocation2 [shape = 'bf16[128,32]{1,0:T(8,128)(2,1)}', space=vmem, size = 0x8000, scoped, tag = 'scratch operand']
  #allocation3 [shape = 'f32[128,32]{1,0:T(8,128)}', space=vmem, size = 0x10000, scoped, tag = 'scratch operand']
  %s0 = inlined_call_operand.vmem [shape: f32[128,32], index: 0, kind: input, shape index: {}]
  %s1 = inlined_call_operand.vmem [shape: f32[1,32], index: 1, kind: input, shape index: {}]
  %s2 = inlined_call_operand.vmem [shape: f32[1,32], index: 2, kind: input, shape index: {}]
  %s3 = inlined_call_operand.vmem [shape: bf16[32,128], index: 3, kind: input, shape index: {}]
  %s4 = inlined_call_operand.vmem [shape: f32[1,128], index: 4, kind: input, shape index: {}]
  %s5 = inlined_call_operand.vmem [shape: bf16[128,32], index: 5, kind: input, shape index: {}]
  %s6 = inlined_call_operand.vmem [shape: f32[1,32], index: 6, kind: input, shape index: {}]
  %s7 = inlined_call_operand.vmem [shape: f32[128,32], index: 7, kind: output, shape index: {}]
  %s8 = sld [smem:[#allocation0]]
  $region46: #{run.5} parent=0
    _
  %s10 = ssub.s32 1, %s8
  %s11 = scalar_select 0, %s10, %s8
  // Predicated region
  $region2: #{run.5} parent=0 // pred_check
    _
  $region3: #{run.5} parent=0 // pred_check_branch
    %13 = sbr.rel (0) target = $region5
  $region4: #{run.5} parent=0 // pred_region
    _
  $region5: #{run.5} parent=0 // pred_fallthru
    _
  // Predicated region
  $region6: #{run.5} parent=0 // pred_check
    _
  $region7: #{run.5} parent=0 // pred_check_branch
    %15 = sbr.rel (0) target = $region9
  $region8: #{run.5} parent=0 // pred_region
    _
  $region9: #{run.5} parent=0 // pred_fallthru
    _
  // Predicated region
  $region10: #{run.5} parent=0 // pred_check
    _
  $region11: #{run.5} parent=0 // pred_check_branch
    %17 = sbr.rel (0) target = $region13
  $region12: #{run.5} parent=0 // pred_region
    _
  $region13: #{run.5} parent=0 // pred_fallthru
    _
  // Predicated region
  $region14: #{run.5} parent=0 // pred_check
    _
  $region15: #{run.5} parent=0 // pred_check_branch
    %19 = sbr.rel (0) target = $region17
  $region16: #{run.5} parent=0 // pred_region
    _
  $region17: #{run.5} parent=0 // pred_fallthru
    _
  // Predicated region
  $region18: #{run.5} parent=0 // pred_check
    _
  $region19: #{run.5} parent=0 // pred_check_branch
    %21 = sbr.rel (0) target = $region21
  $region20: #{run.5} parent=0 // pred_region
    _
  $region21: #{run.5} parent=0 // pred_fallthru
    _
  // Predicated region
  $region22: #{run.5} parent=0 // pred_check
    _
  $region23: #{run.5} parent=0 // pred_check_branch
    %23 = sbr.rel (0) target = $region25
  $region24: #{run.5} parent=0 // pred_region
    _
  $region25: #{run.5} parent=0 // pred_fallthru
    _
  // Predicated region
  $region26: #{run.5} parent=0 // pred_check
    _
  $region27: #{run.5} parent=0 // pred_check_branch
    %25 = sbr.rel (0) target = $region29
  $region28: #{run.5} parent=0 // pred_region
    _
  $region29: #{run.5} parent=0 // pred_fallthru
    _
  %p27 = scmp.eq.s32.totalorder 0, 0
  // Predicated region
  $region30: #{run.5} parent=0 // pred_check
    %p28 = pneg %p27
  $region31: #{run.5} parent=0 // pred_check_branch
    %30 = sbr.rel (%p28) target = $region33
  $region32: #{run.5} parent=0 // pred_region
    %v31 = vld [vmem:[%s0] sm:$0xff]
    %v32 = vld [vmem:[%s0 + $0x8] sm:$0xff]
    %v33 = vld [vmem:[%s0 + $0x10] sm:$0xff]
    %v34 = vld [vmem:[%s0 + $0x18] sm:$0xff]
    %v35 = vld [vmem:[%s0 + $0x20] sm:$0xff]
    %v36 = vld [vmem:[%s0 + $0x28] sm:$0xff]
    %v37 = vld [vmem:[%s0 + $0x30] sm:$0xff]
    %v38 = vld [vmem:[%s0 + $0x38] sm:$0xff]
    %v39 = vld [vmem:[%s0 + $0x40] sm:$0xff]
    %v40 = vld [vmem:[%s0 + $0x48] sm:$0xff]
    %v41 = vld [vmem:[%s0 + $0x50] sm:$0xff]
    %v42 = vld [vmem:[%s0 + $0x58] sm:$0xff]
    %v43 = vld [vmem:[%s0 + $0x60] sm:$0xff]
    %v44 = vld [vmem:[%s0 + $0x68] sm:$0xff]
    %v45 = vld [vmem:[%s0 + $0x70] sm:$0xff]
    %v46 = vld [vmem:[%s0 + $0x78] sm:$0xff]
    %vm47 = vcmask 261120
    %v48 = vsel %vm47, %v31, 0.0
    %49 = vadd.xlane.f32.xlu0 %v48
    %v50 = vpop.xlane.xlu0 %49
    %v51 = vsel %vm47, %v32, 0.0
    %52 = vadd.xlane.f32.xlu0 %v51
    %v53 = vpop.xlane.xlu0 %52
    %v54 = vsel %vm47, %v33, 0.0
    %55 = vadd.xlane.f32.xlu0 %v54
    %v56 = vpop.xlane.xlu0 %55
    %v57 = vsel %vm47, %v34, 0.0
    %58 = vadd.xlane.f32.xlu0 %v57
    %v59 = vpop.xlane.xlu0 %58
    %v60 = vsel %vm47, %v35, 0.0
    %61 = vadd.xlane.f32.xlu0 %v60
    %v62 = vpop.xlane.xlu0 %61
    %v63 = vsel %vm47, %v36, 0.0
    %64 = vadd.xlane.f32.xlu0 %v63
    %v65 = vpop.xlane.xlu0 %64
    %v66 = vsel %vm47, %v37, 0.0
    %67 = vadd.xlane.f32.xlu0 %v66
    %v68 = vpop.xlane.xlu0 %67
    %v69 = vsel %vm47, %v38, 0.0
    %70 = vadd.xlane.f32.xlu0 %v69
    %v71 = vpop.xlane.xlu0 %70
    %v72 = vsel %vm47, %v39, 0.0
    %73 = vadd.xlane.f32.xlu0 %v72
    %v74 = vpop.xlane.xlu0 %73
    %v75 = vsel %vm47, %v40, 0.0
    %76 = vadd.xlane.f32.xlu0 %v75
    %v77 = vpop.xlane.xlu0 %76
    %v78 = vsel %vm47, %v41, 0.0
    %79 = vadd.xlane.f32.xlu0 %v78
    %v80 = vpop.xlane.xlu0 %79
    %v81 = vsel %vm47, %v42, 0.0
    %82 = vadd.xlane.f32.xlu0 %v81
    %v83 = vpop.xlane.xlu0 %82
    %v84 = vsel %vm47, %v43, 0.0
    %85 = vadd.xlane.f32.xlu0 %v84
    %v86 = vpop.xlane.xlu0 %85
    %v87 = vsel %vm47, %v44, 0.0
    %88 = vadd.xlane.f32.xlu0 %v87
    %v89 = vpop.xlane.xlu0 %88
    %v90 = vsel %vm47, %v45, 0.0
    %91 = vadd.xlane.f32.xlu0 %v90
    %v92 = vpop.xlane.xlu0 %91
    %v93 = vsel %vm47, %v46, 0.0
    %94 = vadd.xlane.f32.xlu0 %v93
    %v95 = vpop.xlane.xlu0 %94
    %v96 = vrcp.pop 32.0
    %v97 = vmul.f32 32.0, %v96
    %v98 = vsub.f32 1.0, %v97
    %v99 = vmul.f32 %v96, %v98
    %v100 = vadd.f32 %v96, %v99
    %vm101 = vweird.f32 %v96
    %v102 = vsel %vm101, %v96, %v100
    %v103 = vmul.f32 %v50, %v102
    %v104 = vmul.f32 %v53, %v102
    %v105 = vmul.f32 %v56, %v102
    %v106 = vmul.f32 %v59, %v102
    %v107 = vmul.f32 %v62, %v102
    %v108 = vmul.f32 %v65, %v102
    %v109 = vmul.f32 %v68, %v102
    %v110 = vmul.f32 %v71, %v102
    %v111 = vmul.f32 %v74, %v102
    %v112 = vmul.f32 %v77, %v102
    %v113 = vmul.f32 %v80, %v102
    %v114 = vmul.f32 %v83, %v102
    %v115 = vmul.f32 %v86, %v102
    %v116 = vmul.f32 %v89, %v102
    %v117 = vmul.f32 %v92, %v102
    %v118 = vmul.f32 %v95, %v102
    %v119 = vsub.f32 %v31, %v103
    %v120 = vsub.f32 %v32, %v104
    %v121 = vsub.f32 %v33, %v105
    %v122 = vsub.f32 %v34, %v106
    %v123 = vsub.f32 %v35, %v107
    %v124 = vsub.f32 %v36, %v108
    %v125 = vsub.f32 %v37, %v109
    %v126 = vsub.f32 %v38, %v110
    %v127 = vsub.f32 %v39, %v111
    %v128 = vsub.f32 %v40, %v112
    %v129 = vsub.f32 %v41, %v113
    %v130 = vsub.f32 %v42, %v114
    %v131 = vsub.f32 %v43, %v115
    %v132 = vsub.f32 %v44, %v116
    %v133 = vsub.f32 %v45, %v117
    %v134 = vsub.f32 %v46, %v118
    %v135 = vmul.f32 %v119, %v119
    %v136 = vmul.f32 %v120, %v120
    %v137 = vmul.f32 %v121, %v121
    %v138 = vmul.f32 %v122, %v122
    %v139 = vmul.f32 %v123, %v123
    %v140 = vmul.f32 %v124, %v124
    %v141 = vmul.f32 %v125, %v125
    %v142 = vmul.f32 %v126, %v126
    %v143 = vmul.f32 %v127, %v127
    %v144 = vmul.f32 %v128, %v128
    %v145 = vmul.f32 %v129, %v129
    %v146 = vmul.f32 %v130, %v130
    %v147 = vmul.f32 %v131, %v131
    %v148 = vmul.f32 %v132, %v132
    %v149 = vmul.f32 %v133, %v133
    %v150 = vmul.f32 %v134, %v134
    %v151 = vsel %vm47, %v135, 0.0
    %152 = vadd.xlane.f32.xlu0 %v151
    %v153 = vpop.xlane.xlu0 %152
    %v154 = vsel %vm47, %v136, 0.0
    %155 = vadd.xlane.f32.xlu0 %v154
    %v156 = vpop.xlane.xlu0 %155
    %v157 = vsel %vm47, %v137, 0.0
    %158 = vadd.xlane.f32.xlu0 %v157
    %v159 = vpop.xlane.xlu0 %158
    %v160 = vsel %vm47, %v138, 0.0
    %161 = vadd.xlane.f32.xlu0 %v160
    %v162 = vpop.xlane.xlu0 %161
    %v163 = vsel %vm47, %v139, 0.0
    %164 = vadd.xlane.f32.xlu0 %v163
    %v165 = vpop.xlane.xlu0 %164
    %v166 = vsel %vm47, %v140, 0.0
    %167 = vadd.xlane.f32.xlu0 %v166
    %v168 = vpop.xlane.xlu0 %167
    %v169 = vsel %vm47, %v141, 0.0
    %170 = vadd.xlane.f32.xlu0 %v169
    %v171 = vpop.xlane.xlu0 %170
    %v172 = vsel %vm47, %v142, 0.0
    %173 = vadd.xlane.f32.xlu0 %v172
    %v174 = vpop.xlane.xlu0 %173
    %v175 = vsel %vm47, %v143, 0.0
    %176 = vadd.xlane.f32.xlu0 %v175
    %v177 = vpop.xlane.xlu0 %176
    %v178 = vsel %vm47, %v144, 0.0
    %179 = vadd.xlane.f32.xlu0 %v178
    %v180 = vpop.xlane.xlu0 %179
    %v181 = vsel %vm47, %v145, 0.0
    %182 = vadd.xlane.f32.xlu0 %v181
    %v183 = vpop.xlane.xlu0 %182
    %v184 = vsel %vm47, %v146, 0.0
    %185 = vadd.xlane.f32.xlu0 %v184
    %v186 = vpop.xlane.xlu0 %185
    %v187 = vsel %vm47, %v147, 0.0
    %188 = vadd.xlane.f32.xlu0 %v187
    %v189 = vpop.xlane.xlu0 %188
    %v190 = vsel %vm47, %v148, 0.0
    %191 = vadd.xlane.f32.xlu0 %v190
    %v192 = vpop.xlane.xlu0 %191
    %v193 = vsel %vm47, %v149, 0.0
    %194 = vadd.xlane.f32.xlu0 %v193
    %v195 = vpop.xlane.xlu0 %194
    %v196 = vsel %vm47, %v150, 0.0
    %197 = vadd.xlane.f32.xlu0 %v196
    %v198 = vpop.xlane.xlu0 %197
    %v199 = vmul.f32 %v153, %v102
    %v200 = vmul.f32 %v156, %v102
    %v201 = vmul.f32 %v159, %v102
    %v202 = vmul.f32 %v162, %v102
    %v203 = vmul.f32 %v165, %v102
    %v204 = vmul.f32 %v168, %v102
    %v205 = vmul.f32 %v171, %v102
    %v206 = vmul.f32 %v174, %v102
    %v207 = vmul.f32 %v177, %v102
    %v208 = vmul.f32 %v180, %v102
    %v209 = vmul.f32 %v183, %v102
    %v210 = vmul.f32 %v186, %v102
    %v211 = vmul.f32 %v189, %v102
    %v212 = vmul.f32 %v192, %v102
    %v213 = vmul.f32 %v195, %v102
    %v214 = vmul.f32 %v198, %v102
    %v215 = vadd.f32 %v199, 1e-05
    %v216 = vadd.f32 %v200, 1e-05
    %v217 = vadd.f32 %v201, 1e-05
    %v218 = vadd.f32 %v202, 1e-05
    %v219 = vadd.f32 %v203, 1e-05
    %v220 = vadd.f32 %v204, 1e-05
    %v221 = vadd.f32 %v205, 1e-05
    %v222 = vadd.f32 %v206, 1e-05
    %v223 = vadd.f32 %v207, 1e-05
    %v224 = vadd.f32 %v208, 1e-05
    %v225 = vadd.f32 %v209, 1e-05
    %v226 = vadd.f32 %v210, 1e-05
    %v227 = vadd.f32 %v211, 1e-05
    %v228 = vadd.f32 %v212, 1e-05
    %v229 = vadd.f32 %v213, 1e-05
    %v230 = vadd.f32 %v214, 1e-05
    %v231 = vrsqrt.pop %v215
    %v232 = vmul.f32 %v231, %v215
    %v233 = vmul.f32 %v232, %v231
    %v234 = vmul.f32 0.5, %v233
    %v235 = vsub.f32 1.5, %v234
    %v236 = vmul.f32 %v231, %v235
    %vm237 = vweird.f32 %v215
    %vm238 = vweird.f32 %v231
    %vm239 = vmor %vm237, %vm238
    %v240 = vsel %vm239, %v231, %v236
    %v241 = vrsqrt.pop %v216
    %v242 = vmul.f32 %v241, %v216
    %v243 = vmul.f32 %v242, %v241
    %v244 = vmul.f32 0.5, %v243
    %v245 = vsub.f32 1.5, %v244
    %v246 = vmul.f32 %v241, %v245
    %vm247 = vweird.f32 %v216
    %vm248 = vweird.f32 %v241
    %vm249 = vmor %vm247, %vm248
    %v250 = vsel %vm249, %v241, %v246
    %v251 = vrsqrt.pop %v217
    %v252 = vmul.f32 %v251, %v217
    %v253 = vmul.f32 %v252, %v251
    %v254 = vmul.f32 0.5, %v253
    %v255 = vsub.f32 1.5, %v254
    %v256 = vmul.f32 %v251, %v255
    %vm257 = vweird.f32 %v217
    %vm258 = vweird.f32 %v251
    %vm259 = vmor %vm257, %vm258
    %v260 = vsel %vm259, %v251, %v256
    %v261 = vrsqrt.pop %v218
    %v262 = vmul.f32 %v261, %v218
    %v263 = vmul.f32 %v262, %v261
    %v264 = vmul.f32 0.5, %v263
    %v265 = vsub.f32 1.5, %v264
    %v266 = vmul.f32 %v261, %v265
    %vm267 = vweird.f32 %v218
    %vm268 = vweird.f32 %v261
    %vm269 = vmor %vm267, %vm268
    %v270 = vsel %vm269, %v261, %v266
    %v271 = vrsqrt.pop %v219
    %v272 = vmul.f32 %v271, %v219
    %v273 = vmul.f32 %v272, %v271
    %v274 = vmul.f32 0.5, %v273
    %v275 = vsub.f32 1.5, %v274
    %v276 = vmul.f32 %v271, %v275
    %vm277 = vweird.f32 %v219
    %vm278 = vweird.f32 %v271
    %vm279 = vmor %vm277, %vm278
    %v280 = vsel %vm279, %v271, %v276
    %v281 = vrsqrt.pop %v220
    %v282 = vmul.f32 %v281, %v220
    %v283 = vmul.f32 %v282, %v281
    %v284 = vmul.f32 0.5, %v283
    %v285 = vsub.f32 1.5, %v284
    %v286 = vmul.f32 %v281, %v285
    %vm287 = vweird.f32 %v220
    %vm288 = vweird.f32 %v281
    %vm289 = vmor %vm287, %vm288
    %v290 = vsel %vm289, %v281, %v286
    %v291 = vrsqrt.pop %v221
    %v292 = vmul.f32 %v291, %v221
    %v293 = vmul.f32 %v292, %v291
    %v294 = vmul.f32 0.5, %v293
    %v295 = vsub.f32 1.5, %v294
    %v296 = vmul.f32 %v291, %v295
    %vm297 = vweird.f32 %v221
    %vm298 = vweird.f32 %v291
    %vm299 = vmor %vm297, %vm298
    %v300 = vsel %vm299, %v291, %v296
    %v301 = vrsqrt.pop %v222
    %v302 = vmul.f32 %v301, %v222
    %v303 = vmul.f32 %v302, %v301
    %v304 = vmul.f32 0.5, %v303
    %v305 = vsub.f32 1.5, %v304
    %v306 = vmul.f32 %v301, %v305
    %vm307 = vweird.f32 %v222
    %vm308 = vweird.f32 %v301
    %vm309 = vmor %vm307, %vm308
    %v310 = vsel %vm309, %v301, %v306
    %v311 = vrsqrt.pop %v223
    %v312 = vmul.f32 %v311, %v223
    %v313 = vmul.f32 %v312, %v311
    %v314 = vmul.f32 0.5, %v313
    %v315 = vsub.f32 1.5, %v314
    %v316 = vmul.f32 %v311, %v315
    %vm317 = vweird.f32 %v223
    %vm318 = vweird.f32 %v311
    %vm319 = vmor %vm317, %vm318
    %v320 = vsel %vm319, %v311, %v316
    %v321 = vrsqrt.pop %v224
    %v322 = vmul.f32 %v321, %v224
    %v323 = vmul.f32 %v322, %v321
    %v324 = vmul.f32 0.5, %v323
    %v325 = vsub.f32 1.5, %v324
    %v326 = vmul.f32 %v321, %v325
    %vm327 = vweird.f32 %v224
    %vm328 = vweird.f32 %v321
    %vm329 = vmor %vm327, %vm328
    %v330 = vsel %vm329, %v321, %v326
    %v331 = vrsqrt.pop %v225
    %v332 = vmul.f32 %v331, %v225
    %v333 = vmul.f32 %v332, %v331
    %v334 = vmul.f32 0.5, %v333
    %v335 = vsub.f32 1.5, %v334
    %v336 = vmul.f32 %v331, %v335
    %vm337 = vweird.f32 %v225
    %vm338 = vweird.f32 %v331
    %vm339 = vmor %vm337, %vm338
    %v340 = vsel %vm339, %v331, %v336
    %v341 = vrsqrt.pop %v226
    %v342 = vmul.f32 %v341, %v226
    %v343 = vmul.f32 %v342, %v341
    %v344 = vmul.f32 0.5, %v343
    %v345 = vsub.f32 1.5, %v344
    %v346 = vmul.f32 %v341, %v345
    %vm347 = vweird.f32 %v226
    %vm348 = vweird.f32 %v341
    %vm349 = vmor %vm347, %vm348
    %v350 = vsel %vm349, %v341, %v346
    %v351 = vrsqrt.pop %v227
    %v352 = vmul.f32 %v351, %v227
    %v353 = vmul.f32 %v352, %v351
    %v354 = vmul.f32 0.5, %v353
    %v355 = vsub.f32 1.5, %v354
    %v356 = vmul.f32 %v351, %v355
    %vm357 = vweird.f32 %v227
    %vm358 = vweird.f32 %v351
    %vm359 = vmor %vm357, %vm358
    %v360 = vsel %vm359, %v351, %v356
    %v361 = vrsqrt.pop %v228
    %v362 = vmul.f32 %v361, %v228
    %v363 = vmul.f32 %v362, %v361
    %v364 = vmul.f32 0.5, %v363
    %v365 = vsub.f32 1.5, %v364
    %v366 = vmul.f32 %v361, %v365
    %vm367 = vweird.f32 %v228
    %vm368 = vweird.f32 %v361
    %vm369 = vmor %vm367, %vm368
    %v370 = vsel %vm369, %v361, %v366
    %v371 = vrsqrt.pop %v229
    %v372 = vmul.f32 %v371, %v229
    %v373 = vmul.f32 %v372, %v371
    %v374 = vmul.f32 0.5, %v373
    %v375 = vsub.f32 1.5, %v374
    %v376 = vmul.f32 %v371, %v375
    %vm377 = vweird.f32 %v229
    %vm378 = vweird.f32 %v371
    %vm379 = vmor %vm377, %vm378
    %v380 = vsel %vm379, %v371, %v376
    %v381 = vrsqrt.pop %v230
    %v382 = vmul.f32 %v381, %v230
    %v383 = vmul.f32 %v382, %v381
    %v384 = vmul.f32 0.5, %v383
    %v385 = vsub.f32 1.5, %v384
    %v386 = vmul.f32 %v381, %v385
    %vm387 = vweird.f32 %v230
    %vm388 = vweird.f32 %v381
    %vm389 = vmor %vm387, %vm388
    %v390 = vsel %vm389, %v381, %v386
    %v391 = vmul.f32 %v119, %v240
    %v392 = vmul.f32 %v120, %v250
    %v393 = vmul.f32 %v121, %v260
    %v394 = vmul.f32 %v122, %v270
    %v395 = vmul.f32 %v123, %v280
    %v396 = vmul.f32 %v124, %v290
    %v397 = vmul.f32 %v125, %v300
    %v398 = vmul.f32 %v126, %v310
    %v399 = vmul.f32 %v127, %v320
    %v400 = vmul.f32 %v128, %v330
    %v401 = vmul.f32 %v129, %v340
    %v402 = vmul.f32 %v130, %v350
    %v403 = vmul.f32 %v131, %v360
    %v404 = vmul.f32 %v132, %v370
    %v405 = vmul.f32 %v133, %v380
    %v406 = vmul.f32 %v134, %v390
    %v407 = vld [vmem:[%s1] sm:$0x1]
    %v409 = vperm.slane %v407, 0
    %v411 = vmul.f32 %v391, %v409
    %v412 = vmul.f32 %v392, %v409
    %v413 = vmul.f32 %v393, %v409
    %v414 = vmul.f32 %v394, %v409
    %v415 = vmul.f32 %v395, %v409
    %v416 = vmul.f32 %v396, %v409
    %v417 = vmul.f32 %v397, %v409
    %v418 = vmul.f32 %v398, %v409
    %v419 = vmul.f32 %v399, %v409
    %v420 = vmul.f32 %v400, %v409
    %v421 = vmul.f32 %v401, %v409
    %v422 = vmul.f32 %v402, %v409
    %v423 = vmul.f32 %v403, %v409
    %v424 = vmul.f32 %v404, %v409
    %v425 = vmul.f32 %v405, %v409
    %v426 = vmul.f32 %v406, %v409
    %v427 = vld [vmem:[%s2] sm:$0x1]
    %v429 = vperm.slane %v427, 0
    %v431 = vadd.f32 %v411, %v429
    %v432 = vadd.f32 %v412, %v429
    %v433 = vadd.f32 %v413, %v429
    %v434 = vadd.f32 %v414, %v429
    %v435 = vadd.f32 %v415, %v429
    %v436 = vadd.f32 %v416, %v429
    %v437 = vadd.f32 %v417, %v429
    %v438 = vadd.f32 %v418, %v429
    %v439 = vadd.f32 %v419, %v429
    %v440 = vadd.f32 %v420, %v429
    %v441 = vadd.f32 %v421, %v429
    %v442 = vadd.f32 %v422, %v429
    %v443 = vadd.f32 %v423, %v429
    %v444 = vadd.f32 %v424, %v429
    %v445 = vadd.f32 %v425, %v429
    %v446 = vadd.f32 %v426, %v429
    %v447 = vpack.c.bf16 %v431, %v431
    %v448 = vpack.c.bf16 %v432, %v432
    %v449 = vpack.c.bf16 %v433, %v433
    %v450 = vpack.c.bf16 %v434, %v434
    %v451 = vpack.c.bf16 %v435, %v435
    %v452 = vpack.c.bf16 %v436, %v436
    %v453 = vpack.c.bf16 %v437, %v437
    %v454 = vpack.c.bf16 %v438, %v438
    %v455 = vpack.c.bf16 %v439, %v439
    %v456 = vpack.c.bf16 %v440, %v440
    %v457 = vpack.c.bf16 %v441, %v441
    %v458 = vpack.c.bf16 %v442, %v442
    %v459 = vpack.c.bf16 %v443, %v443
    %v460 = vpack.c.bf16 %v444, %v444
    %v461 = vpack.c.bf16 %v445, %v445
    %v462 = vpack.c.bf16 %v446, %v446
    %vm463 = vcmask 257024
    %464 = vst.msk [vmem:[#allocation2] sm:$0xf] %vm463, %v447
    %465 = vst.msk [vmem:[#allocation2 + $0x4] sm:$0xf] %vm463, %v448
    %466 = vst.msk [vmem:[#allocation2 + $0x8] sm:$0xf] %vm463, %v449
    %467 = vst.msk [vmem:[#allocation2 + $0xc] sm:$0xf] %vm463, %v450
    %468 = vst.msk [vmem:[#allocation2 + $0x10] sm:$0xf] %vm463, %v451
    %469 = vst.msk [vmem:[#allocation2 + $0x14] sm:$0xf] %vm463, %v452
    %470 = vst.msk [vmem:[#allocation2 + $0x18] sm:$0xf] %vm463, %v453
    %471 = vst.msk [vmem:[#allocation2 + $0x1c] sm:$0xf] %vm463, %v454
    %472 = vst.msk [vmem:[#allocation2 + $0x20] sm:$0xf] %vm463, %v455
    %473 = vst.msk [vmem:[#allocation2 + $0x24] sm:$0xf] %vm463, %v456
    %474 = vst.msk [vmem:[#allocation2 + $0x28] sm:$0xf] %vm463, %v457
    %475 = vst.msk [vmem:[#allocation2 + $0x2c] sm:$0xf] %vm463, %v458
    %476 = vst.msk [vmem:[#allocation2 + $0x30] sm:$0xf] %vm463, %v459
    %477 = vst.msk [vmem:[#allocation2 + $0x34] sm:$0xf] %vm463, %v460
    %478 = vst.msk [vmem:[#allocation2 + $0x38] sm:$0xf] %vm463, %v461
    %479 = vst.msk [vmem:[#allocation2 + $0x3c] sm:$0xf] %vm463, %v462
    %480 = vst.msk [vmem:[#allocation3] sm:$0xff] %vm47, 0.0
    %481 = vst.msk [vmem:[#allocation3 + $0x8] sm:$0xff] %vm47, 0.0
    %482 = vst.msk [vmem:[#allocation3 + $0x10] sm:$0xff] %vm47, 0.0
    %483 = vst.msk [vmem:[#allocation3 + $0x18] sm:$0xff] %vm47, 0.0
    %484 = vst.msk [vmem:[#allocation3 + $0x20] sm:$0xff] %vm47, 0.0
    %485 = vst.msk [vmem:[#allocation3 + $0x28] sm:$0xff] %vm47, 0.0
    %486 = vst.msk [vmem:[#allocation3 + $0x30] sm:$0xff] %vm47, 0.0
    %487 = vst.msk [vmem:[#allocation3 + $0x38] sm:$0xff] %vm47, 0.0
    %488 = vst.msk [vmem:[#allocation3 + $0x40] sm:$0xff] %vm47, 0.0
    %489 = vst.msk [vmem:[#allocation3 + $0x48] sm:$0xff] %vm47, 0.0
    %490 = vst.msk [vmem:[#allocation3 + $0x50] sm:$0xff] %vm47, 0.0
    %491 = vst.msk [vmem:[#allocation3 + $0x58] sm:$0xff] %vm47, 0.0
    %492 = vst.msk [vmem:[#allocation3 + $0x60] sm:$0xff] %vm47, 0.0
    %493 = vst.msk [vmem:[#allocation3 + $0x68] sm:$0xff] %vm47, 0.0
    %494 = vst.msk [vmem:[#allocation3 + $0x70] sm:$0xff] %vm47, 0.0
    %495 = vst.msk [vmem:[#allocation3 + $0x78] sm:$0xff] %vm47, 0.0
  $region33: #{run.5} parent=0 // pred_fallthru
    _
  %v496 = vld [vmem:[#allocation2] sm:$0xf]
  %v497 = vld [vmem:[#allocation2 + $0x4] sm:$0xf]
  %v498 = vld [vmem:[#allocation2 + $0x8] sm:$0xf]
  %v499 = vld [vmem:[#allocation2 + $0xc] sm:$0xf]
  %v500 = vld [vmem:[#allocation2 + $0x10] sm:$0xf]
  %v501 = vld [vmem:[#allocation2 + $0x14] sm:$0xf]
  %v502 = vld [vmem:[#allocation2 + $0x18] sm:$0xf]
  %v503 = vld [vmem:[#allocation2 + $0x1c] sm:$0xf]
  %v504 = vld [vmem:[#allocation2 + $0x20] sm:$0xf]
  %v505 = vld [vmem:[#allocation2 + $0x24] sm:$0xf]
  %v506 = vld [vmem:[#allocation2 + $0x28] sm:$0xf]
  %v507 = vld [vmem:[#allocation2 + $0x2c] sm:$0xf]
  %v508 = vld [vmem:[#allocation2 + $0x30] sm:$0xf]
  %v509 = vld [vmem:[#allocation2 + $0x34] sm:$0xf]
  %v510 = vld [vmem:[#allocation2 + $0x38] sm:$0xf]
  %v511 = vld [vmem:[#allocation2 + $0x3c] sm:$0xf]
  %v512 = vld [vmem:[%s3] sm:$0xf]
  %v513 = vld [vmem:[%s3 + $0x4] sm:$0xf]
  %v514 = vld [vmem:[%s3 + $0x8] sm:$0xf]
  %v515 = vld [vmem:[%s3 + $0xc] sm:$0xf]
  %v516 = vld [vmem:[%s4] sm:$0x1]
  %v518 = vperm.slane %v516, 0
  %v536 = vunpack.c.l.b16 %v496
  %v537 = vunpack.c.l.b16 %v497
  %v538 = vunpack.c.l.b16 %v498
  %v539 = vunpack.c.l.b16 %v499
  %v540 = vunpack.c.l.b16 %v500
  %v541 = vunpack.c.l.b16 %v501
  %v542 = vunpack.c.l.b16 %v502
  %v543 = vunpack.c.l.b16 %v503
  %v544 = vunpack.c.l.b16 %v504
  %v545 = vunpack.c.l.b16 %v505
  %v546 = vunpack.c.l.b16 %v506
  %v547 = vunpack.c.l.b16 %v507
  %v548 = vunpack.c.l.b16 %v508
  %v549 = vunpack.c.l.b16 %v509
  %v550 = vunpack.c.l.b16 %v510
  %v551 = vunpack.c.l.b16 %v511
  %v552 = vpack.c.b16 %v537, %v536
  %v553 = vpack.c.b16 %v539, %v538
  %v554 = vpack.c.b16 %v541, %v540
  %v555 = vpack.c.b16 %v543, %v542
  %v556 = vpack.c.b16 %v545, %v544
  %v557 = vpack.c.b16 %v547, %v546
  %v558 = vpack.c.b16 %v549, %v548
  %v559 = vpack.c.b16 %v551, %v550
  %v564 = vunpack.c.l.b16 %v512
  %v565 = vunpack.c.l.b16 %v513
  %v566 = vunpack.c.l.b16 %v514
  %v567 = vunpack.c.l.b16 %v515
  %v568 = vpack.c.b16 %v565, %v564
  %v569 = vpack.c.b16 %v567, %v566
  %vm572 = vcmask 261120
  %v574 = vsel %vm572, %v552, 0
  %v577 = vsel %vm572, %v553, 0
  %v580 = vsel %vm572, %v554, 0
  %v583 = vsel %vm572, %v555, 0
  %v586 = vsel %vm572, %v556, 0
  %v589 = vsel %vm572, %v557, 0
  %v592 = vsel %vm572, %v558, 0
  %v595 = vsel %vm572, %v559, 0
  %597 = vmatpush.bf16.msra.mxu0 0
  %598 = vmatpush.bf16.msra.mxu0 0
  %599 = vmatpush.bf16.msra.mxu0 0
  %600 = vmatpush.bf16.msra.mxu0 0
  %601 = vmatpush.bf16.msra.mxu0 0
  %602 = vmatpush.bf16.msra.mxu0 0
  %603 = vmatpush.bf16.msra.mxu0 %v569
  %604 = vmatpush.bf16.msra.mxu0 %v568
  %605 = vmatmul.bf16.gmra.mxu0 %v574
  %v606 = vpop.f32.mrf.mxu0
  %v607 = vadd.f32 %v518, %v606
  %v608 = vpop.f32.mrf.mxu0
  %v609 = vadd.f32 %v518, %v608
  %610 = vmatmul.bf16.gmra.mxu0 %v577
  %v611 = vpop.f32.mrf.mxu0
  %v612 = vadd.f32 %v518, %v611
  %v613 = vpop.f32.mrf.mxu0
  %v614 = vadd.f32 %v518, %v613
  %615 = vmatmul.bf16.gmra.mxu0 %v580
  %v616 = vpop.f32.mrf.mxu0
  %v617 = vadd.f32 %v518, %v616
  %v618 = vpop.f32.mrf.mxu0
  %v619 = vadd.f32 %v518, %v618
  %620 = vmatmul.bf16.gmra.mxu0 %v583
  %v621 = vpop.f32.mrf.mxu0
  %v622 = vadd.f32 %v518, %v621
  %v623 = vpop.f32.mrf.mxu0
  %v624 = vadd.f32 %v518, %v623
  %625 = vmatmul.bf16.gmra.mxu0 %v586
  %v626 = vpop.f32.mrf.mxu0
  %v627 = vadd.f32 %v518, %v626
  %v628 = vpop.f32.mrf.mxu0
  %v629 = vadd.f32 %v518, %v628
  %630 = vmatmul.bf16.gmra.mxu0 %v589
  %v631 = vpop.f32.mrf.mxu0
  %v632 = vadd.f32 %v518, %v631
  %v633 = vpop.f32.mrf.mxu0
  %v634 = vadd.f32 %v518, %v633
  %635 = vmatmul.bf16.gmra.mxu0 %v592
  %v636 = vpop.f32.mrf.mxu0
  %v637 = vadd.f32 %v518, %v636
  %v638 = vpop.f32.mrf.mxu0
  %v639 = vadd.f32 %v518, %v638
  %640 = vmatmul.bf16.gmra.mxu0 %v595
  %v641 = vpop.f32.mrf.mxu0
  %v642 = vadd.f32 %v518, %v641
  %v643 = vpop.f32.mrf.mxu0
  %v644 = vadd.f32 %v518, %v643
  %645 = vdwg.mxu0
  %v646 = vmul.f32 %v607, %v607
  %v647 = vmul.f32 %v609, %v609
  %v648 = vmul.f32 %v612, %v612
  %v649 = vmul.f32 %v614, %v614
  %v650 = vmul.f32 %v617, %v617
  %v651 = vmul.f32 %v619, %v619
  %v652 = vmul.f32 %v622, %v622
  %v653 = vmul.f32 %v624, %v624
  %v654 = vmul.f32 %v627, %v627
  %v655 = vmul.f32 %v629, %v629
  %v656 = vmul.f32 %v632, %v632
  %v657 = vmul.f32 %v634, %v634
  %v658 = vmul.f32 %v637, %v637
  %v659 = vmul.f32 %v639, %v639
  %v660 = vmul.f32 %v642, %v642
  %v661 = vmul.f32 %v644, %v644
  %v662 = vmul.f32 %v607, %v646
  %v663 = vmul.f32 %v609, %v647
  %v664 = vmul.f32 %v612, %v648
  %v665 = vmul.f32 %v614, %v649
  %v666 = vmul.f32 %v617, %v650
  %v667 = vmul.f32 %v619, %v651
  %v668 = vmul.f32 %v622, %v652
  %v669 = vmul.f32 %v624, %v653
  %v670 = vmul.f32 %v627, %v654
  %v671 = vmul.f32 %v629, %v655
  %v672 = vmul.f32 %v632, %v656
  %v673 = vmul.f32 %v634, %v657
  %v674 = vmul.f32 %v637, %v658
  %v675 = vmul.f32 %v639, %v659
  %v676 = vmul.f32 %v642, %v660
  %v677 = vmul.f32 %v644, %v661
  %v678 = vmul.f32 %v662, 0.044715
  %v679 = vmul.f32 %v663, 0.044715
  %v680 = vmul.f32 %v664, 0.044715
  %v681 = vmul.f32 %v665, 0.044715
  %v682 = vmul.f32 %v666, 0.044715
  %v683 = vmul.f32 %v667, 0.044715
  %v684 = vmul.f32 %v668, 0.044715
  %v685 = vmul.f32 %v669, 0.044715
  %v686 = vmul.f32 %v670, 0.044715
  %v687 = vmul.f32 %v671, 0.044715
  %v688 = vmul.f32 %v672, 0.044715
  %v689 = vmul.f32 %v673, 0.044715
  %v690 = vmul.f32 %v674, 0.044715
  %v691 = vmul.f32 %v675, 0.044715
  %v692 = vmul.f32 %v676, 0.044715
  %v693 = vmul.f32 %v677, 0.044715
  %v694 = vadd.f32 %v607, %v678
  %v695 = vadd.f32 %v609, %v679
  %v696 = vadd.f32 %v612, %v680
  %v697 = vadd.f32 %v614, %v681
  %v698 = vadd.f32 %v617, %v682
  %v699 = vadd.f32 %v619, %v683
  %v700 = vadd.f32 %v622, %v684
  %v701 = vadd.f32 %v624, %v685
  %v702 = vadd.f32 %v627, %v686
  %v703 = vadd.f32 %v629, %v687
  %v704 = vadd.f32 %v632, %v688
  %v705 = vadd.f32 %v634, %v689
  %v706 = vadd.f32 %v637, %v690
  %v707 = vadd.f32 %v639, %v691
  %v708 = vadd.f32 %v642, %v692
  %v709 = vadd.f32 %v644, %v693
  %v710 = vmul.f32 %v694, 0.7978846
  %v711 = vmul.f32 %v695, 0.7978846
  %v712 = vmul.f32 %v696, 0.7978846
  %v713 = vmul.f32 %v697, 0.7978846
  %v714 = vmul.f32 %v698, 0.7978846
  %v715 = vmul.f32 %v699, 0.7978846
  %v716 = vmul.f32 %v700, 0.7978846
  %v717 = vmul.f32 %v701, 0.7978846
  %v718 = vmul.f32 %v702, 0.7978846
  %v719 = vmul.f32 %v703, 0.7978846
  %v720 = vmul.f32 %v704, 0.7978846
  %v721 = vmul.f32 %v705, 0.7978846
  %v722 = vmul.f32 %v706, 0.7978846
  %v723 = vmul.f32 %v707, 0.7978846
  %v724 = vmul.f32 %v708, 0.7978846
  %v725 = vmul.f32 %v709, 0.7978846
  %v726 = vtanh.pop %v710
  %v727 = vtanh.pop %v711
  %v728 = vtanh.pop %v712
  %v729 = vtanh.pop %v713
  %v730 = vtanh.pop %v714
  %v731 = vtanh.pop %v715
  %v732 = vtanh.pop %v716
  %v733 = vtanh.pop %v717
  %v734 = vtanh.pop %v718
  %v735 = vtanh.pop %v719
  %v736 = vtanh.pop %v720
  %v737 = vtanh.pop %v721
  %v738 = vtanh.pop %v722
  %v739 = vtanh.pop %v723
  %v740 = vtanh.pop %v724
  %v741 = vtanh.pop %v725
  %v742 = vadd.f32 %v726, 1.0
  %v743 = vadd.f32 %v727, 1.0
  %v744 = vadd.f32 %v728, 1.0
  %v745 = vadd.f32 %v729, 1.0
  %v746 = vadd.f32 %v730, 1.0
  %v747 = vadd.f32 %v731, 1.0
  %v748 = vadd.f32 %v732, 1.0
  %v749 = vadd.f32 %v733, 1.0
  %v750 = vadd.f32 %v734, 1.0
  %v751 = vadd.f32 %v735, 1.0
  %v752 = vadd.f32 %v736, 1.0
  %v753 = vadd.f32 %v737, 1.0
  %v754 = vadd.f32 %v738, 1.0
  %v755 = vadd.f32 %v739, 1.0
  %v756 = vadd.f32 %v740, 1.0
  %v757 = vadd.f32 %v741, 1.0
  %v758 = vmul.f32 %v742, 0.5
  %v759 = vmul.f32 %v743, 0.5
  %v760 = vmul.f32 %v744, 0.5
  %v761 = vmul.f32 %v745, 0.5
  %v762 = vmul.f32 %v746, 0.5
  %v763 = vmul.f32 %v747, 0.5
  %v764 = vmul.f32 %v748, 0.5
  %v765 = vmul.f32 %v749, 0.5
  %v766 = vmul.f32 %v750, 0.5
  %v767 = vmul.f32 %v751, 0.5
  %v768 = vmul.f32 %v752, 0.5
  %v769 = vmul.f32 %v753, 0.5
  %v770 = vmul.f32 %v754, 0.5
  %v771 = vmul.f32 %v755, 0.5
  %v772 = vmul.f32 %v756, 0.5
  %v773 = vmul.f32 %v757, 0.5
  %v774 = vmul.f32 %v607, %v758
  %v775 = vmul.f32 %v609, %v759
  %v776 = vmul.f32 %v612, %v760
  %v777 = vmul.f32 %v614, %v761
  %v778 = vmul.f32 %v617, %v762
  %v779 = vmul.f32 %v619, %v763
  %v780 = vmul.f32 %v622, %v764
  %v781 = vmul.f32 %v624, %v765
  %v782 = vmul.f32 %v627, %v766
  %v783 = vmul.f32 %v629, %v767
  %v784 = vmul.f32 %v632, %v768
  %v785 = vmul.f32 %v634, %v769
  %v786 = vmul.f32 %v637, %v770
  %v787 = vmul.f32 %v639, %v771
  %v788 = vmul.f32 %v642, %v772
  %v789 = vmul.f32 %v644, %v773
  %v790 = vpack.c.bf16 %v775, %v774
  %v791 = vpack.c.bf16 %v777, %v776
  %v792 = vpack.c.bf16 %v779, %v778
  %v793 = vpack.c.bf16 %v781, %v780
  %v794 = vpack.c.bf16 %v783, %v782
  %v795 = vpack.c.bf16 %v785, %v784
  %v796 = vpack.c.bf16 %v787, %v786
  %v797 = vpack.c.bf16 %v789, %v788
  %v798 = vld [vmem:[#allocation3] sm:$0xff]
  %v799 = vld [vmem:[#allocation3 + $0x8] sm:$0xff]
  %v800 = vld [vmem:[#allocation3 + $0x10] sm:$0xff]
  %v801 = vld [vmem:[#allocation3 + $0x18] sm:$0xff]
  %v802 = vld [vmem:[#allocation3 + $0x20] sm:$0xff]
  %v803 = vld [vmem:[#allocation3 + $0x28] sm:$0xff]
  %v804 = vld [vmem:[#allocation3 + $0x30] sm:$0xff]
  %v805 = vld [vmem:[#allocation3 + $0x38] sm:$0xff]
  %v806 = vld [vmem:[#allocation3 + $0x40] sm:$0xff]
  %v807 = vld [vmem:[#allocation3 + $0x48] sm:$0xff]
  %v808 = vld [vmem:[#allocation3 + $0x50] sm:$0xff]
  %v809 = vld [vmem:[#allocation3 + $0x58] sm:$0xff]
  %v810 = vld [vmem:[#allocation3 + $0x60] sm:$0xff]
  %v811 = vld [vmem:[#allocation3 + $0x68] sm:$0xff]
  %v812 = vld [vmem:[#allocation3 + $0x70] sm:$0xff]
  %v813 = vld [vmem:[#allocation3 + $0x78] sm:$0xff]
  %v814 = vld [vmem:[%s5] sm:$0xf]
  %v815 = vld [vmem:[%s5 + $0x4] sm:$0xf]
  %v816 = vld [vmem:[%s5 + $0x8] sm:$0xf]
  %v817 = vld [vmem:[%s5 + $0xc] sm:$0xf]
  %v818 = vld [vmem:[%s5 + $0x10] sm:$0xf]
  %v819 = vld [vmem:[%s5 + $0x14] sm:$0xf]
  %v820 = vld [vmem:[%s5 + $0x18] sm:$0xf]
  %v821 = vld [vmem:[%s5 + $0x1c] sm:$0xf]
  %v822 = vld [vmem:[%s5 + $0x20] sm:$0xf]
  %v823 = vld [vmem:[%s5 + $0x24] sm:$0xf]
  %v824 = vld [vmem:[%s5 + $0x28] sm:$0xf]
  %v825 = vld [vmem:[%s5 + $0x2c] sm:$0xf]
  %v826 = vld [vmem:[%s5 + $0x30] sm:$0xf]
  %v827 = vld [vmem:[%s5 + $0x34] sm:$0xf]
  %v828 = vld [vmem:[%s5 + $0x38] sm:$0xf]
  %v829 = vld [vmem:[%s5 + $0x3c] sm:$0xf]
  %v846 = vunpack.c.l.b16 %v814
  %v847 = vunpack.c.l.b16 %v815
  %v848 = vunpack.c.l.b16 %v816
  %v849 = vunpack.c.l.b16 %v817
  %v850 = vunpack.c.l.b16 %v818
  %v851 = vunpack.c.l.b16 %v819
  %v852 = vunpack.c.l.b16 %v820
  %v853 = vunpack.c.l.b16 %v821
  %v854 = vunpack.c.l.b16 %v822
  %v855 = vunpack.c.l.b16 %v823
  %v856 = vunpack.c.l.b16 %v824
  %v857 = vunpack.c.l.b16 %v825
  %v858 = vunpack.c.l.b16 %v826
  %v859 = vunpack.c.l.b16 %v827
  %v860 = vunpack.c.l.b16 %v828
  %v861 = vunpack.c.l.b16 %v829
  %v862 = vpack.c.b16 %v847, %v846
  %v863 = vpack.c.b16 %v849, %v848
  %v864 = vpack.c.b16 %v851, %v850
  %v865 = vpack.c.b16 %v853, %v852
  %v866 = vpack.c.b16 %v855, %v854
  %v867 = vpack.c.b16 %v857, %v856
  %v868 = vpack.c.b16 %v859, %v858
  %v869 = vpack.c.b16 %v861, %v860
  %878 = vmatpush.bf16.msra.mxu0 %v869
  %879 = vmatpush.bf16.msra.mxu0 %v868
  %880 = vmatpush.bf16.msra.mxu0 %v867
  %881 = vmatpush.bf16.msra.mxu0 %v866
  %882 = vmatpush.bf16.msra.mxu0 %v865
  %883 = vmatpush.bf16.msra.mxu0 %v864
  %884 = vmatpush.bf16.msra.mxu0 %v863
  %885 = vmatpush.bf16.msra.mxu0 %v862
  %886 = vmatmul.bf16.gmra.mxu0 %v790
  %v887 = vpop.f32.mrf.mxu0
  %v888 = vadd.f32 0.0, %v887
  %v889 = vpop.f32.mrf.mxu0
  %v890 = vadd.f32 0.0, %v889
  %891 = vmatmul.bf16.gmra.mxu0 %v791
  %v892 = vpop.f32.mrf.mxu0
  %v893 = vadd.f32 0.0, %v892
  %v894 = vpop.f32.mrf.mxu0
  %v895 = vadd.f32 0.0, %v894
  %896 = vmatmul.bf16.gmra.mxu0 %v792
  %v897 = vpop.f32.mrf.mxu0
  %v898 = vadd.f32 0.0, %v897
  %v899 = vpop.f32.mrf.mxu0
  %v900 = vadd.f32 0.0, %v899
  %901 = vmatmul.bf16.gmra.mxu0 %v793
  %v902 = vpop.f32.mrf.mxu0
  %v903 = vadd.f32 0.0, %v902
  %v904 = vpop.f32.mrf.mxu0
  %v905 = vadd.f32 0.0, %v904
  %906 = vmatmul.bf16.gmra.mxu0 %v794
  %v907 = vpop.f32.mrf.mxu0
  %v908 = vadd.f32 0.0, %v907
  %v909 = vpop.f32.mrf.mxu0
  %v910 = vadd.f32 0.0, %v909
  %911 = vmatmul.bf16.gmra.mxu0 %v795
  %v912 = vpop.f32.mrf.mxu0
  %v913 = vadd.f32 0.0, %v912
  %v914 = vpop.f32.mrf.mxu0
  %v915 = vadd.f32 0.0, %v914
  %916 = vmatmul.bf16.gmra.mxu0 %v796
  %v917 = vpop.f32.mrf.mxu0
  %v918 = vadd.f32 0.0, %v917
  %v919 = vpop.f32.mrf.mxu0
  %v920 = vadd.f32 0.0, %v919
  %921 = vmatmul.bf16.gmra.mxu0 %v797
  %v922 = vpop.f32.mrf.mxu0
  %v923 = vadd.f32 0.0, %v922
  %v924 = vpop.f32.mrf.mxu0
  %v925 = vadd.f32 0.0, %v924
  %926 = vdwg.mxu0
  %v927 = vadd.f32 %v798, %v888
  %v928 = vadd.f32 %v799, %v890
  %v929 = vadd.f32 %v800, %v893
  %v930 = vadd.f32 %v801, %v895
  %v931 = vadd.f32 %v802, %v898
  %v932 = vadd.f32 %v803, %v900
  %v933 = vadd.f32 %v804, %v903
  %v934 = vadd.f32 %v805, %v905
  %v935 = vadd.f32 %v806, %v908
  %v936 = vadd.f32 %v807, %v910
  %v937 = vadd.f32 %v808, %v913
  %v938 = vadd.f32 %v809, %v915
  %v939 = vadd.f32 %v810, %v918
  %v940 = vadd.f32 %v811, %v920
  %v941 = vadd.f32 %v812, %v923
  %v942 = vadd.f32 %v813, %v925
  %943 = vst.msk [vmem:[#allocation3] sm:$0xff] %vm572, %v927
  %944 = vst.msk [vmem:[#allocation3 + $0x8] sm:$0xff] %vm572, %v928
  %945 = vst.msk [vmem:[#allocation3 + $0x10] sm:$0xff] %vm572, %v929
  %946 = vst.msk [vmem:[#allocation3 + $0x18] sm:$0xff] %vm572, %v930
  %947 = vst.msk [vmem:[#allocation3 + $0x20] sm:$0xff] %vm572, %v931
  %948 = vst.msk [vmem:[#allocation3 + $0x28] sm:$0xff] %vm572, %v932
  %949 = vst.msk [vmem:[#allocation3 + $0x30] sm:$0xff] %vm572, %v933
  %950 = vst.msk [vmem:[#allocation3 + $0x38] sm:$0xff] %vm572, %v934
  %951 = vst.msk [vmem:[#allocation3 + $0x40] sm:$0xff] %vm572, %v935
  %952 = vst.msk [vmem:[#allocation3 + $0x48] sm:$0xff] %vm572, %v936
  %953 = vst.msk [vmem:[#allocation3 + $0x50] sm:$0xff] %vm572, %v937
  %954 = vst.msk [vmem:[#allocation3 + $0x58] sm:$0xff] %vm572, %v938
  %955 = vst.msk [vmem:[#allocation3 + $0x60] sm:$0xff] %vm572, %v939
  %956 = vst.msk [vmem:[#allocation3 + $0x68] sm:$0xff] %vm572, %v940
  %957 = vst.msk [vmem:[#allocation3 + $0x70] sm:$0xff] %vm572, %v941
  %958 = vst.msk [vmem:[#allocation3 + $0x78] sm:$0xff] %vm572, %v942
  // Predicated region
  $region34: #{run.5} parent=0 // pred_check
    %p959 = pneg %p27
  $region35: #{run.5} parent=0 // pred_check_branch
    %961 = sbr.rel (%p959) target = $region37
  $region36: #{run.5} parent=0 // pred_region
    %v962 = vld [vmem:[#allocation3] sm:$0xff]
    %v963 = vld [vmem:[#allocation3 + $0x8] sm:$0xff]
    %v964 = vld [vmem:[#allocation3 + $0x10] sm:$0xff]
    %v965 = vld [vmem:[#allocation3 + $0x18] sm:$0xff]
    %v966 = vld [vmem:[#allocation3 + $0x20] sm:$0xff]
    %v967 = vld [vmem:[#allocation3 + $0x28] sm:$0xff]
    %v968 = vld [vmem:[#allocation3 + $0x30] sm:$0xff]
    %v969 = vld [vmem:[#allocation3 + $0x38] sm:$0xff]
    %v970 = vld [vmem:[#allocation3 + $0x40] sm:$0xff]
    %v971 = vld [vmem:[#allocation3 + $0x48] sm:$0xff]
    %v972 = vld [vmem:[#allocation3 + $0x50] sm:$0xff]
    %v973 = vld [vmem:[#allocation3 + $0x58] sm:$0xff]
    %v974 = vld [vmem:[#allocation3 + $0x60] sm:$0xff]
    %v975 = vld [vmem:[#allocation3 + $0x68] sm:$0xff]
    %v976 = vld [vmem:[#allocation3 + $0x70] sm:$0xff]
    %v977 = vld [vmem:[#allocation3 + $0x78] sm:$0xff]
    %v978 = vld [vmem:[%s6] sm:$0x1]
    %v980 = vperm.slane %v978, 0
    %v982 = vadd.f32 %v962, %v980
    %v983 = vadd.f32 %v963, %v980
    %v984 = vadd.f32 %v964, %v980
    %v985 = vadd.f32 %v965, %v980
    %v986 = vadd.f32 %v966, %v980
    %v987 = vadd.f32 %v967, %v980
    %v988 = vadd.f32 %v968, %v980
    %v989 = vadd.f32 %v969, %v980
    %v990 = vadd.f32 %v970, %v980
    %v991 = vadd.f32 %v971, %v980
    %v992 = vadd.f32 %v972, %v980
    %v993 = vadd.f32 %v973, %v980
    %v994 = vadd.f32 %v974, %v980
    %v995 = vadd.f32 %v975, %v980
    %v996 = vadd.f32 %v976, %v980
    %v997 = vadd.f32 %v977, %v980
    %v998 = vld [vmem:[%s0] sm:$0xff]
    %v999 = vld [vmem:[%s0 + $0x8] sm:$0xff]
    %v1000 = vld [vmem:[%s0 + $0x10] sm:$0xff]
    %v1001 = vld [vmem:[%s0 + $0x18] sm:$0xff]
    %v1002 = vld [vmem:[%s0 + $0x20] sm:$0xff]
    %v1003 = vld [vmem:[%s0 + $0x28] sm:$0xff]
    %v1004 = vld [vmem:[%s0 + $0x30] sm:$0xff]
    %v1005 = vld [vmem:[%s0 + $0x38] sm:$0xff]
    %v1006 = vld [vmem:[%s0 + $0x40] sm:$0xff]
    %v1007 = vld [vmem:[%s0 + $0x48] sm:$0xff]
    %v1008 = vld [vmem:[%s0 + $0x50] sm:$0xff]
    %v1009 = vld [vmem:[%s0 + $0x58] sm:$0xff]
    %v1010 = vld [vmem:[%s0 + $0x60] sm:$0xff]
    %v1011 = vld [vmem:[%s0 + $0x68] sm:$0xff]
    %v1012 = vld [vmem:[%s0 + $0x70] sm:$0xff]
    %v1013 = vld [vmem:[%s0 + $0x78] sm:$0xff]
    %v1014 = vadd.f32 %v982, %v998
    %v1015 = vadd.f32 %v983, %v999
    %v1016 = vadd.f32 %v984, %v1000
    %v1017 = vadd.f32 %v985, %v1001
    %v1018 = vadd.f32 %v986, %v1002
    %v1019 = vadd.f32 %v987, %v1003
    %v1020 = vadd.f32 %v988, %v1004
    %v1021 = vadd.f32 %v989, %v1005
    %v1022 = vadd.f32 %v990, %v1006
    %v1023 = vadd.f32 %v991, %v1007
    %v1024 = vadd.f32 %v992, %v1008
    %v1025 = vadd.f32 %v993, %v1009
    %v1026 = vadd.f32 %v994, %v1010
    %v1027 = vadd.f32 %v995, %v1011
    %v1028 = vadd.f32 %v996, %v1012
    %v1029 = vadd.f32 %v997, %v1013
    %1030 = vst.msk [vmem:[%s7] sm:$0xff] %vm572, %v1014
    %1031 = vst.msk [vmem:[%s7 + $0x8] sm:$0xff] %vm572, %v1015
    %1032 = vst.msk [vmem:[%s7 + $0x10] sm:$0xff] %vm572, %v1016
    %1033 = vst.msk [vmem:[%s7 + $0x18] sm:$0xff] %vm572, %v1017
    %1034 = vst.msk [vmem:[%s7 + $0x20] sm:$0xff] %vm572, %v1018
    %1035 = vst.msk [vmem:[%s7 + $0x28] sm:$0xff] %vm572, %v1019
    %1036 = vst.msk [vmem:[%s7 + $0x30] sm:$0xff] %vm572, %v1020
    %1037 = vst.msk [vmem:[%s7 + $0x38] sm:$0xff] %vm572, %v1021
    %1038 = vst.msk [vmem:[%s7 + $0x40] sm:$0xff] %vm572, %v1022
    %1039 = vst.msk [vmem:[%s7 + $0x48] sm:$0xff] %vm572, %v1023
    %1040 = vst.msk [vmem:[%s7 + $0x50] sm:$0xff] %vm572, %v1024
    %1041 = vst.msk [vmem:[%s7 + $0x58] sm:$0xff] %vm572, %v1025
    %1042 = vst.msk [vmem:[%s7 + $0x60] sm:$0xff] %vm572, %v1026
    %1043 = vst.msk [vmem:[%s7 + $0x68] sm:$0xff] %vm572, %v1027
    %1044 = vst.msk [vmem:[%s7 + $0x70] sm:$0xff] %vm572, %v1028
    %1045 = vst.msk [vmem:[%s7 + $0x78] sm:$0xff] %vm572, %v1029
  $region37: #{run.5} parent=0 // pred_fallthru
    _
  // Predicated region
  $region38: #{run.5} parent=0 // pred_check
    _
  $region39: #{run.5} parent=0 // pred_check_branch
    %1047 = sbr.rel (0) target = $region41
  $region40: #{run.5} parent=0 // pred_region
    _
  $region41: #{run.5} parent=0 // pred_fallthru
    _
  // Predicated region
  $region42: #{run.5} parent=0 // pred_check
    _
  $region43: #{run.5} parent=0 // pred_check_branch
    %1049 = sbr.rel (0) target = $region45
  $region44: #{run.5} parent=0 // pred_region
    _
  $region45: #{run.5} parent=0 // pred_fallthru
    _

</llo_original>
